<compile_context>
chip_gen: v6e
topology: v6e:2x2x1
jax: 0.10.0
libtpu: 0.0.40
codegen_flags: <defaults>
</compile_context>

<pallas_src>
import jax
import jax.numpy as jnp
from jax.experimental import pallas as pl
from jax.experimental.pallas import tpu as pltpu


def _round_up(x, m):
    return ((x + m - 1) // m) * m


def _pick_tile(s_total, cap=2048):
    """Spatial tile size: largest multiple-of-128 divisor of S that is <= cap,
    preferring >= 2 spatial blocks (so the v7x megacore has work on both TCs).
    Falls back to the full extent when S is not a multiple of 128 (full-dim
    blocks are always legal)."""
    if s_total % 128 != 0:
        # TODO(synk): pad the spatial axis instead if huge odd volumes show up.
        return s_total
    q = s_total // 128
    limit = min(max(cap // 128, 1), q if s_total < 256 else max(1, q // 2))
    for d in range(limit, 0, -1):
        if q % d == 0:
            return 128 * d
    return 128


# ----------------------------------------------------------------------------
# Fused kernel:  out[c2, s] = SiLU( W_x.T @ x[:, s] + W_coord.T @ coords(s) + b )
# ----------------------------------------------------------------------------
def _make_coordconv_kernel(*, tm, c_in, c_pad, c_out, with_r, in_dims,
                           out_dims, stride):
    D, H, W = in_dims          # original (pre-conv-stride) spatial dims
    Do, Ho, Wo = out_dims      # output spatial dims
    # torch.linspace(-1, 1, n)[i] = -1 + 2*i/(n-1)   (n == 1 -> -1)
    sx = float(stride) * 2.0 / max(W - 1, 1)
    sy = float(stride) * 2.0 / max(H - 1, 1)
    sz = float(stride) * 2.0 / max(D - 1, 1)
    wo_f, ho_f = float(Wo), float(Ho)

    def _divmod_f32(s, n_f):
        # Exact integer floor-div / mod on f32-held integers (S < ~2**23),
        # with a +-1 correction so a non-correctly-rounded divide is still OK.
        q = jnp.floor(s / n_f)
        r = s - q * n_f
        q = jnp.where(r < 0.0, q - 1.0, q)
        r = jnp.where(r < 0.0, r + n_f, r)
        q = jnp.where(r >= n_f, q + 1.0, q)
        r = jnp.where(r >= n_f, r - n_f, r)
        return q, r

    def kernel(x_ref, wt_ref, wc_ref, b_ref, o_ref):
        # x_ref : (c_in, tm)   input channels, spatial on the lane axis
        # wt_ref: (c_out, c_pad) BN-folded conv weight (input-channel part)
        # wc_ref: (c_out, 3|4)   BN-folded weight columns for xx/yy/zz(/rr)
        # b_ref : (c_out, 1)     folded BN bias
        # o_ref : (c_out, tm)
        x = x_ref[...].astype(jnp.float32)

        # ---- 1x1x1 conv over the real input channels -----------------------
        if c_in > 16:
            if c_pad > c_in:
                x = jnp.concatenate(
                    [x, jnp.zeros((c_pad - c_in, tm), jnp.float32)], axis=0)
            y = jnp.dot(wt_ref[...], x, preferred_element_type=jnp.float32)
        else:
            # Tiny contraction: unrolled VPU MACs instead of a degenerate
            # K<8 MXU matmul (the kernel is HBM-bound, VPU slots are free).
            y = wt_ref[:, 0:1] * x[0:1, :]
            for c in range(1, c_in):
                y = y + wt_ref[:, c:c + 1] * x[c:c + 1, :]

        # ---- fused AddCoords (coords generated in-register, never in HBM) --
        lane = jax.lax.broadcasted_iota(jnp.int32, (1, tm), 1)
        sf = (pl.program_id(1) * tm).astype(jnp.float32) + lane.astype(
            jnp.float32)                         # global output voxel index
        wq, wi = _divmod_f32(sf, wo_f)           # wi = s %  Wo
        dq, hi = _divmod_f32(wq, ho_f)           # hi = (s // Wo) % Ho
        di = dq                                  # di = s // (Wo*Ho)
        xx = wi * sx - 1.0                       # linspace(-1, 1, W)[wi*stride]
        yy = hi * sy - 1.0
        zz = di * sz - 1.0
        y = y + wc_ref[:, 0:1] * xx + wc_ref[:, 1:2] * yy + wc_ref[:, 2:3] * zz
        if with_r:
            rr = jnp.sqrt((xx - 0.5) ** 2 + (yy - 0.5) ** 2)
            y = y + wc_ref[:, 3:4] * rr

        # ---- folded BN bias + SiLU (f32 epilogue on all generations) -------
        y = y + b_ref[...]
        y = y / (1.0 + jnp.exp(-y))              # SiLU = y * sigmoid(y)
        o_ref[...] = y.astype(o_ref.dtype)

    return kernel


def _coordconv_pallas(x, wt, wc, bias, *, in_dims, out_dims, stride, with_r,
                      out_dtype, tile_cap):
    """x: [N, C, S] (any float dtype) -> [N, C2, S] out_dtype."""
    n, c_in, s_total = x.shape
    c_out, c_pad = wt.shape
    nc = wc.shape[1]
    tm = _pick_tile(s_total, tile_cap)
    grid = (n, s_total // tm)

    kernel = _make_coordconv_kernel(
        tm=tm, c_in=c_in, c_pad=c_pad, c_out=c_out, with_r=with_r,
        in_dims=in_dims, out_dims=out_dims, stride=stride)

    out_itemsize = jnp.dtype(out_dtype).itemsize
    cost = pl.CostEstimate(
        flops=2 * n * s_total * (c_pad + nc) * c_out,
        transcendentals=n * s_total * c_out,
        bytes_accessed=int(x.size * x.dtype.itemsize
                           + (wt.size + wc.size + bias.size) * 4
                           + n * c_out * s_total * out_itemsize))

    return pl.pallas_call(
        kernel,
        out_shape=jax.ShapeDtypeStruct((n, c_out, s_total), out_dtype),
        grid=grid,
        in_specs=[
            pl.BlockSpec((None, c_in, tm), lambda b, i: (b, 0, i)),  # x tile
            pl.BlockSpec((c_out, c_pad), lambda b, i: (0, 0)),       # resident
            pl.BlockSpec((c_out, nc), lambda b, i: (0, 0)),          # resident
            pl.BlockSpec((c_out, 1), lambda b, i: (0, 0)),           # resident
        ],
        out_specs=pl.BlockSpec((None, c_out, tm), lambda b, i: (b, 0, i)),
        compiler_params=pltpu.CompilerParams(
            dimension_semantics=("parallel", "parallel")),
        cost_estimate=cost,
    )(x, wt, wc, bias)


# ----------------------------------------------------------------------------
# CoordConv builder: folded params + jitted NCDHW forward + pure-JAX reference
# ----------------------------------------------------------------------------
def make_coordconv(key, in_channels, out_channels, *, with_r=False, stride=1,
                   out_dtype=jnp.float32, tile_cap=2048):
    """Deterministic CoordConv(k=1, s=stride) params; returns (forward, reference).

    out_dtype=jnp.bfloat16 halves the dominant output HBM stream if the
    downstream network accepts bf16 activations (default f32 matches PyTorch).
    """
    nc = 4 if with_r else 3
    c1 = in_channels + nc
    c2 = out_channels

    k_w, k_g, k_b, k_m, k_v = jax.random.split(key, 5)
    # Conv3d(c1, c2, kernel=1, bias=False) weight, flattened to [c1, c2].
    w = jax.random.normal(k_w, (c1, c2), jnp.float32) / jnp.sqrt(float(c1))
    # Deterministic synthetic BatchNorm3d (eval-mode) parameters.
    gamma = 1.0 + 0.1 * jax.random.normal(k_g, (c2,), jnp.float32)
    beta = 0.1 * jax.random.normal(k_b, (c2,), jnp.float32)
    mean = 0.05 * jax.random.normal(k_m, (c2,), jnp.float32)
    var = 1.0 + 0.1 * jnp.abs(jax.random.normal(k_v, (c2,), jnp.float32))
    eps = 1e-5

    scale = gamma / jnp.sqrt(var + eps)          # folded eval-mode BN scale
    bn_bias = beta - mean * scale
    w_folded = w * scale[None, :]                # [c1, c2]

    # Transposed, BN-folded weights.  Input-channel part padded (with zero
    # columns) to a multiple of 8 on the contraction axis; coordinate part
    # kept separate so coords can be generated in-kernel.
    c_pad = _round_up(in_channels, 8)
    wt = (jnp.zeros((c2, c_pad), jnp.float32)
          .at[:, :in_channels].set(w_folded[:in_channels].T))
    wc = w_folded[in_channels:].T                # [c2, nc]: xx, yy, zz (, rr)
    b2 = bn_bias.reshape(c2, 1)

    s = int(stride)

    @jax.jit
    def forward(x_ncdhw):
        # x: [N, C, D, H, W]  (PyTorch NCDHW layout; D=z, H=y, W=x)
        n, c, d, h, wdt = x_ncdhw.shape
        if c != in_channels:
            raise ValueError(f"expected {in_channels} channels, got {c}")
        xs = x_ncdhw[:, :, ::s, ::s, ::s] if s > 1 else x_ncdhw
        do, ho, wo = xs.shape[2], xs.shape[3], xs.shape[4]
        xf = xs.reshape(n, c, do * ho * wo)                 # free reshape
        y = _coordconv_pallas(xf, wt, wc, b2,
                              in_dims=(d, h, wdt), out_dims=(do, ho, wo),
                              stride=s, with_r=with_r, out_dtype=out_dtype,
                              tile_cap=tile_cap)
        return y.reshape(n, c2, do, ho, wo)                 # free reshape

    @jax.jit
    def reference(x_ncdhw):
        # Pure-JAX reference (AddCoords -> 1x1x1 conv -> eval BN -> SiLU).
        n, _, d, h, wdt = x_ncdhw.shape
        zr = jnp.linspace(-1.0, 1.0, d, dtype=jnp.float32)
        yr = jnp.linspace(-1.0, 1.0, h, dtype=jnp.float32)
        xr = jnp.linspace(-1.0, 1.0, wdt, dtype=jnp.float32)
        zz, yy, xx = jnp.meshgrid(zr, yr, xr, indexing="ij")

        def bc(t):
            return jnp.broadcast_to(t[None, None], (n, 1, d, h, wdt))

        feats = [x_ncdhw.astype(jnp.float32), bc(xx), bc(yy), bc(zz)]
        if with_r:
            feats.append(jnp.sqrt((bc(xx) - 0.5) ** 2 + (bc(yy) - 0.5) ** 2))
        a = jnp.concatenate(feats, axis=1)
        if s > 1:
            a = a[:, :, ::s, ::s, ::s]
        y = jnp.einsum("nidhw,io->nodhw", a, w_folded,
                       precision=jax.lax.Precision.HIGHEST)
        y = y + bn_bias[None, :, None, None, None]
        return (y * jax.nn.sigmoid(y)).astype(out_dtype)

    return forward, reference


# ----------------------------------------------------------------------------
if __name__ == "__main__":
    key = jax.random.PRNGKey(0)
    in_channels, out_channels = 4, 32
    N, D, H, W = 2, 16, 16, 16

    x = jax.random.normal(jax.random.fold_in(key, 2),
                          (N, in_channels, D, H, W), jnp.float32)

    # Default CoordConv: kernel_size=1, stride=1, with_r=False.
    fwd, ref = make_coordconv(jax.random.fold_in(key, 1),
                              in_channels, out_channels)
    out = jax.block_until_ready(fwd(x))
    assert out.shape == (N, out_channels, D, H, W), out.shape
    assert bool(jnp.all(jnp.isfinite(out)))
    expected = ref(x)
    assert bool(jnp.allclose(out, expected, atol=1e-3, rtol=1e-3)), \
        float(jnp.max(jnp.abs(out - expected)))

    # Also exercise with_r=True and a strided (s=2) conv.
    fwd_r, ref_r = make_coordconv(jax.random.fold_in(key, 3),
                                  in_channels, out_channels,
                                  with_r=True, stride=2)
    out_r = jax.block_until_ready(fwd_r(x))
    assert out_r.shape == (N, out_channels, D // 2, H // 2, W // 2), out_r.shape
    assert bool(jnp.all(jnp.isfinite(out_r)))
    expected_r = ref_r(x)
    assert bool(jnp.allclose(out_r, expected_r, atol=1e-3, rtol=1e-3)), \
        float(jnp.max(jnp.abs(out_r - expected_r)))

    print("KERNEL_OK")
</pallas_src>

<mosaic_0001>
module attributes {stable_mosaic.version = 11 : i64} {
  func.func @kernel(%arg0: i32, %arg1: i32, %arg2: memref<1x4x2048xf32, #tpu.memory_space<vmem>>, %arg3: memref<32x8xf32, #tpu.memory_space<vmem>>, %arg4: memref<32x3xf32, #tpu.memory_space<vmem>>, %arg5: memref<32x1xf32, #tpu.memory_space<vmem>>, %arg6: memref<1x32x2048xf32, #tpu.memory_space<vmem>>) attributes {dimension_semantics = [#tpu.dimension_semantics<parallel>, #tpu.dimension_semantics<parallel>], iteration_bounds = array<i64: 2, 2>, scalar_prefetch = 0 : i64, scratch_operands = 0 : i64, tpu.core_type = #tpu.core_type<tc>, window_params = [{transform_indices = @transform_0, window_bounds = array<i64: 1, 4, 2048>}, {pipeline_mode = #tpu.pipeline_mode<synchronous>, transform_indices = @transform_1, window_bounds = array<i64: 32, 8>}, {pipeline_mode = #tpu.pipeline_mode<synchronous>, transform_indices = @transform_2, window_bounds = array<i64: 32, 3>}, {pipeline_mode = #tpu.pipeline_mode<synchronous>, transform_indices = @transform_3, window_bounds = array<i64: 32, 1>}, {transform_indices = @transform_4, window_bounds = array<i64: 1, 32, 2048>}]} {
    %c0 = arith.constant 0 : index
    %c0_0 = arith.constant 0 : index
    %c0_1 = arith.constant 0 : index
    %0 = vector.load %arg2[%c0, %c0_0, %c0_1] : memref<1x4x2048xf32, #tpu.memory_space<vmem>>, vector<1x4x2048xf32>
    %1 = vector.shape_cast %0 : vector<1x4x2048xf32> to vector<4x2048xf32>
    %c0_2 = arith.constant 0 : index
    %c0_3 = arith.constant 0 : index
    %2 = vector.load %arg3[%c0_2, %c0_3] : memref<32x8xf32, #tpu.memory_space<vmem>>, vector<32x1xf32>
    %3 = vector.extract_strided_slice %1 {offsets = [0, 0], sizes = [1, 2048], strides = [1, 1]} : vector<4x2048xf32> to vector<1x2048xf32>
    %4 = vector.broadcast %2 : vector<32x1xf32> to vector<32x2048xf32>
    %5 = vector.broadcast %3 : vector<1x2048xf32> to vector<32x2048xf32>
    %6 = arith.mulf %4, %5 : vector<32x2048xf32>
    %c0_4 = arith.constant 0 : index
    %c1 = arith.constant 1 : index
    %7 = vector.load %arg3[%c0_4, %c1] : memref<32x8xf32, #tpu.memory_space<vmem>>, vector<32x1xf32>
    %8 = vector.extract_strided_slice %1 {offsets = [1, 0], sizes = [1, 2048], strides = [1, 1]} : vector<4x2048xf32> to vector<1x2048xf32>
    %9 = vector.broadcast %7 : vector<32x1xf32> to vector<32x2048xf32>
    %10 = vector.broadcast %8 : vector<1x2048xf32> to vector<32x2048xf32>
    %11 = arith.mulf %9, %10 : vector<32x2048xf32>
    %12 = arith.addf %6, %11 : vector<32x2048xf32>
    %c0_5 = arith.constant 0 : index
    %c2 = arith.constant 2 : index
    %13 = vector.load %arg3[%c0_5, %c2] : memref<32x8xf32, #tpu.memory_space<vmem>>, vector<32x1xf32>
    %14 = vector.extract_strided_slice %1 {offsets = [2, 0], sizes = [1, 2048], strides = [1, 1]} : vector<4x2048xf32> to vector<1x2048xf32>
    %15 = vector.broadcast %13 : vector<32x1xf32> to vector<32x2048xf32>
    %16 = vector.broadcast %14 : vector<1x2048xf32> to vector<32x2048xf32>
    %17 = arith.mulf %15, %16 : vector<32x2048xf32>
    %18 = arith.addf %12, %17 : vector<32x2048xf32>
    %c0_6 = arith.constant 0 : index
    %c3 = arith.constant 3 : index
    %19 = vector.load %arg3[%c0_6, %c3] : memref<32x8xf32, #tpu.memory_space<vmem>>, vector<32x1xf32>
    %20 = vector.extract_strided_slice %1 {offsets = [3, 0], sizes = [1, 2048], strides = [1, 1]} : vector<4x2048xf32> to vector<1x2048xf32>
    %21 = vector.broadcast %19 : vector<32x1xf32> to vector<32x2048xf32>
    %22 = vector.broadcast %20 : vector<1x2048xf32> to vector<32x2048xf32>
    %23 = arith.mulf %21, %22 : vector<32x2048xf32>
    %24 = arith.addf %18, %23 : vector<32x2048xf32>
    %25 = tpu.iota {dimensions = array<i32: 1>} : vector<1x2048xi32>
    %c2048_i32 = arith.constant 2048 : i32
    %26 = arith.muli %arg1, %c2048_i32 : i32
    %27 = arith.sitofp %26 : i32 to f32
    %28 = arith.sitofp %25 : vector<1x2048xi32> to vector<1x2048xf32>
    %29 = vector.broadcast %27 : f32 to vector<1x2048xf32>
    %30 = arith.addf %29, %28 : vector<1x2048xf32>
    %cst = arith.constant 1.600000e+01 : f32
    %31 = vector.broadcast %cst : f32 to vector<1x2048xf32>
    %32 = arith.divf %30, %31 : vector<1x2048xf32>
    %33 = math.floor %32 : vector<1x2048xf32>
    %cst_7 = arith.constant 1.600000e+01 : f32
    %34 = vector.broadcast %cst_7 : f32 to vector<1x2048xf32>
    %35 = arith.mulf %33, %34 : vector<1x2048xf32>
    %36 = arith.subf %30, %35 : vector<1x2048xf32>
    %cst_8 = arith.constant 0.000000e+00 : f32
    %37 = vector.broadcast %cst_8 : f32 to vector<1x2048xf32>
    %38 = arith.cmpf olt, %36, %37 : vector<1x2048xf32>
    %cst_9 = arith.constant 1.000000e+00 : f32
    %39 = vector.broadcast %cst_9 : f32 to vector<1x2048xf32>
    %40 = arith.subf %33, %39 : vector<1x2048xf32>
    %41 = arith.select %38, %40, %33 : vector<1x2048xi1>, vector<1x2048xf32>
    %cst_10 = arith.constant 0.000000e+00 : f32
    %42 = vector.broadcast %cst_10 : f32 to vector<1x2048xf32>
    %43 = arith.cmpf olt, %36, %42 : vector<1x2048xf32>
    %cst_11 = arith.constant 1.600000e+01 : f32
    %44 = vector.broadcast %cst_11 : f32 to vector<1x2048xf32>
    %45 = arith.addf %36, %44 : vector<1x2048xf32>
    %46 = arith.select %43, %45, %36 : vector<1x2048xi1>, vector<1x2048xf32>
    %cst_12 = arith.constant 1.600000e+01 : f32
    %47 = vector.broadcast %cst_12 : f32 to vector<1x2048xf32>
    %48 = arith.cmpf oge, %46, %47 : vector<1x2048xf32>
    %cst_13 = arith.constant 1.000000e+00 : f32
    %49 = vector.broadcast %cst_13 : f32 to vector<1x2048xf32>
    %50 = arith.addf %41, %49 : vector<1x2048xf32>
    %51 = arith.select %48, %50, %41 : vector<1x2048xi1>, vector<1x2048xf32>
    %cst_14 = arith.constant 1.600000e+01 : f32
    %52 = vector.broadcast %cst_14 : f32 to vector<1x2048xf32>
    %53 = arith.cmpf oge, %46, %52 : vector<1x2048xf32>
    %cst_15 = arith.constant 1.600000e+01 : f32
    %54 = vector.broadcast %cst_15 : f32 to vector<1x2048xf32>
    %55 = arith.subf %46, %54 : vector<1x2048xf32>
    %56 = arith.select %53, %55, %46 : vector<1x2048xi1>, vector<1x2048xf32>
    %cst_16 = arith.constant 1.600000e+01 : f32
    %57 = vector.broadcast %cst_16 : f32 to vector<1x2048xf32>
    %58 = arith.divf %51, %57 : vector<1x2048xf32>
    %59 = math.floor %58 : vector<1x2048xf32>
    %cst_17 = arith.constant 1.600000e+01 : f32
    %60 = vector.broadcast %cst_17 : f32 to vector<1x2048xf32>
    %61 = arith.mulf %59, %60 : vector<1x2048xf32>
    %62 = arith.subf %51, %61 : vector<1x2048xf32>
    %cst_18 = arith.constant 0.000000e+00 : f32
    %63 = vector.broadcast %cst_18 : f32 to vector<1x2048xf32>
    %64 = arith.cmpf olt, %62, %63 : vector<1x2048xf32>
    %cst_19 = arith.constant 1.000000e+00 : f32
    %65 = vector.broadcast %cst_19 : f32 to vector<1x2048xf32>
    %66 = arith.subf %59, %65 : vector<1x2048xf32>
    %67 = arith.select %64, %66, %59 : vector<1x2048xi1>, vector<1x2048xf32>
    %cst_20 = arith.constant 0.000000e+00 : f32
    %68 = vector.broadcast %cst_20 : f32 to vector<1x2048xf32>
    %69 = arith.cmpf olt, %62, %68 : vector<1x2048xf32>
    %cst_21 = arith.constant 1.600000e+01 : f32
    %70 = vector.broadcast %cst_21 : f32 to vector<1x2048xf32>
    %71 = arith.addf %62, %70 : vector<1x2048xf32>
    %72 = arith.select %69, %71, %62 : vector<1x2048xi1>, vector<1x2048xf32>
    %cst_22 = arith.constant 1.600000e+01 : f32
    %73 = vector.broadcast %cst_22 : f32 to vector<1x2048xf32>
    %74 = arith.cmpf oge, %72, %73 : vector<1x2048xf32>
    %cst_23 = arith.constant 1.000000e+00 : f32
    %75 = vector.broadcast %cst_23 : f32 to vector<1x2048xf32>
    %76 = arith.addf %67, %75 : vector<1x2048xf32>
    %77 = arith.select %74, %76, %67 : vector<1x2048xi1>, vector<1x2048xf32>
    %cst_24 = arith.constant 1.600000e+01 : f32
    %78 = vector.broadcast %cst_24 : f32 to vector<1x2048xf32>
    %79 = arith.cmpf oge, %72, %78 : vector<1x2048xf32>
    %cst_25 = arith.constant 1.600000e+01 : f32
    %80 = vector.broadcast %cst_25 : f32 to vector<1x2048xf32>
    %81 = arith.subf %72, %80 : vector<1x2048xf32>
    %82 = arith.select %79, %81, %72 : vector<1x2048xi1>, vector<1x2048xf32>
    %cst_26 = arith.constant 0.13333334 : f32
    %83 = vector.broadcast %cst_26 : f32 to vector<1x2048xf32>
    %84 = arith.mulf %56, %83 : vector<1x2048xf32>
    %cst_27 = arith.constant 1.000000e+00 : f32
    %85 = vector.broadcast %cst_27 : f32 to vector<1x2048xf32>
    %86 = arith.subf %84, %85 : vector<1x2048xf32>
    %cst_28 = arith.constant 0.13333334 : f32
    %87 = vector.broadcast %cst_28 : f32 to vector<1x2048xf32>
    %88 = arith.mulf %82, %87 : vector<1x2048xf32>
    %cst_29 = arith.constant 1.000000e+00 : f32
    %89 = vector.broadcast %cst_29 : f32 to vector<1x2048xf32>
    %90 = arith.subf %88, %89 : vector<1x2048xf32>
    %cst_30 = arith.constant 0.13333334 : f32
    %91 = vector.broadcast %cst_30 : f32 to vector<1x2048xf32>
    %92 = arith.mulf %77, %91 : vector<1x2048xf32>
    %cst_31 = arith.constant 1.000000e+00 : f32
    %93 = vector.broadcast %cst_31 : f32 to vector<1x2048xf32>
    %94 = arith.subf %92, %93 : vector<1x2048xf32>
    %c0_32 = arith.constant 0 : index
    %c0_33 = arith.constant 0 : index
    %95 = vector.load %arg4[%c0_32, %c0_33] : memref<32x3xf32, #tpu.memory_space<vmem>>, vector<32x1xf32>
    %96 = vector.broadcast %95 : vector<32x1xf32> to vector<32x2048xf32>
    %97 = vector.broadcast %86 : vector<1x2048xf32> to vector<32x2048xf32>
    %98 = arith.mulf %96, %97 : vector<32x2048xf32>
    %99 = arith.addf %24, %98 : vector<32x2048xf32>
    %c0_34 = arith.constant 0 : index
    %c1_35 = arith.constant 1 : index
    %100 = vector.load %arg4[%c0_34, %c1_35] : memref<32x3xf32, #tpu.memory_space<vmem>>, vector<32x1xf32>
    %101 = vector.broadcast %100 : vector<32x1xf32> to vector<32x2048xf32>
    %102 = vector.broadcast %90 : vector<1x2048xf32> to vector<32x2048xf32>
    %103 = arith.mulf %101, %102 : vector<32x2048xf32>
    %104 = arith.addf %99, %103 : vector<32x2048xf32>
    %c0_36 = arith.constant 0 : index
    %c2_37 = arith.constant 2 : index
    %105 = vector.load %arg4[%c0_36, %c2_37] : memref<32x3xf32, #tpu.memory_space<vmem>>, vector<32x1xf32>
    %106 = vector.broadcast %105 : vector<32x1xf32> to vector<32x2048xf32>
    %107 = vector.broadcast %94 : vector<1x2048xf32> to vector<32x2048xf32>
    %108 = arith.mulf %106, %107 : vector<32x2048xf32>
    %109 = arith.addf %104, %108 : vector<32x2048xf32>
    %c0_38 = arith.constant 0 : index
    %c0_39 = arith.constant 0 : index
    %110 = vector.load %arg5[%c0_38, %c0_39] : memref<32x1xf32, #tpu.memory_space<vmem>>, vector<32x1xf32>
    %111 = vector.broadcast %110 : vector<32x1xf32> to vector<32x2048xf32>
    %112 = arith.addf %109, %111 : vector<32x2048xf32>
    %cst_40 = arith.constant 0.000000e+00 : f32
    %113 = vector.broadcast %cst_40 : f32 to vector<32x2048xf32>
    %114 = arith.subf %113, %112 : vector<32x2048xf32>
    %115 = math.exp %114 : vector<32x2048xf32>
    %cst_41 = arith.constant 1.000000e+00 : f32
    %116 = vector.broadcast %cst_41 : f32 to vector<32x2048xf32>
    %117 = arith.addf %116, %115 : vector<32x2048xf32>
    %118 = arith.divf %112, %117 : vector<32x2048xf32>
    %c0_42 = arith.constant 0 : index
    %c0_43 = arith.constant 0 : index
    %c0_44 = arith.constant 0 : index
    %119 = vector.load %arg6[%c0_42, %c0_43, %c0_44] : memref<1x32x2048xf32, #tpu.memory_space<vmem>>, vector<1x32x2048xf32>
    %120 = vector.shape_cast %119 : vector<1x32x2048xf32> to vector<32x2048xf32>
    %121 = vector.shape_cast %118 : vector<32x2048xf32> to vector<1x32x2048xf32>
    tpu.vector_store %arg6[%c0_42, %c0_43, %c0_44], %121 {strides = array<i32>} : memref<1x32x2048xf32, #tpu.memory_space<vmem>>, vector<1x32x2048xf32>,
    return
  }
  func.func @transform_0(%arg0: i32, %arg1: i32) -> (i32, i32, i32) {
    %c0_i32 = arith.constant 0 : i32
    %c0_i32_0 = arith.constant 0 : i32
    return %arg0, %c0_i32, %arg1 : i32, i32, i32
  }
  func.func @transform_1(%arg0: i32, %arg1: i32) -> (i32, i32) {
    %c0_i32 = arith.constant 0 : i32
    %c0_i32_0 = arith.constant 0 : i32
    %c0_i32_1 = arith.constant 0 : i32
    return %c0_i32, %c0_i32_0 : i32, i32
  }
  func.func @transform_2(%arg0: i32, %arg1: i32) -> (i32, i32) {
    %c0_i32 = arith.constant 0 : i32
    %c0_i32_0 = arith.constant 0 : i32
    %c0_i32_1 = arith.constant 0 : i32
    return %c0_i32, %c0_i32_0 : i32, i32
  }
  func.func @transform_3(%arg0: i32, %arg1: i32) -> (i32, i32) {
    %c0_i32 = arith.constant 0 : i32
    %c0_i32_0 = arith.constant 0 : i32
    %c0_i32_1 = arith.constant 0 : i32
    return %c0_i32, %c0_i32_0 : i32, i32
  }
  func.func @transform_4(%arg0: i32, %arg1: i32) -> (i32, i32, i32) {
    %c0_i32 = arith.constant 0 : i32
    %c0_i32_0 = arith.constant 0 : i32
    return %arg0, %c0_i32, %arg1 : i32, i32, i32
  }
}

</mosaic_0001>

<llo_original>
// kernel: forward.1
$region0: #{forward.1}
  #allocation0 [shape = 'u32[]', space=smem, size = 0x4, offset = 0x4, fixed_abs, tag = 'smem constant byte address 0x4 - core index']
  #allocation1 [shape = 'u32[144,128]{1,0:T(1,128)}', space=vmem, size = 0x12000, scoped, tag = 'internal scratch']
  %s0 = inlined_call_operand.vmem [shape: f32[2,4,4096], index: 0, kind: input, shape index: {}]
  %s1 = inlined_call_operand.hbm [shape: f32[32,8], index: 1, kind: input, shape index: {}]
  %s2 = inlined_call_operand.hbm [shape: f32[32,3], index: 2, kind: input, shape index: {}]
  %s3 = inlined_call_operand.hbm [shape: f32[32,1], index: 3, kind: input, shape index: {}]
  %s4 = inlined_call_operand.vmem [shape: f32[2,32,4096], index: 4, kind: output, shape index: {}]
  %s5 = sld [smem:[#allocation0]]
  $region80: #{forward.1} parent=0
    _
  %s7 = ssub.s32 1, %s5
  %s8 = scalar_select 0, %s7, %s5
  $region1: #{forward.1} parent=0
    #allocation2 [shape = 'u8[16384]{0}', space=vmem, size = 0x4000, scoped, tag = 'input window, operand 1, single buffered']
    #allocation3 [shape = 's32[2]{0}', space=sflag, size = 0x8, scoped, tag = 'scoped memory for forward.1']
    #allocation4 [shape = 'u8[16384]{0}', space=vmem, size = 0x4000, scoped, tag = 'input window, operand 2, single buffered']
    #allocation5 [shape = 's32[1]{0}', space=sflag, size = 0x4, scoped, tag = 'scoped memory for forward.1']
    #allocation6 [shape = 'u8[16384]{0}', space=vmem, size = 0x4000, scoped, tag = 'input window, operand 3, single buffered']
    #allocation7 [shape = 'u8[524288]{0}', space=vmem, size = 0x80000, scoped, tag = 'output window, operand 0']
    %9 = vsyncpa [#allocation3], 0
    %10 = vsyncpa [#allocation5], 0
    loop: start=0, step=1, limit=6
    $region2: #{forward.1} parent=1 // loop_pre_header
      _
    $region3: #{forward.1} parent=1 // loop_header
      %s12 = sphi 0, %s16
      %p13 = scmp.ge.s32.totalorder %s12, 6
      %s19 = sphi 0, %s31
      %s20 = sphi 0, %s27
      %s21 = sphi 0, %s19
      %s22 = sphi 0, %s20
      %s23 = sphi 0, %s21
      %s24 = sphi 0, %s22
      %s36 = sphi 0, %s38
      %s39 = sphi 0, %s36
      %s40 = sphi 0, %s39
      %s56 = sphi 0, %s40
      %s60 = sphi 0, %s60
      %s62 = sphi 0, %s60
      %s63 = sphi 0, %s62
      %s77 = sphi 0, %s63
      %s81 = sphi 0, %s81
      %s83 = sphi 0, %s81
      %s84 = sphi 0, %s83
      %s98 = sphi 0, %s84
      %s102 = sphi 0, %s102
      %s104 = sphi 0, %s102
      %s105 = sphi 0, %s104
      %s119 = sphi 0, %s105
      %s127 = sphi 0, %s129
      %s130 = sphi 0, %s127
      %s131 = sphi 0, %s130
      %s147 = sphi 0, %s131
    $region4: #{forward.1} parent=1 // loop_header_branch
      %15 = sbr.rel (%p13) target = $region8
    $region5: #{forward.1} parent=1 // loop_body
      %s17 = ssub.s32 %s12, 1
      %s18 = ssub.s32 %s12, 2
      %s25 = sadd.s32 1, %s20
      %p26 = scmp.ge.s32.totalorder %s25, 2
      %s27 = scalar_select %p26, 0, %s25
      %s28 = sadd.s32 1, %s19
      %s29 = scalar_select %p26, %s28, %s19
      %p30 = scmp.ge.s32.totalorder %s29, 2
      %s31 = scalar_select %p30, 0, %s29
      %s32 = ssub.s32 %s19, %s31
      %s33 = ssub.s32 %s20, %s27
      %s34 = sor.u32 %s32, %s33
      %p35 = scmp.eq.s32.totalorder %s34, 0
      %s37 = sadd.s32 %s36, 1
      %s38 = scalar_select %p35, %s36, %s37
      %p41 = pneg %p35
      %p42 = scmp.eq.s32.totalorder %s12, 3
      %p43 = por %p41, %p42
      %p44 = scmp.ne.s32.totalorder %s36, %s39
      %p45 = scmp.eq.s32.totalorder %s12, 0
      %p46 = por %p44, %p45
      %p47 = scmp.ne.s32.totalorder %s36, %s39
      %p48 = scmp.eq.s32.totalorder %s17, 3
      %p49 = por %p47, %p48
      %p50 = scmp.ne.s32.totalorder %s39, %s40
      %p51 = scmp.eq.s32.totalorder %s17, 0
      %p52 = por %p50, %p51
      %p53 = scmp.ne.s32.totalorder %s39, %s40
      %p54 = scmp.eq.s32.totalorder %s18, 3
      %p55 = por %p53, %p54
      %p57 = scmp.ne.s32.totalorder %s40, %s56
      %p58 = scmp.eq.s32.totalorder %s18, 0
      %p59 = por %p57, %p58
      %s61 = sadd.s32 %s60, 1
      %p64 = scmp.eq.s32.totalorder %s12, 3
      %p65 = scmp.ne.s32.totalorder %s60, %s62
      %p66 = scmp.eq.s32.totalorder %s12, 0
      %p67 = por %p65, %p66
      %p68 = scmp.ne.s32.totalorder %s60, %s62
      %p69 = scmp.eq.s32.totalorder %s17, 3
      %p70 = por %p68, %p69
      %p71 = scmp.ne.s32.totalorder %s62, %s63
      %p72 = scmp.eq.s32.totalorder %s17, 0
      %p73 = por %p71, %p72
      %p74 = scmp.ne.s32.totalorder %s62, %s63
      %p75 = scmp.eq.s32.totalorder %s18, 3
      %p76 = por %p74, %p75
      %p78 = scmp.ne.s32.totalorder %s63, %s77
      %p79 = scmp.eq.s32.totalorder %s18, 0
      %p80 = por %p78, %p79
      %s82 = sadd.s32 %s81, 1
      %p85 = scmp.eq.s32.totalorder %s12, 3
      %p86 = scmp.ne.s32.totalorder %s81, %s83
      %p87 = scmp.eq.s32.totalorder %s12, 0
      %p88 = por %p86, %p87
      %p89 = scmp.ne.s32.totalorder %s81, %s83
      %p90 = scmp.eq.s32.totalorder %s17, 3
      %p91 = por %p89, %p90
      %p92 = scmp.ne.s32.totalorder %s83, %s84
      %p93 = scmp.eq.s32.totalorder %s17, 0
      %p94 = por %p92, %p93
      %p95 = scmp.ne.s32.totalorder %s83, %s84
      %p96 = scmp.eq.s32.totalorder %s18, 3
      %p97 = por %p95, %p96
      %p99 = scmp.ne.s32.totalorder %s84, %s98
      %p100 = scmp.eq.s32.totalorder %s18, 0
      %p101 = por %p99, %p100
      %s103 = sadd.s32 %s102, 1
      %p106 = scmp.eq.s32.totalorder %s12, 3
      %p107 = scmp.ne.s32.totalorder %s102, %s104
      %p108 = scmp.eq.s32.totalorder %s12, 0
      %p109 = por %p107, %p108
      %p110 = scmp.ne.s32.totalorder %s102, %s104
      %p111 = scmp.eq.s32.totalorder %s17, 3
      %p112 = por %p110, %p111
      %p113 = scmp.ne.s32.totalorder %s104, %s105
      %p114 = scmp.eq.s32.totalorder %s17, 0
      %p115 = por %p113, %p114
      %p116 = scmp.ne.s32.totalorder %s104, %s105
      %p117 = scmp.eq.s32.totalorder %s18, 3
      %p118 = por %p116, %p117
      %p120 = scmp.ne.s32.totalorder %s105, %s119
      %p121 = scmp.eq.s32.totalorder %s18, 0
      %p122 = por %p120, %p121
      %s123 = ssub.s32 %s19, %s31
      %s124 = ssub.s32 %s20, %s27
      %s125 = sor.u32 %s123, %s124
      %p126 = scmp.eq.s32.totalorder %s125, 0
      %s128 = sadd.s32 %s127, 1
      %s129 = scalar_select %p126, %s127, %s128
      %p132 = pneg %p126
      %p133 = scmp.eq.s32.totalorder %s12, 3
      %p134 = por %p132, %p133
      %p135 = scmp.ne.s32.totalorder %s127, %s130
      %p136 = scmp.eq.s32.totalorder %s12, 0
      %p137 = por %p135, %p136
      %p138 = scmp.ne.s32.totalorder %s127, %s130
      %p139 = scmp.eq.s32.totalorder %s17, 3
      %p140 = por %p138, %p139
      %p141 = scmp.ne.s32.totalorder %s130, %s131
      %p142 = scmp.eq.s32.totalorder %s17, 0
      %p143 = por %p141, %p142
      %p144 = scmp.ne.s32.totalorder %s130, %s131
      %p145 = scmp.eq.s32.totalorder %s18, 3
      %p146 = por %p144, %p145
      %p148 = scmp.ne.s32.totalorder %s131, %s147
      %p149 = scmp.eq.s32.totalorder %s18, 0
      %p150 = por %p148, %p149
      %p151 = scmp.le.s32.totalorder 1, %s12
      %p152 = scmp.lt.s32.totalorder %s12, 5
      %p153 = pnand %p151, %p152
      %p154 = pneg %p153
      // Predicated region
      $region9: #{forward.1} parent=5 // pred_check
        _
      $region10: #{forward.1} parent=5 // pred_check_branch
        %156 = sbr.rel (%p153) target = $region12
      $region11: #{forward.1} parent=5 // pred_region
        %s157 = ssub.s32 %s12, 1
        // Predicated region
        $region13: #{forward.1} parent=11 // pred_check
          %p158 = pneg %p73
        $region14: #{forward.1} parent=11 // pred_check_branch
          %160 = sbr.rel (%p158) target = $region16
        $region15: #{forward.1} parent=11 // pred_region
          %s162 = ssub.s32 512, 512
          %163 = vsyncadd [#allocation3], %s162
          %s164 = sshll.u32 [#allocation2], 4
          %s165 = int_to_ptr.vmem [resolvable:$true] %s164
          %170 = dma.hbm_to_vmem [thread:$0]  %s1, 512, %s165, [#allocation3], 128, 128, 8
        $region16: #{forward.1} parent=11 // pred_fallthru
          _
        // Predicated region
        $region17: #{forward.1} parent=11 // pred_check
          %p171 = pneg %p94
        $region18: #{forward.1} parent=11 // pred_check_branch
          %173 = sbr.rel (%p171) target = $region20
        $region19: #{forward.1} parent=11 // pred_region
          %s175 = ssub.s32 512, 512
          %176 = vsyncadd [#allocation5], %s175
          %s177 = sshll.u32 [#allocation4], 4
          %s178 = int_to_ptr.vmem [resolvable:$true] %s177
          %183 = dma.hbm_to_vmem [thread:$0]  %s2, 512, %s178, [#allocation5], 128, 128, 8
        $region20: #{forward.1} parent=11 // pred_fallthru
          _
        // Predicated region
        $region21: #{forward.1} parent=11 // pred_check
          %p184 = pneg %p115
        $region22: #{forward.1} parent=11 // pred_check_branch
          %186 = sbr.rel (%p184) target = $region24
        $region23: #{forward.1} parent=11 // pred_region
          %s188 = ssub.s32 512, 512
          %189 = vsyncadd [#allocation5], %s188
          %s190 = sshll.u32 [#allocation6], 4
          %s191 = int_to_ptr.vmem [resolvable:$true] %s190
          %196 = dma.hbm_to_vmem [thread:$0]  %s3, 512, %s191, [#allocation5], 128, 128, 8
        $region24: #{forward.1} parent=11 // pred_fallthru
          _
      $region12: #{forward.1} parent=5 // pred_fallthru
        _
      %p197 = scmp.lt.s32.totalorder %s12, 4
      // Predicated region
      $region25: #{forward.1} parent=5 // pred_check
        %p198 = pneg %p197
      $region26: #{forward.1} parent=5 // pred_check_branch
        %200 = sbr.rel (%p198) target = $region28
      $region27: #{forward.1} parent=5 // pred_region
        // Predicated region
        $region29: #{forward.1} parent=27 // pred_check
          %p201 = pneg %p46
        $region30: #{forward.1} parent=27 // pred_check_branch
          %203 = sbr.rel (%p201) target = $region32
        $region31: #{forward.1} parent=27 // pred_region
          %s204 = smul.u32 16, %s20
          %p205 = scmp.lt.s32.totalorder %s19, 1
          %s206 = scalar_select %p205, %s19, 1
          %p207 = scmp.lt.s32.totalorder %s204, 31
          %s208 = scalar_select %p207, %s204, 31
          %s209 = smul.addr %s206, 32
          %s210 = sadd.s32 %s208, %s209
          %s211 = smul.addr %s210, 4
          %s212 = scalar_lea.vmem %s0, %s211
          %s213 = smul.u32 16, %s20
        $region32: #{forward.1} parent=27 // pred_fallthru
          _
      $region28: #{forward.1} parent=5 // pred_fallthru
        _
      %p214 = scmp.le.s32.totalorder 1, %s12
      %p215 = scmp.lt.s32.totalorder %s12, 5
      %p216 = pnand %p214, %p215
      %p217 = pneg %p216
      // Predicated region
      $region33: #{forward.1} parent=5 // pred_check
        _
      $region34: #{forward.1} parent=5 // pred_check_branch
        %219 = sbr.rel (%p216) target = $region36
      $region35: #{forward.1} parent=5 // pred_region
        %s220 = ssub.s32 %s12, 1
        // Predicated region
        $region37: #{forward.1} parent=35 // pred_check
          %p221 = pneg %p73
        $region38: #{forward.1} parent=35 // pred_check_branch
          %223 = sbr.rel (%p221) target = $region40
        $region39: #{forward.1} parent=35 // pred_region
          %224 = dma.done [#allocation3], 512
        $region40: #{forward.1} parent=35 // pred_fallthru
          _
        // Predicated region
        $region41: #{forward.1} parent=35 // pred_check
          %p225 = pneg %p94
        $region42: #{forward.1} parent=35 // pred_check_branch
          %227 = sbr.rel (%p225) target = $region44
        $region43: #{forward.1} parent=35 // pred_region
          %228 = dma.done [#allocation5], 512
        $region44: #{forward.1} parent=35 // pred_fallthru
          _
        // Predicated region
        $region45: #{forward.1} parent=35 // pred_check
          %p229 = pneg %p115
        $region46: #{forward.1} parent=35 // pred_check_branch
          %231 = sbr.rel (%p229) target = $region48
        $region47: #{forward.1} parent=35 // pred_region
          %232 = dma.done [#allocation5], 512
        $region48: #{forward.1} parent=35 // pred_fallthru
          _
        %s233 = smul.u32 16, %s22
        %p234 = scmp.lt.s32.totalorder %s21, 1
        %s235 = scalar_select %p234, %s21, 1
        %p236 = scmp.lt.s32.totalorder %s233, 31
        %s237 = scalar_select %p236, %s233, 31
        %s238 = smul.addr %s235, 32
        %s239 = sadd.s32 %s237, %s238
        %s240 = smul.addr %s239, 4
        %s241 = scalar_lea.vmem %s0, %s240
        %p242 = pneg %p52
        %p243 = pneg %p49
        %p244 = pneg %p73
        %p245 = pneg %p70
        %p246 = pneg %p94
        %p247 = pneg %p91
        %p248 = pneg %p115
        %p249 = pneg %p112
        %p250 = pneg %p143
        %p251 = pneg %p140
        %s252 = sand.u32 %s130, 1
        %s253 = sand.u32 %s130, 1
        %s254 = smul.addr %s253, 512
        %s255 = scalar_lea.vmem [#allocation7], %s254
        %s256 = smul.u32 16, %s22
        %p257 = scmp.lt.s32.totalorder %s21, 1
        %s258 = scalar_select %p257, %s21, 1
        %p259 = scmp.lt.s32.totalorder %s256, 31
        %s260 = scalar_select %p259, %s256, 31
        %s261 = smul.addr %s258, 32
        %s262 = sadd.s32 %s260, %s261
        %s263 = smul.addr %s262, 4
        %s264 = scalar_lea.vmem %s0, %s263
        %s265 = smul.u32 16, %s22
        %s266 = smul.u32 16, %s22
        %v267 = vld [vmem:[%s264] sm:$0xff]
        %v268 = vld [vmem:[%s264 + $0x8] sm:$0xff]
        %v269 = vld [vmem:[%s264 + $0x10] sm:$0xff]
        %v270 = vld [vmem:[%s264 + $0x18] sm:$0xff]
        %v271 = vld [vmem:[%s264 + $0x20] sm:$0xff]
        %v272 = vld [vmem:[%s264 + $0x28] sm:$0xff]
        %v273 = vld [vmem:[%s264 + $0x30] sm:$0xff]
        %v274 = vld [vmem:[%s264 + $0x38] sm:$0xff]
        %v275 = vld [vmem:[#allocation2] sm:$0xff]
        %v276 = vld [vmem:[#allocation2 + $0x8] sm:$0xff]
        %v277 = vld [vmem:[#allocation2 + $0x10] sm:$0xff]
        %v278 = vld [vmem:[#allocation2 + $0x18] sm:$0xff]
        %280 = vset.pattern.permute.xlu0 0
        %281 = vperm.xlu0 %280, %v275
        %v282 = vpop.permute.xlu0 %281
        %285 = vset.pattern.permute.xlu0 0
        %286 = vperm.xlu0 %285, %v276
        %v287 = vpop.permute.xlu0 %286
        %290 = vset.pattern.permute.xlu0 0
        %291 = vperm.xlu0 %290, %v277
        %v292 = vpop.permute.xlu0 %291
        %295 = vset.pattern.permute.xlu0 0
        %296 = vperm.xlu0 %295, %v278
        %v297 = vpop.permute.xlu0 %296
        %v307 = vlaneseq
        %v308 = vshrl.u32 %v307, 7
        %v309 = vsub.s32 0, %v308
        %v310 = vrot.slane %v267, %v309
        %v311 = vlaneseq
        %v312 = vshrl.u32 %v311, 7
        %v313 = vsub.s32 4, %v312
        %v314 = vrot.slane %v267, %v313
        %v315 = vlaneseq
        %v316 = vshrl.u32 %v315, 7
        %v317 = vsub.s32 0, %v316
        %v318 = vrot.slane %v268, %v317
        %v319 = vlaneseq
        %v320 = vshrl.u32 %v319, 7
        %v321 = vsub.s32 4, %v320
        %v322 = vrot.slane %v268, %v321
        %v323 = vlaneseq
        %v324 = vshrl.u32 %v323, 7
        %v325 = vsub.s32 0, %v324
        %v326 = vrot.slane %v269, %v325
        %v327 = vlaneseq
        %v328 = vshrl.u32 %v327, 7
        %v329 = vsub.s32 4, %v328
        %v330 = vrot.slane %v269, %v329
        %v331 = vlaneseq
        %v332 = vshrl.u32 %v331, 7
        %v333 = vsub.s32 0, %v332
        %v334 = vrot.slane %v270, %v333
        %v335 = vlaneseq
        %v336 = vshrl.u32 %v335, 7
        %v337 = vsub.s32 4, %v336
        %v338 = vrot.slane %v270, %v337
        %v339 = vlaneseq
        %v340 = vshrl.u32 %v339, 7
        %v341 = vsub.s32 0, %v340
        %v342 = vrot.slane %v271, %v341
        %v343 = vlaneseq
        %v344 = vshrl.u32 %v343, 7
        %v345 = vsub.s32 4, %v344
        %v346 = vrot.slane %v271, %v345
        %v347 = vlaneseq
        %v348 = vshrl.u32 %v347, 7
        %v349 = vsub.s32 0, %v348
        %v350 = vrot.slane %v272, %v349
        %v351 = vlaneseq
        %v352 = vshrl.u32 %v351, 7
        %v353 = vsub.s32 4, %v352
        %v354 = vrot.slane %v272, %v353
        %v355 = vlaneseq
        %v356 = vshrl.u32 %v355, 7
        %v357 = vsub.s32 0, %v356
        %v358 = vrot.slane %v273, %v357
        %v359 = vlaneseq
        %v360 = vshrl.u32 %v359, 7
        %v361 = vsub.s32 4, %v360
        %v362 = vrot.slane %v273, %v361
        %v363 = vlaneseq
        %v364 = vshrl.u32 %v363, 7
        %v365 = vsub.s32 0, %v364
        %v366 = vrot.slane %v274, %v365
        %v367 = vlaneseq
        %v368 = vshrl.u32 %v367, 7
        %v369 = vsub.s32 4, %v368
        %v370 = vrot.slane %v274, %v369
        %v387 = vlaneseq
        %v388 = vshrl.u32 %v387, 7
        %v389 = vsub.s32 0, %v388
        %v390 = vrot.slane %v310, %v389
        %v391 = vlaneseq
        %v392 = vshrl.u32 %v391, 7
        %v393 = vsub.s32 0, %v392
        %v394 = vrot.slane %v314, %v393
        %v395 = vlaneseq
        %v396 = vshrl.u32 %v395, 7
        %v397 = vsub.s32 0, %v396
        %v398 = vrot.slane %v318, %v397
        %v399 = vlaneseq
        %v400 = vshrl.u32 %v399, 7
        %v401 = vsub.s32 0, %v400
        %v402 = vrot.slane %v322, %v401
        %v403 = vlaneseq
        %v404 = vshrl.u32 %v403, 7
        %v405 = vsub.s32 0, %v404
        %v406 = vrot.slane %v326, %v405
        %v407 = vlaneseq
        %v408 = vshrl.u32 %v407, 7
        %v409 = vsub.s32 0, %v408
        %v410 = vrot.slane %v330, %v409
        %v411 = vlaneseq
        %v412 = vshrl.u32 %v411, 7
        %v413 = vsub.s32 0, %v412
        %v414 = vrot.slane %v334, %v413
        %v415 = vlaneseq
        %v416 = vshrl.u32 %v415, 7
        %v417 = vsub.s32 0, %v416
        %v418 = vrot.slane %v338, %v417
        %v419 = vlaneseq
        %v420 = vshrl.u32 %v419, 7
        %v421 = vsub.s32 0, %v420
        %v422 = vrot.slane %v342, %v421
        %v423 = vlaneseq
        %v424 = vshrl.u32 %v423, 7
        %v425 = vsub.s32 0, %v424
        %v426 = vrot.slane %v346, %v425
        %v427 = vlaneseq
        %v428 = vshrl.u32 %v427, 7
        %v429 = vsub.s32 0, %v428
        %v430 = vrot.slane %v350, %v429
        %v431 = vlaneseq
        %v432 = vshrl.u32 %v431, 7
        %v433 = vsub.s32 0, %v432
        %v434 = vrot.slane %v354, %v433
        %v435 = vlaneseq
        %v436 = vshrl.u32 %v435, 7
        %v437 = vsub.s32 0, %v436
        %v438 = vrot.slane %v358, %v437
        %v439 = vlaneseq
        %v440 = vshrl.u32 %v439, 7
        %v441 = vsub.s32 0, %v440
        %v442 = vrot.slane %v362, %v441
        %v443 = vlaneseq
        %v444 = vshrl.u32 %v443, 7
        %v445 = vsub.s32 0, %v444
        %v446 = vrot.slane %v366, %v445
        %v447 = vlaneseq
        %v448 = vshrl.u32 %v447, 7
        %v449 = vsub.s32 0, %v448
        %v450 = vrot.slane %v370, %v449
        %v451 = vmul.f32 %v282, %v390
        %v452 = vmul.f32 %v282, %v394
        %v453 = vmul.f32 %v282, %v398
        %v454 = vmul.f32 %v282, %v402
        %v455 = vmul.f32 %v282, %v406
        %v456 = vmul.f32 %v282, %v410
        %v457 = vmul.f32 %v282, %v414
        %v458 = vmul.f32 %v282, %v418
        %v459 = vmul.f32 %v282, %v422
        %v460 = vmul.f32 %v282, %v426
        %v461 = vmul.f32 %v282, %v430
        %v462 = vmul.f32 %v282, %v434
        %v463 = vmul.f32 %v282, %v438
        %v464 = vmul.f32 %v282, %v442
        %v465 = vmul.f32 %v282, %v446
        %v466 = vmul.f32 %v282, %v450
        %v467 = vmul.f32 %v287, %v390
        %v468 = vmul.f32 %v287, %v394
        %v469 = vmul.f32 %v287, %v398
        %v470 = vmul.f32 %v287, %v402
        %v471 = vmul.f32 %v287, %v406
        %v472 = vmul.f32 %v287, %v410
        %v473 = vmul.f32 %v287, %v414
        %v474 = vmul.f32 %v287, %v418
        %v475 = vmul.f32 %v287, %v422
        %v476 = vmul.f32 %v287, %v426
        %v477 = vmul.f32 %v287, %v430
        %v478 = vmul.f32 %v287, %v434
        %v479 = vmul.f32 %v287, %v438
        %v480 = vmul.f32 %v287, %v442
        %v481 = vmul.f32 %v287, %v446
        %v482 = vmul.f32 %v287, %v450
        %v483 = vmul.f32 %v292, %v390
        %v484 = vmul.f32 %v292, %v394
        %v485 = vmul.f32 %v292, %v398
        %v486 = vmul.f32 %v292, %v402
        %v487 = vmul.f32 %v292, %v406
        %v488 = vmul.f32 %v292, %v410
        %v489 = vmul.f32 %v292, %v414
        %v490 = vmul.f32 %v292, %v418
        %v491 = vmul.f32 %v292, %v422
        %v492 = vmul.f32 %v292, %v426
        %v493 = vmul.f32 %v292, %v430
        %v494 = vmul.f32 %v292, %v434
        %v495 = vmul.f32 %v292, %v438
        %v496 = vmul.f32 %v292, %v442
        %v497 = vmul.f32 %v292, %v446
        %v498 = vmul.f32 %v292, %v450
        %v499 = vmul.f32 %v297, %v390
        %v500 = vmul.f32 %v297, %v394
        %v501 = vmul.f32 %v297, %v398
        %v502 = vmul.f32 %v297, %v402
        %v503 = vmul.f32 %v297, %v406
        %v504 = vmul.f32 %v297, %v410
        %v505 = vmul.f32 %v297, %v414
        %v506 = vmul.f32 %v297, %v418
        %v507 = vmul.f32 %v297, %v422
        %v508 = vmul.f32 %v297, %v426
        %v509 = vmul.f32 %v297, %v430
        %v510 = vmul.f32 %v297, %v434
        %v511 = vmul.f32 %v297, %v438
        %v512 = vmul.f32 %v297, %v442
        %v513 = vmul.f32 %v297, %v446
        %v514 = vmul.f32 %v297, %v450
        %515 = vset.pattern.permute.xlu0 1
        %516 = vperm.xlu0 %515, %v275
        %v517 = vpop.permute.xlu0 %516
        %519 = vset.pattern.permute.xlu0 1
        %520 = vperm.xlu0 %519, %v276
        %v521 = vpop.permute.xlu0 %520
        %523 = vset.pattern.permute.xlu0 1
        %524 = vperm.xlu0 %523, %v277
        %v525 = vpop.permute.xlu0 %524
        %527 = vset.pattern.permute.xlu0 1
        %528 = vperm.xlu0 %527, %v278
        %v529 = vpop.permute.xlu0 %528
        %v531 = vlaneseq
        %v532 = vshrl.u32 %v531, 7
        %v533 = vsub.s32 1, %v532
        %v534 = vrot.slane %v267, %v533
        %v535 = vlaneseq
        %v536 = vshrl.u32 %v535, 7
        %v537 = vsub.s32 5, %v536
        %v538 = vrot.slane %v267, %v537
        %v539 = vlaneseq
        %v540 = vshrl.u32 %v539, 7
        %v541 = vsub.s32 1, %v540
        %v542 = vrot.slane %v268, %v541
        %v543 = vlaneseq
        %v544 = vshrl.u32 %v543, 7
        %v545 = vsub.s32 5, %v544
        %v546 = vrot.slane %v268, %v545
        %v547 = vlaneseq
        %v548 = vshrl.u32 %v547, 7
        %v549 = vsub.s32 1, %v548
        %v550 = vrot.slane %v269, %v549
        %v551 = vlaneseq
        %v552 = vshrl.u32 %v551, 7
        %v553 = vsub.s32 5, %v552
        %v554 = vrot.slane %v269, %v553
        %v555 = vlaneseq
        %v556 = vshrl.u32 %v555, 7
        %v557 = vsub.s32 1, %v556
        %v558 = vrot.slane %v270, %v557
        %v559 = vlaneseq
        %v560 = vshrl.u32 %v559, 7
        %v561 = vsub.s32 5, %v560
        %v562 = vrot.slane %v270, %v561
        %v563 = vlaneseq
        %v564 = vshrl.u32 %v563, 7
        %v565 = vsub.s32 1, %v564
        %v566 = vrot.slane %v271, %v565
        %v567 = vlaneseq
        %v568 = vshrl.u32 %v567, 7
        %v569 = vsub.s32 5, %v568
        %v570 = vrot.slane %v271, %v569
        %v571 = vlaneseq
        %v572 = vshrl.u32 %v571, 7
        %v573 = vsub.s32 1, %v572
        %v574 = vrot.slane %v272, %v573
        %v575 = vlaneseq
        %v576 = vshrl.u32 %v575, 7
        %v577 = vsub.s32 5, %v576
        %v578 = vrot.slane %v272, %v577
        %v579 = vlaneseq
        %v580 = vshrl.u32 %v579, 7
        %v581 = vsub.s32 1, %v580
        %v582 = vrot.slane %v273, %v581
        %v583 = vlaneseq
        %v584 = vshrl.u32 %v583, 7
        %v585 = vsub.s32 5, %v584
        %v586 = vrot.slane %v273, %v585
        %v587 = vlaneseq
        %v588 = vshrl.u32 %v587, 7
        %v589 = vsub.s32 1, %v588
        %v590 = vrot.slane %v274, %v589
        %v591 = vlaneseq
        %v592 = vshrl.u32 %v591, 7
        %v593 = vsub.s32 5, %v592
        %v594 = vrot.slane %v274, %v593
        %v611 = vlaneseq
        %v612 = vshrl.u32 %v611, 7
        %v613 = vsub.s32 1, %v612
        %v614 = vrot.slane %v534, %v613
        %v615 = vlaneseq
        %v616 = vshrl.u32 %v615, 7
        %v617 = vsub.s32 1, %v616
        %v618 = vrot.slane %v538, %v617
        %v619 = vlaneseq
        %v620 = vshrl.u32 %v619, 7
        %v621 = vsub.s32 1, %v620
        %v622 = vrot.slane %v542, %v621
        %v623 = vlaneseq
        %v624 = vshrl.u32 %v623, 7
        %v625 = vsub.s32 1, %v624
        %v626 = vrot.slane %v546, %v625
        %v627 = vlaneseq
        %v628 = vshrl.u32 %v627, 7
        %v629 = vsub.s32 1, %v628
        %v630 = vrot.slane %v550, %v629
        %v631 = vlaneseq
        %v632 = vshrl.u32 %v631, 7
        %v633 = vsub.s32 1, %v632
        %v634 = vrot.slane %v554, %v633
        %v635 = vlaneseq
        %v636 = vshrl.u32 %v635, 7
        %v637 = vsub.s32 1, %v636
        %v638 = vrot.slane %v558, %v637
        %v639 = vlaneseq
        %v640 = vshrl.u32 %v639, 7
        %v641 = vsub.s32 1, %v640
        %v642 = vrot.slane %v562, %v641
        %v643 = vlaneseq
        %v644 = vshrl.u32 %v643, 7
        %v645 = vsub.s32 1, %v644
        %v646 = vrot.slane %v566, %v645
        %v647 = vlaneseq
        %v648 = vshrl.u32 %v647, 7
        %v649 = vsub.s32 1, %v648
        %v650 = vrot.slane %v570, %v649
        %v651 = vlaneseq
        %v652 = vshrl.u32 %v651, 7
        %v653 = vsub.s32 1, %v652
        %v654 = vrot.slane %v574, %v653
        %v655 = vlaneseq
        %v656 = vshrl.u32 %v655, 7
        %v657 = vsub.s32 1, %v656
        %v658 = vrot.slane %v578, %v657
        %v659 = vlaneseq
        %v660 = vshrl.u32 %v659, 7
        %v661 = vsub.s32 1, %v660
        %v662 = vrot.slane %v582, %v661
        %v663 = vlaneseq
        %v664 = vshrl.u32 %v663, 7
        %v665 = vsub.s32 1, %v664
        %v666 = vrot.slane %v586, %v665
        %v667 = vlaneseq
        %v668 = vshrl.u32 %v667, 7
        %v669 = vsub.s32 1, %v668
        %v670 = vrot.slane %v590, %v669
        %v671 = vlaneseq
        %v672 = vshrl.u32 %v671, 7
        %v673 = vsub.s32 1, %v672
        %v674 = vrot.slane %v594, %v673
        %v675 = vmul.f32 %v517, %v614
        %v676 = vmul.f32 %v517, %v618
        %v677 = vmul.f32 %v517, %v622
        %v678 = vmul.f32 %v517, %v626
        %v679 = vmul.f32 %v517, %v630
        %v680 = vmul.f32 %v517, %v634
        %v681 = vmul.f32 %v517, %v638
        %v682 = vmul.f32 %v517, %v642
        %v683 = vmul.f32 %v517, %v646
        %v684 = vmul.f32 %v517, %v650
        %v685 = vmul.f32 %v517, %v654
        %v686 = vmul.f32 %v517, %v658
        %v687 = vmul.f32 %v517, %v662
        %v688 = vmul.f32 %v517, %v666
        %v689 = vmul.f32 %v517, %v670
        %v690 = vmul.f32 %v517, %v674
        %v691 = vmul.f32 %v521, %v614
        %v692 = vmul.f32 %v521, %v618
        %v693 = vmul.f32 %v521, %v622
        %v694 = vmul.f32 %v521, %v626
        %v695 = vmul.f32 %v521, %v630
        %v696 = vmul.f32 %v521, %v634
        %v697 = vmul.f32 %v521, %v638
        %v698 = vmul.f32 %v521, %v642
        %v699 = vmul.f32 %v521, %v646
        %v700 = vmul.f32 %v521, %v650
        %v701 = vmul.f32 %v521, %v654
        %v702 = vmul.f32 %v521, %v658
        %v703 = vmul.f32 %v521, %v662
        %v704 = vmul.f32 %v521, %v666
        %v705 = vmul.f32 %v521, %v670
        %v706 = vmul.f32 %v521, %v674
        %v707 = vmul.f32 %v525, %v614
        %v708 = vmul.f32 %v525, %v618
        %v709 = vmul.f32 %v525, %v622
        %v710 = vmul.f32 %v525, %v626
        %v711 = vmul.f32 %v525, %v630
        %v712 = vmul.f32 %v525, %v634
        %v713 = vmul.f32 %v525, %v638
        %v714 = vmul.f32 %v525, %v642
        %v715 = vmul.f32 %v525, %v646
        %v716 = vmul.f32 %v525, %v650
        %v717 = vmul.f32 %v525, %v654
        %v718 = vmul.f32 %v525, %v658
        %v719 = vmul.f32 %v525, %v662
        %v720 = vmul.f32 %v525, %v666
        %v721 = vmul.f32 %v525, %v670
        %v722 = vmul.f32 %v525, %v674
        %v723 = vmul.f32 %v529, %v614
        %v724 = vmul.f32 %v529, %v618
        %v725 = vmul.f32 %v529, %v622
        %v726 = vmul.f32 %v529, %v626
        %v727 = vmul.f32 %v529, %v630
        %v728 = vmul.f32 %v529, %v634
        %v729 = vmul.f32 %v529, %v638
        %v730 = vmul.f32 %v529, %v642
        %v731 = vmul.f32 %v529, %v646
        %v732 = vmul.f32 %v529, %v650
        %v733 = vmul.f32 %v529, %v654
        %v734 = vmul.f32 %v529, %v658
        %v735 = vmul.f32 %v529, %v662
        %v736 = vmul.f32 %v529, %v666
        %v737 = vmul.f32 %v529, %v670
        %v738 = vmul.f32 %v529, %v674
        %v739 = vadd.f32 %v451, %v675
        %v740 = vadd.f32 %v452, %v676
        %v741 = vadd.f32 %v453, %v677
        %v742 = vadd.f32 %v454, %v678
        %v743 = vadd.f32 %v455, %v679
        %v744 = vadd.f32 %v456, %v680
        %v745 = vadd.f32 %v457, %v681
        %v746 = vadd.f32 %v458, %v682
        %v747 = vadd.f32 %v459, %v683
        %v748 = vadd.f32 %v460, %v684
        %v749 = vadd.f32 %v461, %v685
        %v750 = vadd.f32 %v462, %v686
        %v751 = vadd.f32 %v463, %v687
        %v752 = vadd.f32 %v464, %v688
        %v753 = vadd.f32 %v465, %v689
        %v754 = vadd.f32 %v466, %v690
        %v755 = vadd.f32 %v467, %v691
        %v756 = vadd.f32 %v468, %v692
        %v757 = vadd.f32 %v469, %v693
        %v758 = vadd.f32 %v470, %v694
        %v759 = vadd.f32 %v471, %v695
        %v760 = vadd.f32 %v472, %v696
        %v761 = vadd.f32 %v473, %v697
        %v762 = vadd.f32 %v474, %v698
        %v763 = vadd.f32 %v475, %v699
        %v764 = vadd.f32 %v476, %v700
        %v765 = vadd.f32 %v477, %v701
        %v766 = vadd.f32 %v478, %v702
        %v767 = vadd.f32 %v479, %v703
        %v768 = vadd.f32 %v480, %v704
        %v769 = vadd.f32 %v481, %v705
        %v770 = vadd.f32 %v482, %v706
        %v771 = vadd.f32 %v483, %v707
        %v772 = vadd.f32 %v484, %v708
        %v773 = vadd.f32 %v485, %v709
        %v774 = vadd.f32 %v486, %v710
        %v775 = vadd.f32 %v487, %v711
        %v776 = vadd.f32 %v488, %v712
        %v777 = vadd.f32 %v489, %v713
        %v778 = vadd.f32 %v490, %v714
        %v779 = vadd.f32 %v491, %v715
        %v780 = vadd.f32 %v492, %v716
        %v781 = vadd.f32 %v493, %v717
        %v782 = vadd.f32 %v494, %v718
        %v783 = vadd.f32 %v495, %v719
        %v784 = vadd.f32 %v496, %v720
        %v785 = vadd.f32 %v497, %v721
        %v786 = vadd.f32 %v498, %v722
        %v787 = vadd.f32 %v499, %v723
        %v788 = vadd.f32 %v500, %v724
        %v789 = vadd.f32 %v501, %v725
        %v790 = vadd.f32 %v502, %v726
        %v791 = vadd.f32 %v503, %v727
        %v792 = vadd.f32 %v504, %v728
        %v793 = vadd.f32 %v505, %v729
        %v794 = vadd.f32 %v506, %v730
        %v795 = vadd.f32 %v507, %v731
        %v796 = vadd.f32 %v508, %v732
        %v797 = vadd.f32 %v509, %v733
        %v798 = vadd.f32 %v510, %v734
        %v799 = vadd.f32 %v511, %v735
        %v800 = vadd.f32 %v512, %v736
        %v801 = vadd.f32 %v513, %v737
        %v802 = vadd.f32 %v514, %v738
        %803 = vset.pattern.permute.xlu0 2
        %804 = vperm.xlu0 %803, %v275
        %v805 = vpop.permute.xlu0 %804
        %807 = vset.pattern.permute.xlu0 2
        %808 = vperm.xlu0 %807, %v276
        %v809 = vpop.permute.xlu0 %808
        %811 = vset.pattern.permute.xlu0 2
        %812 = vperm.xlu0 %811, %v277
        %v813 = vpop.permute.xlu0 %812
        %815 = vset.pattern.permute.xlu0 2
        %816 = vperm.xlu0 %815, %v278
        %v817 = vpop.permute.xlu0 %816
        %v819 = vlaneseq
        %v820 = vshrl.u32 %v819, 7
        %v821 = vsub.s32 2, %v820
        %v822 = vrot.slane %v267, %v821
        %v823 = vlaneseq
        %v824 = vshrl.u32 %v823, 7
        %v825 = vsub.s32 6, %v824
        %v826 = vrot.slane %v267, %v825
        %v827 = vlaneseq
        %v828 = vshrl.u32 %v827, 7
        %v829 = vsub.s32 2, %v828
        %v830 = vrot.slane %v268, %v829
        %v831 = vlaneseq
        %v832 = vshrl.u32 %v831, 7
        %v833 = vsub.s32 6, %v832
        %v834 = vrot.slane %v268, %v833
        %v835 = vlaneseq
        %v836 = vshrl.u32 %v835, 7
        %v837 = vsub.s32 2, %v836
        %v838 = vrot.slane %v269, %v837
        %v839 = vlaneseq
        %v840 = vshrl.u32 %v839, 7
        %v841 = vsub.s32 6, %v840
        %v842 = vrot.slane %v269, %v841
        %v843 = vlaneseq
        %v844 = vshrl.u32 %v843, 7
        %v845 = vsub.s32 2, %v844
        %v846 = vrot.slane %v270, %v845
        %v847 = vlaneseq
        %v848 = vshrl.u32 %v847, 7
        %v849 = vsub.s32 6, %v848
        %v850 = vrot.slane %v270, %v849
        %v851 = vlaneseq
        %v852 = vshrl.u32 %v851, 7
        %v853 = vsub.s32 2, %v852
        %v854 = vrot.slane %v271, %v853
        %v855 = vlaneseq
        %v856 = vshrl.u32 %v855, 7
        %v857 = vsub.s32 6, %v856
        %v858 = vrot.slane %v271, %v857
        %v859 = vlaneseq
        %v860 = vshrl.u32 %v859, 7
        %v861 = vsub.s32 2, %v860
        %v862 = vrot.slane %v272, %v861
        %v863 = vlaneseq
        %v864 = vshrl.u32 %v863, 7
        %v865 = vsub.s32 6, %v864
        %v866 = vrot.slane %v272, %v865
        %v867 = vlaneseq
        %v868 = vshrl.u32 %v867, 7
        %v869 = vsub.s32 2, %v868
        %v870 = vrot.slane %v273, %v869
        %v871 = vlaneseq
        %v872 = vshrl.u32 %v871, 7
        %v873 = vsub.s32 6, %v872
        %v874 = vrot.slane %v273, %v873
        %v875 = vlaneseq
        %v876 = vshrl.u32 %v875, 7
        %v877 = vsub.s32 2, %v876
        %v878 = vrot.slane %v274, %v877
        %v879 = vlaneseq
        %v880 = vshrl.u32 %v879, 7
        %v881 = vsub.s32 6, %v880
        %v882 = vrot.slane %v274, %v881
        %v899 = vlaneseq
        %v900 = vshrl.u32 %v899, 7
        %v901 = vsub.s32 2, %v900
        %v902 = vrot.slane %v822, %v901
        %v903 = vlaneseq
        %v904 = vshrl.u32 %v903, 7
        %v905 = vsub.s32 2, %v904
        %v906 = vrot.slane %v826, %v905
        %v907 = vlaneseq
        %v908 = vshrl.u32 %v907, 7
        %v909 = vsub.s32 2, %v908
        %v910 = vrot.slane %v830, %v909
        %v911 = vlaneseq
        %v912 = vshrl.u32 %v911, 7
        %v913 = vsub.s32 2, %v912
        %v914 = vrot.slane %v834, %v913
        %v915 = vlaneseq
        %v916 = vshrl.u32 %v915, 7
        %v917 = vsub.s32 2, %v916
        %v918 = vrot.slane %v838, %v917
        %v919 = vlaneseq
        %v920 = vshrl.u32 %v919, 7
        %v921 = vsub.s32 2, %v920
        %v922 = vrot.slane %v842, %v921
        %v923 = vlaneseq
        %v924 = vshrl.u32 %v923, 7
        %v925 = vsub.s32 2, %v924
        %v926 = vrot.slane %v846, %v925
        %v927 = vlaneseq
        %v928 = vshrl.u32 %v927, 7
        %v929 = vsub.s32 2, %v928
        %v930 = vrot.slane %v850, %v929
        %v931 = vlaneseq
        %v932 = vshrl.u32 %v931, 7
        %v933 = vsub.s32 2, %v932
        %v934 = vrot.slane %v854, %v933
        %v935 = vlaneseq
        %v936 = vshrl.u32 %v935, 7
        %v937 = vsub.s32 2, %v936
        %v938 = vrot.slane %v858, %v937
        %v939 = vlaneseq
        %v940 = vshrl.u32 %v939, 7
        %v941 = vsub.s32 2, %v940
        %v942 = vrot.slane %v862, %v941
        %v943 = vlaneseq
        %v944 = vshrl.u32 %v943, 7
        %v945 = vsub.s32 2, %v944
        %v946 = vrot.slane %v866, %v945
        %v947 = vlaneseq
        %v948 = vshrl.u32 %v947, 7
        %v949 = vsub.s32 2, %v948
        %v950 = vrot.slane %v870, %v949
        %v951 = vlaneseq
        %v952 = vshrl.u32 %v951, 7
        %v953 = vsub.s32 2, %v952
        %v954 = vrot.slane %v874, %v953
        %v955 = vlaneseq
        %v956 = vshrl.u32 %v955, 7
        %v957 = vsub.s32 2, %v956
        %v958 = vrot.slane %v878, %v957
        %v959 = vlaneseq
        %v960 = vshrl.u32 %v959, 7
        %v961 = vsub.s32 2, %v960
        %v962 = vrot.slane %v882, %v961
        %v963 = vmul.f32 %v805, %v902
        %v964 = vmul.f32 %v805, %v906
        %v965 = vmul.f32 %v805, %v910
        %v966 = vmul.f32 %v805, %v914
        %v967 = vmul.f32 %v805, %v918
        %v968 = vmul.f32 %v805, %v922
        %v969 = vmul.f32 %v805, %v926
        %v970 = vmul.f32 %v805, %v930
        %v971 = vmul.f32 %v805, %v934
        %v972 = vmul.f32 %v805, %v938
        %v973 = vmul.f32 %v805, %v942
        %v974 = vmul.f32 %v805, %v946
        %v975 = vmul.f32 %v805, %v950
        %v976 = vmul.f32 %v805, %v954
        %v977 = vmul.f32 %v805, %v958
        %v978 = vmul.f32 %v805, %v962
        %v979 = vmul.f32 %v809, %v902
        %v980 = vmul.f32 %v809, %v906
        %v981 = vmul.f32 %v809, %v910
        %v982 = vmul.f32 %v809, %v914
        %v983 = vmul.f32 %v809, %v918
        %v984 = vmul.f32 %v809, %v922
        %v985 = vmul.f32 %v809, %v926
        %v986 = vmul.f32 %v809, %v930
        %v987 = vmul.f32 %v809, %v934
        %v988 = vmul.f32 %v809, %v938
        %v989 = vmul.f32 %v809, %v942
        %v990 = vmul.f32 %v809, %v946
        %v991 = vmul.f32 %v809, %v950
        %v992 = vmul.f32 %v809, %v954
        %v993 = vmul.f32 %v809, %v958
        %v994 = vmul.f32 %v809, %v962
        %v995 = vmul.f32 %v813, %v902
        %v996 = vmul.f32 %v813, %v906
        %v997 = vmul.f32 %v813, %v910
        %v998 = vmul.f32 %v813, %v914
        %v999 = vmul.f32 %v813, %v918
        %v1000 = vmul.f32 %v813, %v922
        %v1001 = vmul.f32 %v813, %v926
        %v1002 = vmul.f32 %v813, %v930
        %v1003 = vmul.f32 %v813, %v934
        %v1004 = vmul.f32 %v813, %v938
        %v1005 = vmul.f32 %v813, %v942
        %v1006 = vmul.f32 %v813, %v946
        %v1007 = vmul.f32 %v813, %v950
        %v1008 = vmul.f32 %v813, %v954
        %v1009 = vmul.f32 %v813, %v958
        %v1010 = vmul.f32 %v813, %v962
        %v1011 = vmul.f32 %v817, %v902
        %v1012 = vmul.f32 %v817, %v906
        %v1013 = vmul.f32 %v817, %v910
        %v1014 = vmul.f32 %v817, %v914
        %v1015 = vmul.f32 %v817, %v918
        %v1016 = vmul.f32 %v817, %v922
        %v1017 = vmul.f32 %v817, %v926
        %v1018 = vmul.f32 %v817, %v930
        %v1019 = vmul.f32 %v817, %v934
        %v1020 = vmul.f32 %v817, %v938
        %v1021 = vmul.f32 %v817, %v942
        %v1022 = vmul.f32 %v817, %v946
        %v1023 = vmul.f32 %v817, %v950
        %v1024 = vmul.f32 %v817, %v954
        %v1025 = vmul.f32 %v817, %v958
        %v1026 = vmul.f32 %v817, %v962
        %v1027 = vadd.f32 %v739, %v963
        %v1028 = vadd.f32 %v740, %v964
        %v1029 = vadd.f32 %v741, %v965
        %v1030 = vadd.f32 %v742, %v966
        %v1031 = vadd.f32 %v743, %v967
        %v1032 = vadd.f32 %v744, %v968
        %v1033 = vadd.f32 %v745, %v969
        %v1034 = vadd.f32 %v746, %v970
        %v1035 = vadd.f32 %v747, %v971
        %v1036 = vadd.f32 %v748, %v972
        %v1037 = vadd.f32 %v749, %v973
        %v1038 = vadd.f32 %v750, %v974
        %v1039 = vadd.f32 %v751, %v975
        %v1040 = vadd.f32 %v752, %v976
        %v1041 = vadd.f32 %v753, %v977
        %v1042 = vadd.f32 %v754, %v978
        %v1043 = vadd.f32 %v755, %v979
        %v1044 = vadd.f32 %v756, %v980
        %v1045 = vadd.f32 %v757, %v981
        %v1046 = vadd.f32 %v758, %v982
        %v1047 = vadd.f32 %v759, %v983
        %v1048 = vadd.f32 %v760, %v984
        %v1049 = vadd.f32 %v761, %v985
        %v1050 = vadd.f32 %v762, %v986
        %v1051 = vadd.f32 %v763, %v987
        %v1052 = vadd.f32 %v764, %v988
        %v1053 = vadd.f32 %v765, %v989
        %v1054 = vadd.f32 %v766, %v990
        %v1055 = vadd.f32 %v767, %v991
        %v1056 = vadd.f32 %v768, %v992
        %v1057 = vadd.f32 %v769, %v993
        %v1058 = vadd.f32 %v770, %v994
        %v1059 = vadd.f32 %v771, %v995
        %v1060 = vadd.f32 %v772, %v996
        %v1061 = vadd.f32 %v773, %v997
        %v1062 = vadd.f32 %v774, %v998
        %v1063 = vadd.f32 %v775, %v999
        %v1064 = vadd.f32 %v776, %v1000
        %v1065 = vadd.f32 %v777, %v1001
        %v1066 = vadd.f32 %v778, %v1002
        %v1067 = vadd.f32 %v779, %v1003
        %v1068 = vadd.f32 %v780, %v1004
        %v1069 = vadd.f32 %v781, %v1005
        %v1070 = vadd.f32 %v782, %v1006
        %v1071 = vadd.f32 %v783, %v1007
        %v1072 = vadd.f32 %v784, %v1008
        %v1073 = vadd.f32 %v785, %v1009
        %v1074 = vadd.f32 %v786, %v1010
        %v1075 = vadd.f32 %v787, %v1011
        %v1076 = vadd.f32 %v788, %v1012
        %v1077 = vadd.f32 %v789, %v1013
        %v1078 = vadd.f32 %v790, %v1014
        %v1079 = vadd.f32 %v791, %v1015
        %v1080 = vadd.f32 %v792, %v1016
        %v1081 = vadd.f32 %v793, %v1017
        %v1082 = vadd.f32 %v794, %v1018
        %v1083 = vadd.f32 %v795, %v1019
        %v1084 = vadd.f32 %v796, %v1020
        %v1085 = vadd.f32 %v797, %v1021
        %v1086 = vadd.f32 %v798, %v1022
        %v1087 = vadd.f32 %v799, %v1023
        %v1088 = vadd.f32 %v800, %v1024
        %v1089 = vadd.f32 %v801, %v1025
        %v1090 = vadd.f32 %v802, %v1026
        %1091 = vset.pattern.permute.xlu0 3
        %1092 = vperm.xlu0 %1091, %v275
        %v1093 = vpop.permute.xlu0 %1092
        %1095 = vset.pattern.permute.xlu0 3
        %1096 = vperm.xlu0 %1095, %v276
        %v1097 = vpop.permute.xlu0 %1096
        %1099 = vset.pattern.permute.xlu0 3
        %1100 = vperm.xlu0 %1099, %v277
        %v1101 = vpop.permute.xlu0 %1100
        %1103 = vset.pattern.permute.xlu0 3
        %1104 = vperm.xlu0 %1103, %v278
        %v1105 = vpop.permute.xlu0 %1104
        %v1107 = vlaneseq
        %v1108 = vshrl.u32 %v1107, 7
        %v1109 = vsub.s32 3, %v1108
        %v1110 = vrot.slane %v267, %v1109
        %v1111 = vlaneseq
        %v1112 = vshrl.u32 %v1111, 7
        %v1113 = vsub.s32 7, %v1112
        %v1114 = vrot.slane %v267, %v1113
        %v1115 = vlaneseq
        %v1116 = vshrl.u32 %v1115, 7
        %v1117 = vsub.s32 3, %v1116
        %v1118 = vrot.slane %v268, %v1117
        %v1119 = vlaneseq
        %v1120 = vshrl.u32 %v1119, 7
        %v1121 = vsub.s32 7, %v1120
        %v1122 = vrot.slane %v268, %v1121
        %v1123 = vlaneseq
        %v1124 = vshrl.u32 %v1123, 7
        %v1125 = vsub.s32 3, %v1124
        %v1126 = vrot.slane %v269, %v1125
        %v1127 = vlaneseq
        %v1128 = vshrl.u32 %v1127, 7
        %v1129 = vsub.s32 7, %v1128
        %v1130 = vrot.slane %v269, %v1129
        %v1131 = vlaneseq
        %v1132 = vshrl.u32 %v1131, 7
        %v1133 = vsub.s32 3, %v1132
        %v1134 = vrot.slane %v270, %v1133
        %v1135 = vlaneseq
        %v1136 = vshrl.u32 %v1135, 7
        %v1137 = vsub.s32 7, %v1136
        %v1138 = vrot.slane %v270, %v1137
        %v1139 = vlaneseq
        %v1140 = vshrl.u32 %v1139, 7
        %v1141 = vsub.s32 3, %v1140
        %v1142 = vrot.slane %v271, %v1141
        %v1143 = vlaneseq
        %v1144 = vshrl.u32 %v1143, 7
        %v1145 = vsub.s32 7, %v1144
        %v1146 = vrot.slane %v271, %v1145
        %v1147 = vlaneseq
        %v1148 = vshrl.u32 %v1147, 7
        %v1149 = vsub.s32 3, %v1148
        %v1150 = vrot.slane %v272, %v1149
        %v1151 = vlaneseq
        %v1152 = vshrl.u32 %v1151, 7
        %v1153 = vsub.s32 7, %v1152
        %v1154 = vrot.slane %v272, %v1153
        %v1155 = vlaneseq
        %v1156 = vshrl.u32 %v1155, 7
        %v1157 = vsub.s32 3, %v1156
        %v1158 = vrot.slane %v273, %v1157
        %v1159 = vlaneseq
        %v1160 = vshrl.u32 %v1159, 7
        %v1161 = vsub.s32 7, %v1160
        %v1162 = vrot.slane %v273, %v1161
        %v1163 = vlaneseq
        %v1164 = vshrl.u32 %v1163, 7
        %v1165 = vsub.s32 3, %v1164
        %v1166 = vrot.slane %v274, %v1165
        %v1167 = vlaneseq
        %v1168 = vshrl.u32 %v1167, 7
        %v1169 = vsub.s32 7, %v1168
        %v1170 = vrot.slane %v274, %v1169
        %v1187 = vlaneseq
        %v1188 = vshrl.u32 %v1187, 7
        %v1189 = vsub.s32 3, %v1188
        %v1190 = vrot.slane %v1110, %v1189
        %v1191 = vlaneseq
        %v1192 = vshrl.u32 %v1191, 7
        %v1193 = vsub.s32 3, %v1192
        %v1194 = vrot.slane %v1114, %v1193
        %v1195 = vlaneseq
        %v1196 = vshrl.u32 %v1195, 7
        %v1197 = vsub.s32 3, %v1196
        %v1198 = vrot.slane %v1118, %v1197
        %v1199 = vlaneseq
        %v1200 = vshrl.u32 %v1199, 7
        %v1201 = vsub.s32 3, %v1200
        %v1202 = vrot.slane %v1122, %v1201
        %v1203 = vlaneseq
        %v1204 = vshrl.u32 %v1203, 7
        %v1205 = vsub.s32 3, %v1204
        %v1206 = vrot.slane %v1126, %v1205
        %v1207 = vlaneseq
        %v1208 = vshrl.u32 %v1207, 7
        %v1209 = vsub.s32 3, %v1208
        %v1210 = vrot.slane %v1130, %v1209
        %v1211 = vlaneseq
        %v1212 = vshrl.u32 %v1211, 7
        %v1213 = vsub.s32 3, %v1212
        %v1214 = vrot.slane %v1134, %v1213
        %v1215 = vlaneseq
        %v1216 = vshrl.u32 %v1215, 7
        %v1217 = vsub.s32 3, %v1216
        %v1218 = vrot.slane %v1138, %v1217
        %v1219 = vlaneseq
        %v1220 = vshrl.u32 %v1219, 7
        %v1221 = vsub.s32 3, %v1220
        %v1222 = vrot.slane %v1142, %v1221
        %v1223 = vlaneseq
        %v1224 = vshrl.u32 %v1223, 7
        %v1225 = vsub.s32 3, %v1224
        %v1226 = vrot.slane %v1146, %v1225
        %v1227 = vlaneseq
        %v1228 = vshrl.u32 %v1227, 7
        %v1229 = vsub.s32 3, %v1228
        %v1230 = vrot.slane %v1150, %v1229
        %v1231 = vlaneseq
        %v1232 = vshrl.u32 %v1231, 7
        %v1233 = vsub.s32 3, %v1232
        %v1234 = vrot.slane %v1154, %v1233
        %v1235 = vlaneseq
        %v1236 = vshrl.u32 %v1235, 7
        %v1237 = vsub.s32 3, %v1236
        %v1238 = vrot.slane %v1158, %v1237
        %v1239 = vlaneseq
        %v1240 = vshrl.u32 %v1239, 7
        %v1241 = vsub.s32 3, %v1240
        %v1242 = vrot.slane %v1162, %v1241
        %v1243 = vlaneseq
        %v1244 = vshrl.u32 %v1243, 7
        %v1245 = vsub.s32 3, %v1244
        %v1246 = vrot.slane %v1166, %v1245
        %v1247 = vlaneseq
        %v1248 = vshrl.u32 %v1247, 7
        %v1249 = vsub.s32 3, %v1248
        %v1250 = vrot.slane %v1170, %v1249
        %v1251 = vmul.f32 %v1093, %v1190
        %v1252 = vmul.f32 %v1093, %v1194
        %v1253 = vmul.f32 %v1093, %v1198
        %v1254 = vmul.f32 %v1093, %v1202
        %v1255 = vmul.f32 %v1093, %v1206
        %v1256 = vmul.f32 %v1093, %v1210
        %v1257 = vmul.f32 %v1093, %v1214
        %v1258 = vmul.f32 %v1093, %v1218
        %v1259 = vmul.f32 %v1093, %v1222
        %v1260 = vmul.f32 %v1093, %v1226
        %v1261 = vmul.f32 %v1093, %v1230
        %v1262 = vmul.f32 %v1093, %v1234
        %v1263 = vmul.f32 %v1093, %v1238
        %v1264 = vmul.f32 %v1093, %v1242
        %v1265 = vmul.f32 %v1093, %v1246
        %v1266 = vmul.f32 %v1093, %v1250
        %v1267 = vmul.f32 %v1097, %v1190
        %v1268 = vmul.f32 %v1097, %v1194
        %v1269 = vmul.f32 %v1097, %v1198
        %v1270 = vmul.f32 %v1097, %v1202
        %v1271 = vmul.f32 %v1097, %v1206
        %v1272 = vmul.f32 %v1097, %v1210
        %v1273 = vmul.f32 %v1097, %v1214
        %v1274 = vmul.f32 %v1097, %v1218
        %v1275 = vmul.f32 %v1097, %v1222
        %v1276 = vmul.f32 %v1097, %v1226
        %v1277 = vmul.f32 %v1097, %v1230
        %v1278 = vmul.f32 %v1097, %v1234
        %v1279 = vmul.f32 %v1097, %v1238
        %v1280 = vmul.f32 %v1097, %v1242
        %v1281 = vmul.f32 %v1097, %v1246
        %v1282 = vmul.f32 %v1097, %v1250
        %v1283 = vmul.f32 %v1101, %v1190
        %v1284 = vmul.f32 %v1101, %v1194
        %v1285 = vmul.f32 %v1101, %v1198
        %v1286 = vmul.f32 %v1101, %v1202
        %v1287 = vmul.f32 %v1101, %v1206
        %v1288 = vmul.f32 %v1101, %v1210
        %v1289 = vmul.f32 %v1101, %v1214
        %v1290 = vmul.f32 %v1101, %v1218
        %v1291 = vmul.f32 %v1101, %v1222
        %v1292 = vmul.f32 %v1101, %v1226
        %v1293 = vmul.f32 %v1101, %v1230
        %v1294 = vmul.f32 %v1101, %v1234
        %v1295 = vmul.f32 %v1101, %v1238
        %v1296 = vmul.f32 %v1101, %v1242
        %v1297 = vmul.f32 %v1101, %v1246
        %v1298 = vmul.f32 %v1101, %v1250
        %v1299 = vmul.f32 %v1105, %v1190
        %v1300 = vmul.f32 %v1105, %v1194
        %v1301 = vmul.f32 %v1105, %v1198
        %v1302 = vmul.f32 %v1105, %v1202
        %v1303 = vmul.f32 %v1105, %v1206
        %v1304 = vmul.f32 %v1105, %v1210
        %v1305 = vmul.f32 %v1105, %v1214
        %v1306 = vmul.f32 %v1105, %v1218
        %v1307 = vmul.f32 %v1105, %v1222
        %v1308 = vmul.f32 %v1105, %v1226
        %v1309 = vmul.f32 %v1105, %v1230
        %v1310 = vmul.f32 %v1105, %v1234
        %v1311 = vmul.f32 %v1105, %v1238
        %v1312 = vmul.f32 %v1105, %v1242
        %v1313 = vmul.f32 %v1105, %v1246
        %v1314 = vmul.f32 %v1105, %v1250
        %v1315 = vadd.f32 %v1027, %v1251
        %v1316 = vadd.f32 %v1028, %v1252
        %v1317 = vadd.f32 %v1029, %v1253
        %v1318 = vadd.f32 %v1030, %v1254
        %v1319 = vadd.f32 %v1031, %v1255
        %v1320 = vadd.f32 %v1032, %v1256
        %v1321 = vadd.f32 %v1033, %v1257
        %v1322 = vadd.f32 %v1034, %v1258
        %v1323 = vadd.f32 %v1035, %v1259
        %v1324 = vadd.f32 %v1036, %v1260
        %v1325 = vadd.f32 %v1037, %v1261
        %v1326 = vadd.f32 %v1038, %v1262
        %v1327 = vadd.f32 %v1039, %v1263
        %v1328 = vadd.f32 %v1040, %v1264
        %v1329 = vadd.f32 %v1041, %v1265
        %v1330 = vadd.f32 %v1042, %v1266
        %v1331 = vadd.f32 %v1043, %v1267
        %v1332 = vadd.f32 %v1044, %v1268
        %v1333 = vadd.f32 %v1045, %v1269
        %v1334 = vadd.f32 %v1046, %v1270
        %v1335 = vadd.f32 %v1047, %v1271
        %v1336 = vadd.f32 %v1048, %v1272
        %v1337 = vadd.f32 %v1049, %v1273
        %v1338 = vadd.f32 %v1050, %v1274
        %v1339 = vadd.f32 %v1051, %v1275
        %v1340 = vadd.f32 %v1052, %v1276
        %v1341 = vadd.f32 %v1053, %v1277
        %v1342 = vadd.f32 %v1054, %v1278
        %v1343 = vadd.f32 %v1055, %v1279
        %v1344 = vadd.f32 %v1056, %v1280
        %v1345 = vadd.f32 %v1057, %v1281
        %v1346 = vadd.f32 %v1058, %v1282
        %v1347 = vadd.f32 %v1059, %v1283
        %v1348 = vadd.f32 %v1060, %v1284
        %v1349 = vadd.f32 %v1061, %v1285
        %v1350 = vadd.f32 %v1062, %v1286
        %v1351 = vadd.f32 %v1063, %v1287
        %v1352 = vadd.f32 %v1064, %v1288
        %v1353 = vadd.f32 %v1065, %v1289
        %v1354 = vadd.f32 %v1066, %v1290
        %v1355 = vadd.f32 %v1067, %v1291
        %v1356 = vadd.f32 %v1068, %v1292
        %v1357 = vadd.f32 %v1069, %v1293
        %v1358 = vadd.f32 %v1070, %v1294
        %v1359 = vadd.f32 %v1071, %v1295
        %v1360 = vadd.f32 %v1072, %v1296
        %v1361 = vadd.f32 %v1073, %v1297
        %v1362 = vadd.f32 %v1074, %v1298
        %v1363 = vadd.f32 %v1075, %v1299
        %v1364 = vadd.f32 %v1076, %v1300
        %v1365 = vadd.f32 %v1077, %v1301
        %v1366 = vadd.f32 %v1078, %v1302
        %v1367 = vadd.f32 %v1079, %v1303
        %v1368 = vadd.f32 %v1080, %v1304
        %v1369 = vadd.f32 %v1081, %v1305
        %v1370 = vadd.f32 %v1082, %v1306
        %v1371 = vadd.f32 %v1083, %v1307
        %v1372 = vadd.f32 %v1084, %v1308
        %v1373 = vadd.f32 %v1085, %v1309
        %v1374 = vadd.f32 %v1086, %v1310
        %v1375 = vadd.f32 %v1087, %v1311
        %v1376 = vadd.f32 %v1088, %v1312
        %v1377 = vadd.f32 %v1089, %v1313
        %v1378 = vadd.f32 %v1090, %v1314
        %v1379 = vlaneseq
        %v1380 = vand.u32 %v1379, 127
        %v1381 = vadd.s32 %v1380, 128
        %v1382 = vadd.s32 %v1380, 256
        %v1383 = vadd.s32 %v1380, 384
        %v1384 = vadd.s32 %v1380, 512
        %v1385 = vadd.s32 %v1380, 640
        %v1386 = vadd.s32 %v1380, 768
        %v1387 = vadd.s32 %v1380, 896
        %v1388 = vadd.s32 %v1380, 1024
        %v1389 = vadd.s32 %v1380, 1152
        %v1390 = vadd.s32 %v1380, 1280
        %v1391 = vadd.s32 %v1380, 1408
        %v1392 = vadd.s32 %v1380, 1536
        %v1393 = vadd.s32 %v1380, 1664
        %v1394 = vadd.s32 %v1380, 1792
        %v1395 = vadd.s32 %v1380, 1920
        %s1396 = smul.u32 %s22, 2048
        %s1397 = scvt.s32.f32 %s1396
        %v1398 = vcvt.s32.f32 %v1380
        %v1399 = vcvt.s32.f32 %v1381
        %v1400 = vcvt.s32.f32 %v1382
        %v1401 = vcvt.s32.f32 %v1383
        %v1402 = vcvt.s32.f32 %v1384
        %v1403 = vcvt.s32.f32 %v1385
        %v1404 = vcvt.s32.f32 %v1386
        %v1405 = vcvt.s32.f32 %v1387
        %v1406 = vcvt.s32.f32 %v1388
        %v1407 = vcvt.s32.f32 %v1389
        %v1408 = vcvt.s32.f32 %v1390
        %v1409 = vcvt.s32.f32 %v1391
        %v1410 = vcvt.s32.f32 %v1392
        %v1411 = vcvt.s32.f32 %v1393
        %v1412 = vcvt.s32.f32 %v1394
        %v1413 = vcvt.s32.f32 %v1395
        %v1414 = vstv %s1397
        %v1415 = vadd.f32 %v1414, %v1398
        %v1416 = vadd.f32 %v1414, %v1399
        %v1417 = vadd.f32 %v1414, %v1400
        %v1418 = vadd.f32 %v1414, %v1401
        %v1419 = vadd.f32 %v1414, %v1402
        %v1420 = vadd.f32 %v1414, %v1403
        %v1421 = vadd.f32 %v1414, %v1404
        %v1422 = vadd.f32 %v1414, %v1405
        %v1423 = vadd.f32 %v1414, %v1406
        %v1424 = vadd.f32 %v1414, %v1407
        %v1425 = vadd.f32 %v1414, %v1408
        %v1426 = vadd.f32 %v1414, %v1409
        %v1427 = vadd.f32 %v1414, %v1410
        %v1428 = vadd.f32 %v1414, %v1411
        %v1429 = vadd.f32 %v1414, %v1412
        %v1430 = vadd.f32 %v1414, %v1413
        %v1431 = vrcp.pop 16.0
        %v1432 = vmul.f32 %v1415, %v1431
        %v1433 = vmul.f32 %v1416, %v1431
        %v1434 = vmul.f32 %v1417, %v1431
        %v1435 = vmul.f32 %v1418, %v1431
        %v1436 = vmul.f32 %v1419, %v1431
        %v1437 = vmul.f32 %v1420, %v1431
        %v1438 = vmul.f32 %v1421, %v1431
        %v1439 = vmul.f32 %v1422, %v1431
        %v1440 = vmul.f32 %v1423, %v1431
        %v1441 = vmul.f32 %v1424, %v1431
        %v1442 = vmul.f32 %v1425, %v1431
        %v1443 = vmul.f32 %v1426, %v1431
        %v1444 = vmul.f32 %v1427, %v1431
        %v1445 = vmul.f32 %v1428, %v1431
        %v1446 = vmul.f32 %v1429, %v1431
        %v1447 = vmul.f32 %v1430, %v1431
        %v1448 = vfloor.f32 %v1432
        %v1449 = vfloor.f32 %v1433
        %v1450 = vfloor.f32 %v1434
        %v1451 = vfloor.f32 %v1435
        %v1452 = vfloor.f32 %v1436
        %v1453 = vfloor.f32 %v1437
        %v1454 = vfloor.f32 %v1438
        %v1455 = vfloor.f32 %v1439
        %v1456 = vfloor.f32 %v1440
        %v1457 = vfloor.f32 %v1441
        %v1458 = vfloor.f32 %v1442
        %v1459 = vfloor.f32 %v1443
        %v1460 = vfloor.f32 %v1444
        %v1461 = vfloor.f32 %v1445
        %v1462 = vfloor.f32 %v1446
        %v1463 = vfloor.f32 %v1447
        %v1464 = vmul.f32 %v1448, 16.0
        %v1465 = vmul.f32 %v1449, 16.0
        %v1466 = vmul.f32 %v1450, 16.0
        %v1467 = vmul.f32 %v1451, 16.0
        %v1468 = vmul.f32 %v1452, 16.0
        %v1469 = vmul.f32 %v1453, 16.0
        %v1470 = vmul.f32 %v1454, 16.0
        %v1471 = vmul.f32 %v1455, 16.0
        %v1472 = vmul.f32 %v1456, 16.0
        %v1473 = vmul.f32 %v1457, 16.0
        %v1474 = vmul.f32 %v1458, 16.0
        %v1475 = vmul.f32 %v1459, 16.0
        %v1476 = vmul.f32 %v1460, 16.0
        %v1477 = vmul.f32 %v1461, 16.0
        %v1478 = vmul.f32 %v1462, 16.0
        %v1479 = vmul.f32 %v1463, 16.0
        %v1480 = vsub.f32 %v1415, %v1464
        %v1481 = vsub.f32 %v1416, %v1465
        %v1482 = vsub.f32 %v1417, %v1466
        %v1483 = vsub.f32 %v1418, %v1467
        %v1484 = vsub.f32 %v1419, %v1468
        %v1485 = vsub.f32 %v1420, %v1469
        %v1486 = vsub.f32 %v1421, %v1470
        %v1487 = vsub.f32 %v1422, %v1471
        %v1488 = vsub.f32 %v1423, %v1472
        %v1489 = vsub.f32 %v1424, %v1473
        %v1490 = vsub.f32 %v1425, %v1474
        %v1491 = vsub.f32 %v1426, %v1475
        %v1492 = vsub.f32 %v1427, %v1476
        %v1493 = vsub.f32 %v1428, %v1477
        %v1494 = vsub.f32 %v1429, %v1478
        %v1495 = vsub.f32 %v1430, %v1479
        %vm1496 = vcmp.lt.f32.partialorder %v1480, 0.0
        %vm1497 = vcmp.lt.f32.partialorder %v1481, 0.0
        %vm1498 = vcmp.lt.f32.partialorder %v1482, 0.0
        %vm1499 = vcmp.lt.f32.partialorder %v1483, 0.0
        %vm1500 = vcmp.lt.f32.partialorder %v1484, 0.0
        %vm1501 = vcmp.lt.f32.partialorder %v1485, 0.0
        %vm1502 = vcmp.lt.f32.partialorder %v1486, 0.0
        %vm1503 = vcmp.lt.f32.partialorder %v1487, 0.0
        %vm1504 = vcmp.lt.f32.partialorder %v1488, 0.0
        %vm1505 = vcmp.lt.f32.partialorder %v1489, 0.0
        %vm1506 = vcmp.lt.f32.partialorder %v1490, 0.0
        %vm1507 = vcmp.lt.f32.partialorder %v1491, 0.0
        %vm1508 = vcmp.lt.f32.partialorder %v1492, 0.0
        %vm1509 = vcmp.lt.f32.partialorder %v1493, 0.0
        %vm1510 = vcmp.lt.f32.partialorder %v1494, 0.0
        %vm1511 = vcmp.lt.f32.partialorder %v1495, 0.0
        %v1512 = vsub.f32 %v1448, 1.0
        %v1513 = vsub.f32 %v1449, 1.0
        %v1514 = vsub.f32 %v1450, 1.0
        %v1515 = vsub.f32 %v1451, 1.0
        %v1516 = vsub.f32 %v1452, 1.0
        %v1517 = vsub.f32 %v1453, 1.0
        %v1518 = vsub.f32 %v1454, 1.0
        %v1519 = vsub.f32 %v1455, 1.0
        %v1520 = vsub.f32 %v1456, 1.0
        %v1521 = vsub.f32 %v1457, 1.0
        %v1522 = vsub.f32 %v1458, 1.0
        %v1523 = vsub.f32 %v1459, 1.0
        %v1524 = vsub.f32 %v1460, 1.0
        %v1525 = vsub.f32 %v1461, 1.0
        %v1526 = vsub.f32 %v1462, 1.0
        %v1527 = vsub.f32 %v1463, 1.0
        %v1528 = vsel %vm1496, %v1512, %v1448
        %v1529 = vsel %vm1497, %v1513, %v1449
        %v1530 = vsel %vm1498, %v1514, %v1450
        %v1531 = vsel %vm1499, %v1515, %v1451
        %v1532 = vsel %vm1500, %v1516, %v1452
        %v1533 = vsel %vm1501, %v1517, %v1453
        %v1534 = vsel %vm1502, %v1518, %v1454
        %v1535 = vsel %vm1503, %v1519, %v1455
        %v1536 = vsel %vm1504, %v1520, %v1456
        %v1537 = vsel %vm1505, %v1521, %v1457
        %v1538 = vsel %vm1506, %v1522, %v1458
        %v1539 = vsel %vm1507, %v1523, %v1459
        %v1540 = vsel %vm1508, %v1524, %v1460
        %v1541 = vsel %vm1509, %v1525, %v1461
        %v1542 = vsel %vm1510, %v1526, %v1462
        %v1543 = vsel %vm1511, %v1527, %v1463
        %v1544 = vadd.f32 %v1480, 16.0
        %v1545 = vadd.f32 %v1481, 16.0
        %v1546 = vadd.f32 %v1482, 16.0
        %v1547 = vadd.f32 %v1483, 16.0
        %v1548 = vadd.f32 %v1484, 16.0
        %v1549 = vadd.f32 %v1485, 16.0
        %v1550 = vadd.f32 %v1486, 16.0
        %v1551 = vadd.f32 %v1487, 16.0
        %v1552 = vadd.f32 %v1488, 16.0
        %v1553 = vadd.f32 %v1489, 16.0
        %v1554 = vadd.f32 %v1490, 16.0
        %v1555 = vadd.f32 %v1491, 16.0
        %v1556 = vadd.f32 %v1492, 16.0
        %v1557 = vadd.f32 %v1493, 16.0
        %v1558 = vadd.f32 %v1494, 16.0
        %v1559 = vadd.f32 %v1495, 16.0
        %v1560 = vsel %vm1496, %v1544, %v1480
        %v1561 = vsel %vm1497, %v1545, %v1481
        %v1562 = vsel %vm1498, %v1546, %v1482
        %v1563 = vsel %vm1499, %v1547, %v1483
        %v1564 = vsel %vm1500, %v1548, %v1484
        %v1565 = vsel %vm1501, %v1549, %v1485
        %v1566 = vsel %vm1502, %v1550, %v1486
        %v1567 = vsel %vm1503, %v1551, %v1487
        %v1568 = vsel %vm1504, %v1552, %v1488
        %v1569 = vsel %vm1505, %v1553, %v1489
        %v1570 = vsel %vm1506, %v1554, %v1490
        %v1571 = vsel %vm1507, %v1555, %v1491
        %v1572 = vsel %vm1508, %v1556, %v1492
        %v1573 = vsel %vm1509, %v1557, %v1493
        %v1574 = vsel %vm1510, %v1558, %v1494
        %v1575 = vsel %vm1511, %v1559, %v1495
        %vm1576 = vcmp.ge.f32.partialorder %v1560, 16.0
        %vm1577 = vcmp.ge.f32.partialorder %v1561, 16.0
        %vm1578 = vcmp.ge.f32.partialorder %v1562, 16.0
        %vm1579 = vcmp.ge.f32.partialorder %v1563, 16.0
        %vm1580 = vcmp.ge.f32.partialorder %v1564, 16.0
        %vm1581 = vcmp.ge.f32.partialorder %v1565, 16.0
        %vm1582 = vcmp.ge.f32.partialorder %v1566, 16.0
        %vm1583 = vcmp.ge.f32.partialorder %v1567, 16.0
        %vm1584 = vcmp.ge.f32.partialorder %v1568, 16.0
        %vm1585 = vcmp.ge.f32.partialorder %v1569, 16.0
        %vm1586 = vcmp.ge.f32.partialorder %v1570, 16.0
        %vm1587 = vcmp.ge.f32.partialorder %v1571, 16.0
        %vm1588 = vcmp.ge.f32.partialorder %v1572, 16.0
        %vm1589 = vcmp.ge.f32.partialorder %v1573, 16.0
        %vm1590 = vcmp.ge.f32.partialorder %v1574, 16.0
        %vm1591 = vcmp.ge.f32.partialorder %v1575, 16.0
        %v1592 = vadd.f32 %v1528, 1.0
        %v1593 = vadd.f32 %v1529, 1.0
        %v1594 = vadd.f32 %v1530, 1.0
        %v1595 = vadd.f32 %v1531, 1.0
        %v1596 = vadd.f32 %v1532, 1.0
        %v1597 = vadd.f32 %v1533, 1.0
        %v1598 = vadd.f32 %v1534, 1.0
        %v1599 = vadd.f32 %v1535, 1.0
        %v1600 = vadd.f32 %v1536, 1.0
        %v1601 = vadd.f32 %v1537, 1.0
        %v1602 = vadd.f32 %v1538, 1.0
        %v1603 = vadd.f32 %v1539, 1.0
        %v1604 = vadd.f32 %v1540, 1.0
        %v1605 = vadd.f32 %v1541, 1.0
        %v1606 = vadd.f32 %v1542, 1.0
        %v1607 = vadd.f32 %v1543, 1.0
        %v1608 = vsel %vm1576, %v1592, %v1528
        %v1609 = vsel %vm1577, %v1593, %v1529
        %v1610 = vsel %vm1578, %v1594, %v1530
        %v1611 = vsel %vm1579, %v1595, %v1531
        %v1612 = vsel %vm1580, %v1596, %v1532
        %v1613 = vsel %vm1581, %v1597, %v1533
        %v1614 = vsel %vm1582, %v1598, %v1534
        %v1615 = vsel %vm1583, %v1599, %v1535
        %v1616 = vsel %vm1584, %v1600, %v1536
        %v1617 = vsel %vm1585, %v1601, %v1537
        %v1618 = vsel %vm1586, %v1602, %v1538
        %v1619 = vsel %vm1587, %v1603, %v1539
        %v1620 = vsel %vm1588, %v1604, %v1540
        %v1621 = vsel %vm1589, %v1605, %v1541
        %v1622 = vsel %vm1590, %v1606, %v1542
        %v1623 = vsel %vm1591, %v1607, %v1543
        %v1624 = vsub.f32 %v1560, 16.0
        %v1625 = vsub.f32 %v1561, 16.0
        %v1626 = vsub.f32 %v1562, 16.0
        %v1627 = vsub.f32 %v1563, 16.0
        %v1628 = vsub.f32 %v1564, 16.0
        %v1629 = vsub.f32 %v1565, 16.0
        %v1630 = vsub.f32 %v1566, 16.0
        %v1631 = vsub.f32 %v1567, 16.0
        %v1632 = vsub.f32 %v1568, 16.0
        %v1633 = vsub.f32 %v1569, 16.0
        %v1634 = vsub.f32 %v1570, 16.0
        %v1635 = vsub.f32 %v1571, 16.0
        %v1636 = vsub.f32 %v1572, 16.0
        %v1637 = vsub.f32 %v1573, 16.0
        %v1638 = vsub.f32 %v1574, 16.0
        %v1639 = vsub.f32 %v1575, 16.0
        %v1640 = vsel %vm1576, %v1624, %v1560
        %v1641 = vsel %vm1577, %v1625, %v1561
        %v1642 = vsel %vm1578, %v1626, %v1562
        %v1643 = vsel %vm1579, %v1627, %v1563
        %v1644 = vsel %vm1580, %v1628, %v1564
        %v1645 = vsel %vm1581, %v1629, %v1565
        %v1646 = vsel %vm1582, %v1630, %v1566
        %v1647 = vsel %vm1583, %v1631, %v1567
        %v1648 = vsel %vm1584, %v1632, %v1568
        %v1649 = vsel %vm1585, %v1633, %v1569
        %v1650 = vsel %vm1586, %v1634, %v1570
        %v1651 = vsel %vm1587, %v1635, %v1571
        %v1652 = vsel %vm1588, %v1636, %v1572
        %v1653 = vsel %vm1589, %v1637, %v1573
        %v1654 = vsel %vm1590, %v1638, %v1574
        %v1655 = vsel %vm1591, %v1639, %v1575
        %v1656 = vmul.f32 %v1608, %v1431
        %v1657 = vmul.f32 %v1609, %v1431
        %v1658 = vmul.f32 %v1610, %v1431
        %v1659 = vmul.f32 %v1611, %v1431
        %v1660 = vmul.f32 %v1612, %v1431
        %v1661 = vmul.f32 %v1613, %v1431
        %v1662 = vmul.f32 %v1614, %v1431
        %v1663 = vmul.f32 %v1615, %v1431
        %v1664 = vmul.f32 %v1616, %v1431
        %v1665 = vmul.f32 %v1617, %v1431
        %v1666 = vmul.f32 %v1618, %v1431
        %v1667 = vmul.f32 %v1619, %v1431
        %v1668 = vmul.f32 %v1620, %v1431
        %v1669 = vmul.f32 %v1621, %v1431
        %v1670 = vmul.f32 %v1622, %v1431
        %v1671 = vmul.f32 %v1623, %v1431
        %v1672 = vfloor.f32 %v1656
        %v1673 = vfloor.f32 %v1657
        %v1674 = vfloor.f32 %v1658
        %v1675 = vfloor.f32 %v1659
        %v1676 = vfloor.f32 %v1660
        %v1677 = vfloor.f32 %v1661
        %v1678 = vfloor.f32 %v1662
        %v1679 = vfloor.f32 %v1663
        %v1680 = vfloor.f32 %v1664
        %v1681 = vfloor.f32 %v1665
        %v1682 = vfloor.f32 %v1666
        %v1683 = vfloor.f32 %v1667
        %v1684 = vfloor.f32 %v1668
        %v1685 = vfloor.f32 %v1669
        %v1686 = vfloor.f32 %v1670
        %v1687 = vfloor.f32 %v1671
        %v1688 = vmul.f32 %v1672, 16.0
        %v1689 = vmul.f32 %v1673, 16.0
        %v1690 = vmul.f32 %v1674, 16.0
        %v1691 = vmul.f32 %v1675, 16.0
        %v1692 = vmul.f32 %v1676, 16.0
        %v1693 = vmul.f32 %v1677, 16.0
        %v1694 = vmul.f32 %v1678, 16.0
        %v1695 = vmul.f32 %v1679, 16.0
        %v1696 = vmul.f32 %v1680, 16.0
        %v1697 = vmul.f32 %v1681, 16.0
        %v1698 = vmul.f32 %v1682, 16.0
        %v1699 = vmul.f32 %v1683, 16.0
        %v1700 = vmul.f32 %v1684, 16.0
        %v1701 = vmul.f32 %v1685, 16.0
        %v1702 = vmul.f32 %v1686, 16.0
        %v1703 = vmul.f32 %v1687, 16.0
        %v1704 = vsub.f32 %v1608, %v1688
        %v1705 = vsub.f32 %v1609, %v1689
        %v1706 = vsub.f32 %v1610, %v1690
        %v1707 = vsub.f32 %v1611, %v1691
        %v1708 = vsub.f32 %v1612, %v1692
        %v1709 = vsub.f32 %v1613, %v1693
        %v1710 = vsub.f32 %v1614, %v1694
        %v1711 = vsub.f32 %v1615, %v1695
        %v1712 = vsub.f32 %v1616, %v1696
        %v1713 = vsub.f32 %v1617, %v1697
        %v1714 = vsub.f32 %v1618, %v1698
        %v1715 = vsub.f32 %v1619, %v1699
        %v1716 = vsub.f32 %v1620, %v1700
        %v1717 = vsub.f32 %v1621, %v1701
        %v1718 = vsub.f32 %v1622, %v1702
        %v1719 = vsub.f32 %v1623, %v1703
        %vm1720 = vcmp.lt.f32.partialorder %v1704, 0.0
        %vm1721 = vcmp.lt.f32.partialorder %v1705, 0.0
        %vm1722 = vcmp.lt.f32.partialorder %v1706, 0.0
        %vm1723 = vcmp.lt.f32.partialorder %v1707, 0.0
        %vm1724 = vcmp.lt.f32.partialorder %v1708, 0.0
        %vm1725 = vcmp.lt.f32.partialorder %v1709, 0.0
        %vm1726 = vcmp.lt.f32.partialorder %v1710, 0.0
        %vm1727 = vcmp.lt.f32.partialorder %v1711, 0.0
        %vm1728 = vcmp.lt.f32.partialorder %v1712, 0.0
        %vm1729 = vcmp.lt.f32.partialorder %v1713, 0.0
        %vm1730 = vcmp.lt.f32.partialorder %v1714, 0.0
        %vm1731 = vcmp.lt.f32.partialorder %v1715, 0.0
        %vm1732 = vcmp.lt.f32.partialorder %v1716, 0.0
        %vm1733 = vcmp.lt.f32.partialorder %v1717, 0.0
        %vm1734 = vcmp.lt.f32.partialorder %v1718, 0.0
        %vm1735 = vcmp.lt.f32.partialorder %v1719, 0.0
        %v1736 = vsub.f32 %v1672, 1.0
        %v1737 = vsub.f32 %v1673, 1.0
        %v1738 = vsub.f32 %v1674, 1.0
        %v1739 = vsub.f32 %v1675, 1.0
        %v1740 = vsub.f32 %v1676, 1.0
        %v1741 = vsub.f32 %v1677, 1.0
        %v1742 = vsub.f32 %v1678, 1.0
        %v1743 = vsub.f32 %v1679, 1.0
        %v1744 = vsub.f32 %v1680, 1.0
        %v1745 = vsub.f32 %v1681, 1.0
        %v1746 = vsub.f32 %v1682, 1.0
        %v1747 = vsub.f32 %v1683, 1.0
        %v1748 = vsub.f32 %v1684, 1.0
        %v1749 = vsub.f32 %v1685, 1.0
        %v1750 = vsub.f32 %v1686, 1.0
        %v1751 = vsub.f32 %v1687, 1.0
        %v1752 = vsel %vm1720, %v1736, %v1672
        %v1753 = vsel %vm1721, %v1737, %v1673
        %v1754 = vsel %vm1722, %v1738, %v1674
        %v1755 = vsel %vm1723, %v1739, %v1675
        %v1756 = vsel %vm1724, %v1740, %v1676
        %v1757 = vsel %vm1725, %v1741, %v1677
        %v1758 = vsel %vm1726, %v1742, %v1678
        %v1759 = vsel %vm1727, %v1743, %v1679
        %v1760 = vsel %vm1728, %v1744, %v1680
        %v1761 = vsel %vm1729, %v1745, %v1681
        %v1762 = vsel %vm1730, %v1746, %v1682
        %v1763 = vsel %vm1731, %v1747, %v1683
        %v1764 = vsel %vm1732, %v1748, %v1684
        %v1765 = vsel %vm1733, %v1749, %v1685
        %v1766 = vsel %vm1734, %v1750, %v1686
        %v1767 = vsel %vm1735, %v1751, %v1687
        %v1768 = vadd.f32 %v1704, 16.0
        %v1769 = vadd.f32 %v1705, 16.0
        %v1770 = vadd.f32 %v1706, 16.0
        %v1771 = vadd.f32 %v1707, 16.0
        %v1772 = vadd.f32 %v1708, 16.0
        %v1773 = vadd.f32 %v1709, 16.0
        %v1774 = vadd.f32 %v1710, 16.0
        %v1775 = vadd.f32 %v1711, 16.0
        %v1776 = vadd.f32 %v1712, 16.0
        %v1777 = vadd.f32 %v1713, 16.0
        %v1778 = vadd.f32 %v1714, 16.0
        %v1779 = vadd.f32 %v1715, 16.0
        %v1780 = vadd.f32 %v1716, 16.0
        %v1781 = vadd.f32 %v1717, 16.0
        %v1782 = vadd.f32 %v1718, 16.0
        %v1783 = vadd.f32 %v1719, 16.0
        %v1784 = vsel %vm1720, %v1768, %v1704
        %v1785 = vsel %vm1721, %v1769, %v1705
        %v1786 = vsel %vm1722, %v1770, %v1706
        %v1787 = vsel %vm1723, %v1771, %v1707
        %v1788 = vsel %vm1724, %v1772, %v1708
        %v1789 = vsel %vm1725, %v1773, %v1709
        %v1790 = vsel %vm1726, %v1774, %v1710
        %v1791 = vsel %vm1727, %v1775, %v1711
        %v1792 = vsel %vm1728, %v1776, %v1712
        %v1793 = vsel %vm1729, %v1777, %v1713
        %v1794 = vsel %vm1730, %v1778, %v1714
        %v1795 = vsel %vm1731, %v1779, %v1715
        %v1796 = vsel %vm1732, %v1780, %v1716
        %v1797 = vsel %vm1733, %v1781, %v1717
        %v1798 = vsel %vm1734, %v1782, %v1718
        %v1799 = vsel %vm1735, %v1783, %v1719
        %vm1800 = vcmp.ge.f32.partialorder %v1784, 16.0
        %vm1801 = vcmp.ge.f32.partialorder %v1785, 16.0
        %vm1802 = vcmp.ge.f32.partialorder %v1786, 16.0
        %vm1803 = vcmp.ge.f32.partialorder %v1787, 16.0
        %vm1804 = vcmp.ge.f32.partialorder %v1788, 16.0
        %vm1805 = vcmp.ge.f32.partialorder %v1789, 16.0
        %vm1806 = vcmp.ge.f32.partialorder %v1790, 16.0
        %vm1807 = vcmp.ge.f32.partialorder %v1791, 16.0
        %vm1808 = vcmp.ge.f32.partialorder %v1792, 16.0
        %vm1809 = vcmp.ge.f32.partialorder %v1793, 16.0
        %vm1810 = vcmp.ge.f32.partialorder %v1794, 16.0
        %vm1811 = vcmp.ge.f32.partialorder %v1795, 16.0
        %vm1812 = vcmp.ge.f32.partialorder %v1796, 16.0
        %vm1813 = vcmp.ge.f32.partialorder %v1797, 16.0
        %vm1814 = vcmp.ge.f32.partialorder %v1798, 16.0
        %vm1815 = vcmp.ge.f32.partialorder %v1799, 16.0
        %v1816 = vadd.f32 %v1752, 1.0
        %v1817 = vadd.f32 %v1753, 1.0
        %v1818 = vadd.f32 %v1754, 1.0
        %v1819 = vadd.f32 %v1755, 1.0
        %v1820 = vadd.f32 %v1756, 1.0
        %v1821 = vadd.f32 %v1757, 1.0
        %v1822 = vadd.f32 %v1758, 1.0
        %v1823 = vadd.f32 %v1759, 1.0
        %v1824 = vadd.f32 %v1760, 1.0
        %v1825 = vadd.f32 %v1761, 1.0
        %v1826 = vadd.f32 %v1762, 1.0
        %v1827 = vadd.f32 %v1763, 1.0
        %v1828 = vadd.f32 %v1764, 1.0
        %v1829 = vadd.f32 %v1765, 1.0
        %v1830 = vadd.f32 %v1766, 1.0
        %v1831 = vadd.f32 %v1767, 1.0
        %v1832 = vsel %vm1800, %v1816, %v1752
        %v1833 = vsel %vm1801, %v1817, %v1753
        %v1834 = vsel %vm1802, %v1818, %v1754
        %v1835 = vsel %vm1803, %v1819, %v1755
        %v1836 = vsel %vm1804, %v1820, %v1756
        %v1837 = vsel %vm1805, %v1821, %v1757
        %v1838 = vsel %vm1806, %v1822, %v1758
        %v1839 = vsel %vm1807, %v1823, %v1759
        %v1840 = vsel %vm1808, %v1824, %v1760
        %v1841 = vsel %vm1809, %v1825, %v1761
        %v1842 = vsel %vm1810, %v1826, %v1762
        %v1843 = vsel %vm1811, %v1827, %v1763
        %v1844 = vsel %vm1812, %v1828, %v1764
        %v1845 = vsel %vm1813, %v1829, %v1765
        %v1846 = vsel %vm1814, %v1830, %v1766
        %v1847 = vsel %vm1815, %v1831, %v1767
        %v1848 = vsub.f32 %v1784, 16.0
        %v1849 = vsub.f32 %v1785, 16.0
        %v1850 = vsub.f32 %v1786, 16.0
        %v1851 = vsub.f32 %v1787, 16.0
        %v1852 = vsub.f32 %v1788, 16.0
        %v1853 = vsub.f32 %v1789, 16.0
        %v1854 = vsub.f32 %v1790, 16.0
        %v1855 = vsub.f32 %v1791, 16.0
        %v1856 = vsub.f32 %v1792, 16.0
        %v1857 = vsub.f32 %v1793, 16.0
        %v1858 = vsub.f32 %v1794, 16.0
        %v1859 = vsub.f32 %v1795, 16.0
        %v1860 = vsub.f32 %v1796, 16.0
        %v1861 = vsub.f32 %v1797, 16.0
        %v1862 = vsub.f32 %v1798, 16.0
        %v1863 = vsub.f32 %v1799, 16.0
        %v1864 = vsel %vm1800, %v1848, %v1784
        %v1865 = vsel %vm1801, %v1849, %v1785
        %v1866 = vsel %vm1802, %v1850, %v1786
        %v1867 = vsel %vm1803, %v1851, %v1787
        %v1868 = vsel %vm1804, %v1852, %v1788
        %v1869 = vsel %vm1805, %v1853, %v1789
        %v1870 = vsel %vm1806, %v1854, %v1790
        %v1871 = vsel %vm1807, %v1855, %v1791
        %v1872 = vsel %vm1808, %v1856, %v1792
        %v1873 = vsel %vm1809, %v1857, %v1793
        %v1874 = vsel %vm1810, %v1858, %v1794
        %v1875 = vsel %vm1811, %v1859, %v1795
        %v1876 = vsel %vm1812, %v1860, %v1796
        %v1877 = vsel %vm1813, %v1861, %v1797
        %v1878 = vsel %vm1814, %v1862, %v1798
        %v1879 = vsel %vm1815, %v1863, %v1799
        %v1880 = vmul.f32 %v1640, 0.13333334
        %v1881 = vmul.f32 %v1641, 0.13333334
        %v1882 = vmul.f32 %v1642, 0.13333334
        %v1883 = vmul.f32 %v1643, 0.13333334
        %v1884 = vmul.f32 %v1644, 0.13333334
        %v1885 = vmul.f32 %v1645, 0.13333334
        %v1886 = vmul.f32 %v1646, 0.13333334
        %v1887 = vmul.f32 %v1647, 0.13333334
        %v1888 = vmul.f32 %v1648, 0.13333334
        %v1889 = vmul.f32 %v1649, 0.13333334
        %v1890 = vmul.f32 %v1650, 0.13333334
        %v1891 = vmul.f32 %v1651, 0.13333334
        %v1892 = vmul.f32 %v1652, 0.13333334
        %v1893 = vmul.f32 %v1653, 0.13333334
        %v1894 = vmul.f32 %v1654, 0.13333334
        %v1895 = vmul.f32 %v1655, 0.13333334
        %v1896 = vsub.f32 %v1880, 1.0
        %v1897 = vsub.f32 %v1881, 1.0
        %v1898 = vsub.f32 %v1882, 1.0
        %v1899 = vsub.f32 %v1883, 1.0
        %v1900 = vsub.f32 %v1884, 1.0
        %v1901 = vsub.f32 %v1885, 1.0
        %v1902 = vsub.f32 %v1886, 1.0
        %v1903 = vsub.f32 %v1887, 1.0
        %v1904 = vsub.f32 %v1888, 1.0
        %v1905 = vsub.f32 %v1889, 1.0
        %v1906 = vsub.f32 %v1890, 1.0
        %v1907 = vsub.f32 %v1891, 1.0
        %v1908 = vsub.f32 %v1892, 1.0
        %v1909 = vsub.f32 %v1893, 1.0
        %v1910 = vsub.f32 %v1894, 1.0
        %v1911 = vsub.f32 %v1895, 1.0
        %v1912 = vmul.f32 %v1864, 0.13333334
        %v1913 = vmul.f32 %v1865, 0.13333334
        %v1914 = vmul.f32 %v1866, 0.13333334
        %v1915 = vmul.f32 %v1867, 0.13333334
        %v1916 = vmul.f32 %v1868, 0.13333334
        %v1917 = vmul.f32 %v1869, 0.13333334
        %v1918 = vmul.f32 %v1870, 0.13333334
        %v1919 = vmul.f32 %v1871, 0.13333334
        %v1920 = vmul.f32 %v1872, 0.13333334
        %v1921 = vmul.f32 %v1873, 0.13333334
        %v1922 = vmul.f32 %v1874, 0.13333334
        %v1923 = vmul.f32 %v1875, 0.13333334
        %v1924 = vmul.f32 %v1876, 0.13333334
        %v1925 = vmul.f32 %v1877, 0.13333334
        %v1926 = vmul.f32 %v1878, 0.13333334
        %v1927 = vmul.f32 %v1879, 0.13333334
        %v1928 = vsub.f32 %v1912, 1.0
        %v1929 = vsub.f32 %v1913, 1.0
        %v1930 = vsub.f32 %v1914, 1.0
        %v1931 = vsub.f32 %v1915, 1.0
        %v1932 = vsub.f32 %v1916, 1.0
        %v1933 = vsub.f32 %v1917, 1.0
        %v1934 = vsub.f32 %v1918, 1.0
        %v1935 = vsub.f32 %v1919, 1.0
        %v1936 = vsub.f32 %v1920, 1.0
        %v1937 = vsub.f32 %v1921, 1.0
        %v1938 = vsub.f32 %v1922, 1.0
        %v1939 = vsub.f32 %v1923, 1.0
        %v1940 = vsub.f32 %v1924, 1.0
        %v1941 = vsub.f32 %v1925, 1.0
        %v1942 = vsub.f32 %v1926, 1.0
        %v1943 = vsub.f32 %v1927, 1.0
        %v1944 = vmul.f32 %v1832, 0.13333334
        %v1945 = vmul.f32 %v1833, 0.13333334
        %v1946 = vmul.f32 %v1834, 0.13333334
        %v1947 = vmul.f32 %v1835, 0.13333334
        %v1948 = vmul.f32 %v1836, 0.13333334
        %v1949 = vmul.f32 %v1837, 0.13333334
        %v1950 = vmul.f32 %v1838, 0.13333334
        %v1951 = vmul.f32 %v1839, 0.13333334
        %v1952 = vmul.f32 %v1840, 0.13333334
        %v1953 = vmul.f32 %v1841, 0.13333334
        %v1954 = vmul.f32 %v1842, 0.13333334
        %v1955 = vmul.f32 %v1843, 0.13333334
        %v1956 = vmul.f32 %v1844, 0.13333334
        %v1957 = vmul.f32 %v1845, 0.13333334
        %v1958 = vmul.f32 %v1846, 0.13333334
        %v1959 = vmul.f32 %v1847, 0.13333334
        %v1960 = vsub.f32 %v1944, 1.0
        %v1961 = vsub.f32 %v1945, 1.0
        %v1962 = vsub.f32 %v1946, 1.0
        %v1963 = vsub.f32 %v1947, 1.0
        %v1964 = vsub.f32 %v1948, 1.0
        %v1965 = vsub.f32 %v1949, 1.0
        %v1966 = vsub.f32 %v1950, 1.0
        %v1967 = vsub.f32 %v1951, 1.0
        %v1968 = vsub.f32 %v1952, 1.0
        %v1969 = vsub.f32 %v1953, 1.0
        %v1970 = vsub.f32 %v1954, 1.0
        %v1971 = vsub.f32 %v1955, 1.0
        %v1972 = vsub.f32 %v1956, 1.0
        %v1973 = vsub.f32 %v1957, 1.0
        %v1974 = vsub.f32 %v1958, 1.0
        %v1975 = vsub.f32 %v1959, 1.0
        %v1976 = vld [vmem:[#allocation4] sm:$0xff]
        %v1977 = vld [vmem:[#allocation4 + $0x8] sm:$0xff]
        %v1978 = vld [vmem:[#allocation4 + $0x10] sm:$0xff]
        %v1979 = vld [vmem:[#allocation4 + $0x18] sm:$0xff]
        %1981 = vset.pattern.permute.xlu0 0
        %1982 = vperm.xlu0 %1981, %v1976
        %v1983 = vpop.permute.xlu0 %1982
        %1986 = vset.pattern.permute.xlu0 0
        %1987 = vperm.xlu0 %1986, %v1977
        %v1988 = vpop.permute.xlu0 %1987
        %1991 = vset.pattern.permute.xlu0 0
        %1992 = vperm.xlu0 %1991, %v1978
        %v1993 = vpop.permute.xlu0 %1992
        %1996 = vset.pattern.permute.xlu0 0
        %1997 = vperm.xlu0 %1996, %v1979
        %v1998 = vpop.permute.xlu0 %1997
        %v2000 = vmul.f32 %v1983, %v1896
        %v2001 = vmul.f32 %v1983, %v1897
        %v2002 = vmul.f32 %v1983, %v1898
        %v2003 = vmul.f32 %v1983, %v1899
        %v2004 = vmul.f32 %v1983, %v1900
        %v2005 = vmul.f32 %v1983, %v1901
        %v2006 = vmul.f32 %v1983, %v1902
        %v2007 = vmul.f32 %v1983, %v1903
        %v2008 = vmul.f32 %v1983, %v1904
        %v2009 = vmul.f32 %v1983, %v1905
        %v2010 = vmul.f32 %v1983, %v1906
        %v2011 = vmul.f32 %v1983, %v1907
        %v2012 = vmul.f32 %v1983, %v1908
        %v2013 = vmul.f32 %v1983, %v1909
        %v2014 = vmul.f32 %v1983, %v1910
        %v2015 = vmul.f32 %v1983, %v1911
        %v2016 = vmul.f32 %v1988, %v1896
        %v2017 = vmul.f32 %v1988, %v1897
        %v2018 = vmul.f32 %v1988, %v1898
        %v2019 = vmul.f32 %v1988, %v1899
        %v2020 = vmul.f32 %v1988, %v1900
        %v2021 = vmul.f32 %v1988, %v1901
        %v2022 = vmul.f32 %v1988, %v1902
        %v2023 = vmul.f32 %v1988, %v1903
        %v2024 = vmul.f32 %v1988, %v1904
        %v2025 = vmul.f32 %v1988, %v1905
        %v2026 = vmul.f32 %v1988, %v1906
        %v2027 = vmul.f32 %v1988, %v1907
        %v2028 = vmul.f32 %v1988, %v1908
        %v2029 = vmul.f32 %v1988, %v1909
        %v2030 = vmul.f32 %v1988, %v1910
        %v2031 = vmul.f32 %v1988, %v1911
        %v2032 = vmul.f32 %v1993, %v1896
        %v2033 = vmul.f32 %v1993, %v1897
        %v2034 = vmul.f32 %v1993, %v1898
        %v2035 = vmul.f32 %v1993, %v1899
        %v2036 = vmul.f32 %v1993, %v1900
        %v2037 = vmul.f32 %v1993, %v1901
        %v2038 = vmul.f32 %v1993, %v1902
        %v2039 = vmul.f32 %v1993, %v1903
        %v2040 = vmul.f32 %v1993, %v1904
        %v2041 = vmul.f32 %v1993, %v1905
        %v2042 = vmul.f32 %v1993, %v1906
        %v2043 = vmul.f32 %v1993, %v1907
        %v2044 = vmul.f32 %v1993, %v1908
        %v2045 = vmul.f32 %v1993, %v1909
        %v2046 = vmul.f32 %v1993, %v1910
        %v2047 = vmul.f32 %v1993, %v1911
        %v2048 = vmul.f32 %v1998, %v1896
        %v2049 = vmul.f32 %v1998, %v1897
        %v2050 = vmul.f32 %v1998, %v1898
        %v2051 = vmul.f32 %v1998, %v1899
        %v2052 = vmul.f32 %v1998, %v1900
        %v2053 = vmul.f32 %v1998, %v1901
        %v2054 = vmul.f32 %v1998, %v1902
        %v2055 = vmul.f32 %v1998, %v1903
        %v2056 = vmul.f32 %v1998, %v1904
        %v2057 = vmul.f32 %v1998, %v1905
        %v2058 = vmul.f32 %v1998, %v1906
        %v2059 = vmul.f32 %v1998, %v1907
        %v2060 = vmul.f32 %v1998, %v1908
        %v2061 = vmul.f32 %v1998, %v1909
        %v2062 = vmul.f32 %v1998, %v1910
        %v2063 = vmul.f32 %v1998, %v1911
        %v2064 = vadd.f32 %v1315, %v2000
        %v2065 = vadd.f32 %v1316, %v2001
        %v2066 = vadd.f32 %v1317, %v2002
        %v2067 = vadd.f32 %v1318, %v2003
        %v2068 = vadd.f32 %v1319, %v2004
        %v2069 = vadd.f32 %v1320, %v2005
        %v2070 = vadd.f32 %v1321, %v2006
        %v2071 = vadd.f32 %v1322, %v2007
        %v2072 = vadd.f32 %v1323, %v2008
        %v2073 = vadd.f32 %v1324, %v2009
        %v2074 = vadd.f32 %v1325, %v2010
        %v2075 = vadd.f32 %v1326, %v2011
        %v2076 = vadd.f32 %v1327, %v2012
        %v2077 = vadd.f32 %v1328, %v2013
        %v2078 = vadd.f32 %v1329, %v2014
        %v2079 = vadd.f32 %v1330, %v2015
        %v2080 = vadd.f32 %v1331, %v2016
        %v2081 = vadd.f32 %v1332, %v2017
        %v2082 = vadd.f32 %v1333, %v2018
        %v2083 = vadd.f32 %v1334, %v2019
        %v2084 = vadd.f32 %v1335, %v2020
        %v2085 = vadd.f32 %v1336, %v2021
        %v2086 = vadd.f32 %v1337, %v2022
        %v2087 = vadd.f32 %v1338, %v2023
        %v2088 = vadd.f32 %v1339, %v2024
        %v2089 = vadd.f32 %v1340, %v2025
        %v2090 = vadd.f32 %v1341, %v2026
        %v2091 = vadd.f32 %v1342, %v2027
        %v2092 = vadd.f32 %v1343, %v2028
        %v2093 = vadd.f32 %v1344, %v2029
        %v2094 = vadd.f32 %v1345, %v2030
        %v2095 = vadd.f32 %v1346, %v2031
        %v2096 = vadd.f32 %v1347, %v2032
        %v2097 = vadd.f32 %v1348, %v2033
        %v2098 = vadd.f32 %v1349, %v2034
        %v2099 = vadd.f32 %v1350, %v2035
        %v2100 = vadd.f32 %v1351, %v2036
        %v2101 = vadd.f32 %v1352, %v2037
        %v2102 = vadd.f32 %v1353, %v2038
        %v2103 = vadd.f32 %v1354, %v2039
        %v2104 = vadd.f32 %v1355, %v2040
        %v2105 = vadd.f32 %v1356, %v2041
        %v2106 = vadd.f32 %v1357, %v2042
        %v2107 = vadd.f32 %v1358, %v2043
        %v2108 = vadd.f32 %v1359, %v2044
        %v2109 = vadd.f32 %v1360, %v2045
        %v2110 = vadd.f32 %v1361, %v2046
        %v2111 = vadd.f32 %v1362, %v2047
        %v2112 = vadd.f32 %v1363, %v2048
        %v2113 = vadd.f32 %v1364, %v2049
        %v2114 = vadd.f32 %v1365, %v2050
        %v2115 = vadd.f32 %v1366, %v2051
        %v2116 = vadd.f32 %v1367, %v2052
        %v2117 = vadd.f32 %v1368, %v2053
        %v2118 = vadd.f32 %v1369, %v2054
        %v2119 = vadd.f32 %v1370, %v2055
        %v2120 = vadd.f32 %v1371, %v2056
        %v2121 = vadd.f32 %v1372, %v2057
        %v2122 = vadd.f32 %v1373, %v2058
        %v2123 = vadd.f32 %v1374, %v2059
        %v2124 = vadd.f32 %v1375, %v2060
        %v2125 = vadd.f32 %v1376, %v2061
        %v2126 = vadd.f32 %v1377, %v2062
        %v2127 = vadd.f32 %v1378, %v2063
        %2128 = vset.pattern.permute.xlu0 1
        %2129 = vperm.xlu0 %2128, %v1976
        %v2130 = vpop.permute.xlu0 %2129
        %2132 = vset.pattern.permute.xlu0 1
        %2133 = vperm.xlu0 %2132, %v1977
        %v2134 = vpop.permute.xlu0 %2133
        %2136 = vset.pattern.permute.xlu0 1
        %2137 = vperm.xlu0 %2136, %v1978
        %v2138 = vpop.permute.xlu0 %2137
        %2140 = vset.pattern.permute.xlu0 1
        %2141 = vperm.xlu0 %2140, %v1979
        %v2142 = vpop.permute.xlu0 %2141
        %v2144 = vmul.f32 %v2130, %v1928
        %v2145 = vmul.f32 %v2130, %v1929
        %v2146 = vmul.f32 %v2130, %v1930
        %v2147 = vmul.f32 %v2130, %v1931
        %v2148 = vmul.f32 %v2130, %v1932
        %v2149 = vmul.f32 %v2130, %v1933
        %v2150 = vmul.f32 %v2130, %v1934
        %v2151 = vmul.f32 %v2130, %v1935
        %v2152 = vmul.f32 %v2130, %v1936
        %v2153 = vmul.f32 %v2130, %v1937
        %v2154 = vmul.f32 %v2130, %v1938
        %v2155 = vmul.f32 %v2130, %v1939
        %v2156 = vmul.f32 %v2130, %v1940
        %v2157 = vmul.f32 %v2130, %v1941
        %v2158 = vmul.f32 %v2130, %v1942
        %v2159 = vmul.f32 %v2130, %v1943
        %v2160 = vmul.f32 %v2134, %v1928
        %v2161 = vmul.f32 %v2134, %v1929
        %v2162 = vmul.f32 %v2134, %v1930
        %v2163 = vmul.f32 %v2134, %v1931
        %v2164 = vmul.f32 %v2134, %v1932
        %v2165 = vmul.f32 %v2134, %v1933
        %v2166 = vmul.f32 %v2134, %v1934
        %v2167 = vmul.f32 %v2134, %v1935
        %v2168 = vmul.f32 %v2134, %v1936
        %v2169 = vmul.f32 %v2134, %v1937
        %v2170 = vmul.f32 %v2134, %v1938
        %v2171 = vmul.f32 %v2134, %v1939
        %v2172 = vmul.f32 %v2134, %v1940
        %v2173 = vmul.f32 %v2134, %v1941
        %v2174 = vmul.f32 %v2134, %v1942
        %v2175 = vmul.f32 %v2134, %v1943
        %v2176 = vmul.f32 %v2138, %v1928
        %v2177 = vmul.f32 %v2138, %v1929
        %v2178 = vmul.f32 %v2138, %v1930
        %v2179 = vmul.f32 %v2138, %v1931
        %v2180 = vmul.f32 %v2138, %v1932
        %v2181 = vmul.f32 %v2138, %v1933
        %v2182 = vmul.f32 %v2138, %v1934
        %v2183 = vmul.f32 %v2138, %v1935
        %v2184 = vmul.f32 %v2138, %v1936
        %v2185 = vmul.f32 %v2138, %v1937
        %v2186 = vmul.f32 %v2138, %v1938
        %v2187 = vmul.f32 %v2138, %v1939
        %v2188 = vmul.f32 %v2138, %v1940
        %v2189 = vmul.f32 %v2138, %v1941
        %v2190 = vmul.f32 %v2138, %v1942
        %v2191 = vmul.f32 %v2138, %v1943
        %v2192 = vmul.f32 %v2142, %v1928
        %v2193 = vmul.f32 %v2142, %v1929
        %v2194 = vmul.f32 %v2142, %v1930
        %v2195 = vmul.f32 %v2142, %v1931
        %v2196 = vmul.f32 %v2142, %v1932
        %v2197 = vmul.f32 %v2142, %v1933
        %v2198 = vmul.f32 %v2142, %v1934
        %v2199 = vmul.f32 %v2142, %v1935
        %v2200 = vmul.f32 %v2142, %v1936
        %v2201 = vmul.f32 %v2142, %v1937
        %v2202 = vmul.f32 %v2142, %v1938
        %v2203 = vmul.f32 %v2142, %v1939
        %v2204 = vmul.f32 %v2142, %v1940
        %v2205 = vmul.f32 %v2142, %v1941
        %v2206 = vmul.f32 %v2142, %v1942
        %v2207 = vmul.f32 %v2142, %v1943
        %v2208 = vadd.f32 %v2064, %v2144
        %v2209 = vadd.f32 %v2065, %v2145
        %v2210 = vadd.f32 %v2066, %v2146
        %v2211 = vadd.f32 %v2067, %v2147
        %v2212 = vadd.f32 %v2068, %v2148
        %v2213 = vadd.f32 %v2069, %v2149
        %v2214 = vadd.f32 %v2070, %v2150
        %v2215 = vadd.f32 %v2071, %v2151
        %v2216 = vadd.f32 %v2072, %v2152
        %v2217 = vadd.f32 %v2073, %v2153
        %v2218 = vadd.f32 %v2074, %v2154
        %v2219 = vadd.f32 %v2075, %v2155
        %v2220 = vadd.f32 %v2076, %v2156
        %v2221 = vadd.f32 %v2077, %v2157
        %v2222 = vadd.f32 %v2078, %v2158
        %v2223 = vadd.f32 %v2079, %v2159
        %v2224 = vadd.f32 %v2080, %v2160
        %v2225 = vadd.f32 %v2081, %v2161
        %v2226 = vadd.f32 %v2082, %v2162
        %v2227 = vadd.f32 %v2083, %v2163
        %v2228 = vadd.f32 %v2084, %v2164
        %v2229 = vadd.f32 %v2085, %v2165
        %v2230 = vadd.f32 %v2086, %v2166
        %v2231 = vadd.f32 %v2087, %v2167
        %v2232 = vadd.f32 %v2088, %v2168
        %v2233 = vadd.f32 %v2089, %v2169
        %v2234 = vadd.f32 %v2090, %v2170
        %v2235 = vadd.f32 %v2091, %v2171
        %v2236 = vadd.f32 %v2092, %v2172
        %v2237 = vadd.f32 %v2093, %v2173
        %v2238 = vadd.f32 %v2094, %v2174
        %v2239 = vadd.f32 %v2095, %v2175
        %v2240 = vadd.f32 %v2096, %v2176
        %v2241 = vadd.f32 %v2097, %v2177
        %v2242 = vadd.f32 %v2098, %v2178
        %v2243 = vadd.f32 %v2099, %v2179
        %v2244 = vadd.f32 %v2100, %v2180
        %v2245 = vadd.f32 %v2101, %v2181
        %v2246 = vadd.f32 %v2102, %v2182
        %v2247 = vadd.f32 %v2103, %v2183
        %v2248 = vadd.f32 %v2104, %v2184
        %v2249 = vadd.f32 %v2105, %v2185
        %v2250 = vadd.f32 %v2106, %v2186
        %v2251 = vadd.f32 %v2107, %v2187
        %v2252 = vadd.f32 %v2108, %v2188
        %v2253 = vadd.f32 %v2109, %v2189
        %v2254 = vadd.f32 %v2110, %v2190
        %v2255 = vadd.f32 %v2111, %v2191
        %v2256 = vadd.f32 %v2112, %v2192
        %v2257 = vadd.f32 %v2113, %v2193
        %v2258 = vadd.f32 %v2114, %v2194
        %v2259 = vadd.f32 %v2115, %v2195
        %v2260 = vadd.f32 %v2116, %v2196
        %v2261 = vadd.f32 %v2117, %v2197
        %v2262 = vadd.f32 %v2118, %v2198
        %v2263 = vadd.f32 %v2119, %v2199
        %v2264 = vadd.f32 %v2120, %v2200
        %v2265 = vadd.f32 %v2121, %v2201
        %v2266 = vadd.f32 %v2122, %v2202
        %v2267 = vadd.f32 %v2123, %v2203
        %v2268 = vadd.f32 %v2124, %v2204
        %v2269 = vadd.f32 %v2125, %v2205
        %v2270 = vadd.f32 %v2126, %v2206
        %v2271 = vadd.f32 %v2127, %v2207
        %2272 = vset.pattern.permute.xlu0 2
        %2273 = vperm.xlu0 %2272, %v1976
        %v2274 = vpop.permute.xlu0 %2273
        %2276 = vset.pattern.permute.xlu0 2
        %2277 = vperm.xlu0 %2276, %v1977
        %v2278 = vpop.permute.xlu0 %2277
        %2280 = vset.pattern.permute.xlu0 2
        %2281 = vperm.xlu0 %2280, %v1978
        %v2282 = vpop.permute.xlu0 %2281
        %2284 = vset.pattern.permute.xlu0 2
        %2285 = vperm.xlu0 %2284, %v1979
        %v2286 = vpop.permute.xlu0 %2285
        %v2288 = vmul.f32 %v2274, %v1960
        %v2289 = vmul.f32 %v2274, %v1961
        %v2290 = vmul.f32 %v2274, %v1962
        %v2291 = vmul.f32 %v2274, %v1963
        %v2292 = vmul.f32 %v2274, %v1964
        %v2293 = vmul.f32 %v2274, %v1965
        %v2294 = vmul.f32 %v2274, %v1966
        %v2295 = vmul.f32 %v2274, %v1967
        %v2296 = vmul.f32 %v2274, %v1968
        %v2297 = vmul.f32 %v2274, %v1969
        %v2298 = vmul.f32 %v2274, %v1970
        %v2299 = vmul.f32 %v2274, %v1971
        %v2300 = vmul.f32 %v2274, %v1972
        %v2301 = vmul.f32 %v2274, %v1973
        %v2302 = vmul.f32 %v2274, %v1974
        %v2303 = vmul.f32 %v2274, %v1975
        %v2304 = vmul.f32 %v2278, %v1960
        %v2305 = vmul.f32 %v2278, %v1961
        %v2306 = vmul.f32 %v2278, %v1962
        %v2307 = vmul.f32 %v2278, %v1963
        %v2308 = vmul.f32 %v2278, %v1964
        %v2309 = vmul.f32 %v2278, %v1965
        %v2310 = vmul.f32 %v2278, %v1966
        %v2311 = vmul.f32 %v2278, %v1967
        %v2312 = vmul.f32 %v2278, %v1968
        %v2313 = vmul.f32 %v2278, %v1969
        %v2314 = vmul.f32 %v2278, %v1970
        %v2315 = vmul.f32 %v2278, %v1971
        %v2316 = vmul.f32 %v2278, %v1972
        %v2317 = vmul.f32 %v2278, %v1973
        %v2318 = vmul.f32 %v2278, %v1974
        %v2319 = vmul.f32 %v2278, %v1975
        %v2320 = vmul.f32 %v2282, %v1960
        %v2321 = vmul.f32 %v2282, %v1961
        %v2322 = vmul.f32 %v2282, %v1962
        %v2323 = vmul.f32 %v2282, %v1963
        %v2324 = vmul.f32 %v2282, %v1964
        %v2325 = vmul.f32 %v2282, %v1965
        %v2326 = vmul.f32 %v2282, %v1966
        %v2327 = vmul.f32 %v2282, %v1967
        %v2328 = vmul.f32 %v2282, %v1968
        %v2329 = vmul.f32 %v2282, %v1969
        %v2330 = vmul.f32 %v2282, %v1970
        %v2331 = vmul.f32 %v2282, %v1971
        %v2332 = vmul.f32 %v2282, %v1972
        %v2333 = vmul.f32 %v2282, %v1973
        %v2334 = vmul.f32 %v2282, %v1974
        %v2335 = vmul.f32 %v2282, %v1975
        %v2336 = vmul.f32 %v2286, %v1960
        %v2337 = vmul.f32 %v2286, %v1961
        %v2338 = vmul.f32 %v2286, %v1962
        %v2339 = vmul.f32 %v2286, %v1963
        %v2340 = vmul.f32 %v2286, %v1964
        %v2341 = vmul.f32 %v2286, %v1965
        %v2342 = vmul.f32 %v2286, %v1966
        %v2343 = vmul.f32 %v2286, %v1967
        %v2344 = vmul.f32 %v2286, %v1968
        %v2345 = vmul.f32 %v2286, %v1969
        %v2346 = vmul.f32 %v2286, %v1970
        %v2347 = vmul.f32 %v2286, %v1971
        %v2348 = vmul.f32 %v2286, %v1972
        %v2349 = vmul.f32 %v2286, %v1973
        %v2350 = vmul.f32 %v2286, %v1974
        %v2351 = vmul.f32 %v2286, %v1975
        %v2352 = vadd.f32 %v2208, %v2288
        %v2353 = vadd.f32 %v2209, %v2289
        %v2354 = vadd.f32 %v2210, %v2290
        %v2355 = vadd.f32 %v2211, %v2291
        %v2356 = vadd.f32 %v2212, %v2292
        %v2357 = vadd.f32 %v2213, %v2293
        %v2358 = vadd.f32 %v2214, %v2294
        %v2359 = vadd.f32 %v2215, %v2295
        %v2360 = vadd.f32 %v2216, %v2296
        %v2361 = vadd.f32 %v2217, %v2297
        %v2362 = vadd.f32 %v2218, %v2298
        %v2363 = vadd.f32 %v2219, %v2299
        %v2364 = vadd.f32 %v2220, %v2300
        %v2365 = vadd.f32 %v2221, %v2301
        %v2366 = vadd.f32 %v2222, %v2302
        %v2367 = vadd.f32 %v2223, %v2303
        %v2368 = vadd.f32 %v2224, %v2304
        %v2369 = vadd.f32 %v2225, %v2305
        %v2370 = vadd.f32 %v2226, %v2306
        %v2371 = vadd.f32 %v2227, %v2307
        %v2372 = vadd.f32 %v2228, %v2308
        %v2373 = vadd.f32 %v2229, %v2309
        %v2374 = vadd.f32 %v2230, %v2310
        %v2375 = vadd.f32 %v2231, %v2311
        %v2376 = vadd.f32 %v2232, %v2312
        %v2377 = vadd.f32 %v2233, %v2313
        %v2378 = vadd.f32 %v2234, %v2314
        %v2379 = vadd.f32 %v2235, %v2315
        %v2380 = vadd.f32 %v2236, %v2316
        %v2381 = vadd.f32 %v2237, %v2317
        %v2382 = vadd.f32 %v2238, %v2318
        %v2383 = vadd.f32 %v2239, %v2319
        %v2384 = vadd.f32 %v2240, %v2320
        %v2385 = vadd.f32 %v2241, %v2321
        %v2386 = vadd.f32 %v2242, %v2322
        %v2387 = vadd.f32 %v2243, %v2323
        %v2388 = vadd.f32 %v2244, %v2324
        %v2389 = vadd.f32 %v2245, %v2325
        %v2390 = vadd.f32 %v2246, %v2326
        %v2391 = vadd.f32 %v2247, %v2327
        %v2392 = vadd.f32 %v2248, %v2328
        %v2393 = vadd.f32 %v2249, %v2329
        %v2394 = vadd.f32 %v2250, %v2330
        %v2395 = vadd.f32 %v2251, %v2331
        %v2396 = vadd.f32 %v2252, %v2332
        %v2397 = vadd.f32 %v2253, %v2333
        %v2398 = vadd.f32 %v2254, %v2334
        %v2399 = vadd.f32 %v2255, %v2335
        %v2400 = vadd.f32 %v2256, %v2336
        %v2401 = vadd.f32 %v2257, %v2337
        %v2402 = vadd.f32 %v2258, %v2338
        %v2403 = vadd.f32 %v2259, %v2339
        %v2404 = vadd.f32 %v2260, %v2340
        %v2405 = vadd.f32 %v2261, %v2341
        %v2406 = vadd.f32 %v2262, %v2342
        %v2407 = vadd.f32 %v2263, %v2343
        %v2408 = vadd.f32 %v2264, %v2344
        %v2409 = vadd.f32 %v2265, %v2345
        %v2410 = vadd.f32 %v2266, %v2346
        %v2411 = vadd.f32 %v2267, %v2347
        %v2412 = vadd.f32 %v2268, %v2348
        %v2413 = vadd.f32 %v2269, %v2349
        %v2414 = vadd.f32 %v2270, %v2350
        %v2415 = vadd.f32 %v2271, %v2351
        %v2416 = vld [vmem:[#allocation6] sm:$0xff]
        %v2417 = vld [vmem:[#allocation6 + $0x8] sm:$0xff]
        %v2418 = vld [vmem:[#allocation6 + $0x10] sm:$0xff]
        %v2419 = vld [vmem:[#allocation6 + $0x18] sm:$0xff]
        %2421 = vset.pattern.permute.xlu0 0
        %2422 = vperm.xlu0 %2421, %v2416
        %v2423 = vpop.permute.xlu0 %2422
        %2426 = vset.pattern.permute.xlu0 0
        %2427 = vperm.xlu0 %2426, %v2417
        %v2428 = vpop.permute.xlu0 %2427
        %2431 = vset.pattern.permute.xlu0 0
        %2432 = vperm.xlu0 %2431, %v2418
        %v2433 = vpop.permute.xlu0 %2432
        %2436 = vset.pattern.permute.xlu0 0
        %2437 = vperm.xlu0 %2436, %v2419
        %v2438 = vpop.permute.xlu0 %2437
        %v2440 = vadd.f32 %v2352, %v2423
        %v2441 = vadd.f32 %v2353, %v2423
        %v2442 = vadd.f32 %v2354, %v2423
        %v2443 = vadd.f32 %v2355, %v2423
        %v2444 = vadd.f32 %v2356, %v2423
        %v2445 = vadd.f32 %v2357, %v2423
        %v2446 = vadd.f32 %v2358, %v2423
        %v2447 = vadd.f32 %v2359, %v2423
        %v2448 = vadd.f32 %v2360, %v2423
        %v2449 = vadd.f32 %v2361, %v2423
        %v2450 = vadd.f32 %v2362, %v2423
        %v2451 = vadd.f32 %v2363, %v2423
        %v2452 = vadd.f32 %v2364, %v2423
        %v2453 = vadd.f32 %v2365, %v2423
        %v2454 = vadd.f32 %v2366, %v2423
        %v2455 = vadd.f32 %v2367, %v2423
        %v2456 = vadd.f32 %v2368, %v2428
        %v2457 = vadd.f32 %v2369, %v2428
        %v2458 = vadd.f32 %v2370, %v2428
        %v2459 = vadd.f32 %v2371, %v2428
        %v2460 = vadd.f32 %v2372, %v2428
        %v2461 = vadd.f32 %v2373, %v2428
        %v2462 = vadd.f32 %v2374, %v2428
        %v2463 = vadd.f32 %v2375, %v2428
        %v2464 = vadd.f32 %v2376, %v2428
        %v2465 = vadd.f32 %v2377, %v2428
        %v2466 = vadd.f32 %v2378, %v2428
        %v2467 = vadd.f32 %v2379, %v2428
        %v2468 = vadd.f32 %v2380, %v2428
        %v2469 = vadd.f32 %v2381, %v2428
        %v2470 = vadd.f32 %v2382, %v2428
        %v2471 = vadd.f32 %v2383, %v2428
        %v2472 = vadd.f32 %v2384, %v2433
        %v2473 = vadd.f32 %v2385, %v2433
        %v2474 = vadd.f32 %v2386, %v2433
        %v2475 = vadd.f32 %v2387, %v2433
        %v2476 = vadd.f32 %v2388, %v2433
        %v2477 = vadd.f32 %v2389, %v2433
        %v2478 = vadd.f32 %v2390, %v2433
        %v2479 = vadd.f32 %v2391, %v2433
        %v2480 = vadd.f32 %v2392, %v2433
        %v2481 = vadd.f32 %v2393, %v2433
        %v2482 = vadd.f32 %v2394, %v2433
        %v2483 = vadd.f32 %v2395, %v2433
        %v2484 = vadd.f32 %v2396, %v2433
        %v2485 = vadd.f32 %v2397, %v2433
        %v2486 = vadd.f32 %v2398, %v2433
        %v2487 = vadd.f32 %v2399, %v2433
        %v2488 = vadd.f32 %v2400, %v2438
        %v2489 = vadd.f32 %v2401, %v2438
        %v2490 = vadd.f32 %v2402, %v2438
        %v2491 = vadd.f32 %v2403, %v2438
        %v2492 = vadd.f32 %v2404, %v2438
        %v2493 = vadd.f32 %v2405, %v2438
        %v2494 = vadd.f32 %v2406, %v2438
        %v2495 = vadd.f32 %v2407, %v2438
        %v2496 = vadd.f32 %v2408, %v2438
        %v2497 = vadd.f32 %v2409, %v2438
        %v2498 = vadd.f32 %v2410, %v2438
        %v2499 = vadd.f32 %v2411, %v2438
        %v2500 = vadd.f32 %v2412, %v2438
        %v2501 = vadd.f32 %v2413, %v2438
        %v2502 = vadd.f32 %v2414, %v2438
        %v2503 = vadd.f32 %v2415, %v2438
        %v2504 = vsub.f32 0.0, %v2440
        %v2505 = vsub.f32 0.0, %v2441
        %v2506 = vsub.f32 0.0, %v2442
        %v2507 = vsub.f32 0.0, %v2443
        %v2508 = vsub.f32 0.0, %v2444
        %v2509 = vsub.f32 0.0, %v2445
        %v2510 = vsub.f32 0.0, %v2446
        %v2511 = vsub.f32 0.0, %v2447
        %v2512 = vsub.f32 0.0, %v2448
        %v2513 = vsub.f32 0.0, %v2449
        %v2514 = vsub.f32 0.0, %v2450
        %v2515 = vsub.f32 0.0, %v2451
        %v2516 = vsub.f32 0.0, %v2452
        %v2517 = vsub.f32 0.0, %v2453
        %v2518 = vsub.f32 0.0, %v2454
        %v2519 = vsub.f32 0.0, %v2455
        %v2520 = vsub.f32 0.0, %v2456
        %v2521 = vsub.f32 0.0, %v2457
        %v2522 = vsub.f32 0.0, %v2458
        %v2523 = vsub.f32 0.0, %v2459
        %v2524 = vsub.f32 0.0, %v2460
        %v2525 = vsub.f32 0.0, %v2461
        %v2526 = vsub.f32 0.0, %v2462
        %v2527 = vsub.f32 0.0, %v2463
        %v2528 = vsub.f32 0.0, %v2464
        %v2529 = vsub.f32 0.0, %v2465
        %v2530 = vsub.f32 0.0, %v2466
        %v2531 = vsub.f32 0.0, %v2467
        %v2532 = vsub.f32 0.0, %v2468
        %v2533 = vsub.f32 0.0, %v2469
        %v2534 = vsub.f32 0.0, %v2470
        %v2535 = vsub.f32 0.0, %v2471
        %v2536 = vsub.f32 0.0, %v2472
        %v2537 = vsub.f32 0.0, %v2473
        %v2538 = vsub.f32 0.0, %v2474
        %v2539 = vsub.f32 0.0, %v2475
        %v2540 = vsub.f32 0.0, %v2476
        %v2541 = vsub.f32 0.0, %v2477
        %v2542 = vsub.f32 0.0, %v2478
        %v2543 = vsub.f32 0.0, %v2479
        %v2544 = vsub.f32 0.0, %v2480
        %v2545 = vsub.f32 0.0, %v2481
        %v2546 = vsub.f32 0.0, %v2482
        %v2547 = vsub.f32 0.0, %v2483
        %v2548 = vsub.f32 0.0, %v2484
        %v2549 = vsub.f32 0.0, %v2485
        %v2550 = vsub.f32 0.0, %v2486
        %v2551 = vsub.f32 0.0, %v2487
        %v2552 = vsub.f32 0.0, %v2488
        %v2553 = vsub.f32 0.0, %v2489
        %v2554 = vsub.f32 0.0, %v2490
        %v2555 = vsub.f32 0.0, %v2491
        %v2556 = vsub.f32 0.0, %v2492
        %v2557 = vsub.f32 0.0, %v2493
        %v2558 = vsub.f32 0.0, %v2494
        %v2559 = vsub.f32 0.0, %v2495
        %v2560 = vsub.f32 0.0, %v2496
        %v2561 = vsub.f32 0.0, %v2497
        %v2562 = vsub.f32 0.0, %v2498
        %v2563 = vsub.f32 0.0, %v2499
        %v2564 = vsub.f32 0.0, %v2500
        %v2565 = vsub.f32 0.0, %v2501
        %v2566 = vsub.f32 0.0, %v2502
        %v2567 = vsub.f32 0.0, %v2503
        %v2568 = vmul.f32 %v2504, 1.442695
        %v2569 = vpow.pop %v2568
        %v2570 = vmul.f32 %v2505, 1.442695
        %v2571 = vpow.pop %v2570
        %v2572 = vmul.f32 %v2506, 1.442695
        %v2573 = vpow.pop %v2572
        %v2574 = vmul.f32 %v2507, 1.442695
        %v2575 = vpow.pop %v2574
        %v2576 = vmul.f32 %v2508, 1.442695
        %v2577 = vpow.pop %v2576
        %v2578 = vmul.f32 %v2509, 1.442695
        %v2579 = vpow.pop %v2578
        %v2580 = vmul.f32 %v2510, 1.442695
        %v2581 = vpow.pop %v2580
        %v2582 = vmul.f32 %v2511, 1.442695
        %v2583 = vpow.pop %v2582
        %v2584 = vmul.f32 %v2512, 1.442695
        %v2585 = vpow.pop %v2584
        %v2586 = vmul.f32 %v2513, 1.442695
        %v2587 = vpow.pop %v2586
        %v2588 = vmul.f32 %v2514, 1.442695
        %v2589 = vpow.pop %v2588
        %v2590 = vmul.f32 %v2515, 1.442695
        %v2591 = vpow.pop %v2590
        %v2592 = vmul.f32 %v2516, 1.442695
        %v2593 = vpow.pop %v2592
        %v2594 = vmul.f32 %v2517, 1.442695
        %v2595 = vpow.pop %v2594
        %v2596 = vmul.f32 %v2518, 1.442695
        %v2597 = vpow.pop %v2596
        %v2598 = vmul.f32 %v2519, 1.442695
        %v2599 = vpow.pop %v2598
        %v2600 = vmul.f32 %v2520, 1.442695
        %v2601 = vpow.pop %v2600
        %v2602 = vmul.f32 %v2521, 1.442695
        %v2603 = vpow.pop %v2602
        %v2604 = vmul.f32 %v2522, 1.442695
        %v2605 = vpow.pop %v2604
        %v2606 = vmul.f32 %v2523, 1.442695
        %v2607 = vpow.pop %v2606
        %v2608 = vmul.f32 %v2524, 1.442695
        %v2609 = vpow.pop %v2608
        %v2610 = vmul.f32 %v2525, 1.442695
        %v2611 = vpow.pop %v2610
        %v2612 = vmul.f32 %v2526, 1.442695
        %v2613 = vpow.pop %v2612
        %v2614 = vmul.f32 %v2527, 1.442695
        %v2615 = vpow.pop %v2614
        %v2616 = vmul.f32 %v2528, 1.442695
        %v2617 = vpow.pop %v2616
        %v2618 = vmul.f32 %v2529, 1.442695
        %v2619 = vpow.pop %v2618
        %v2620 = vmul.f32 %v2530, 1.442695
        %v2621 = vpow.pop %v2620
        %v2622 = vmul.f32 %v2531, 1.442695
        %v2623 = vpow.pop %v2622
        %v2624 = vmul.f32 %v2532, 1.442695
        %v2625 = vpow.pop %v2624
        %v2626 = vmul.f32 %v2533, 1.442695
        %v2627 = vpow.pop %v2626
        %v2628 = vmul.f32 %v2534, 1.442695
        %v2629 = vpow.pop %v2628
        %v2630 = vmul.f32 %v2535, 1.442695
        %v2631 = vpow.pop %v2630
        %v2632 = vmul.f32 %v2536, 1.442695
        %v2633 = vpow.pop %v2632
        %v2634 = vmul.f32 %v2537, 1.442695
        %v2635 = vpow.pop %v2634
        %v2636 = vmul.f32 %v2538, 1.442695
        %v2637 = vpow.pop %v2636
        %v2638 = vmul.f32 %v2539, 1.442695
        %v2639 = vpow.pop %v2638
        %v2640 = vmul.f32 %v2540, 1.442695
        %v2641 = vpow.pop %v2640
        %v2642 = vmul.f32 %v2541, 1.442695
        %v2643 = vpow.pop %v2642
        %v2644 = vmul.f32 %v2542, 1.442695
        %v2645 = vpow.pop %v2644
        %v2646 = vmul.f32 %v2543, 1.442695
        %v2647 = vpow.pop %v2646
        %v2648 = vmul.f32 %v2544, 1.442695
        %v2649 = vpow.pop %v2648
        %v2650 = vmul.f32 %v2545, 1.442695
        %v2651 = vpow.pop %v2650
        %v2652 = vmul.f32 %v2546, 1.442695
        %v2653 = vpow.pop %v2652
        %v2654 = vmul.f32 %v2547, 1.442695
        %v2655 = vpow.pop %v2654
        %v2656 = vmul.f32 %v2548, 1.442695
        %v2657 = vpow.pop %v2656
        %v2658 = vmul.f32 %v2549, 1.442695
        %v2659 = vpow.pop %v2658
        %v2660 = vmul.f32 %v2550, 1.442695
        %v2661 = vpow.pop %v2660
        %v2662 = vmul.f32 %v2551, 1.442695
        %v2663 = vpow.pop %v2662
        %v2664 = vmul.f32 %v2552, 1.442695
        %v2665 = vpow.pop %v2664
        %v2666 = vmul.f32 %v2553, 1.442695
        %v2667 = vpow.pop %v2666
        %v2668 = vmul.f32 %v2554, 1.442695
        %v2669 = vpow.pop %v2668
        %v2670 = vmul.f32 %v2555, 1.442695
        %v2671 = vpow.pop %v2670
        %v2672 = vmul.f32 %v2556, 1.442695
        %v2673 = vpow.pop %v2672
        %v2674 = vmul.f32 %v2557, 1.442695
        %v2675 = vpow.pop %v2674
        %v2676 = vmul.f32 %v2558, 1.442695
        %v2677 = vpow.pop %v2676
        %v2678 = vmul.f32 %v2559, 1.442695
        %v2679 = vpow.pop %v2678
        %v2680 = vmul.f32 %v2560, 1.442695
        %v2681 = vpow.pop %v2680
        %v2682 = vmul.f32 %v2561, 1.442695
        %v2683 = vpow.pop %v2682
        %v2684 = vmul.f32 %v2562, 1.442695
        %v2685 = vpow.pop %v2684
        %v2686 = vmul.f32 %v2563, 1.442695
        %v2687 = vpow.pop %v2686
        %v2688 = vmul.f32 %v2564, 1.442695
        %v2689 = vpow.pop %v2688
        %v2690 = vmul.f32 %v2565, 1.442695
        %v2691 = vpow.pop %v2690
        %v2692 = vmul.f32 %v2566, 1.442695
        %v2693 = vpow.pop %v2692
        %v2694 = vmul.f32 %v2567, 1.442695
        %v2695 = vpow.pop %v2694
        %v2696 = vadd.f32 %v2569, 1.0
        %v2697 = vadd.f32 %v2571, 1.0
        %v2698 = vadd.f32 %v2573, 1.0
        %v2699 = vadd.f32 %v2575, 1.0
        %v2700 = vadd.f32 %v2577, 1.0
        %v2701 = vadd.f32 %v2579, 1.0
        %v2702 = vadd.f32 %v2581, 1.0
        %v2703 = vadd.f32 %v2583, 1.0
        %v2704 = vadd.f32 %v2585, 1.0
        %v2705 = vadd.f32 %v2587, 1.0
        %v2706 = vadd.f32 %v2589, 1.0
        %v2707 = vadd.f32 %v2591, 1.0
        %v2708 = vadd.f32 %v2593, 1.0
        %v2709 = vadd.f32 %v2595, 1.0
        %v2710 = vadd.f32 %v2597, 1.0
        %v2711 = vadd.f32 %v2599, 1.0
        %v2712 = vadd.f32 %v2601, 1.0
        %v2713 = vadd.f32 %v2603, 1.0
        %v2714 = vadd.f32 %v2605, 1.0
        %v2715 = vadd.f32 %v2607, 1.0
        %v2716 = vadd.f32 %v2609, 1.0
        %v2717 = vadd.f32 %v2611, 1.0
        %v2718 = vadd.f32 %v2613, 1.0
        %v2719 = vadd.f32 %v2615, 1.0
        %v2720 = vadd.f32 %v2617, 1.0
        %v2721 = vadd.f32 %v2619, 1.0
        %v2722 = vadd.f32 %v2621, 1.0
        %v2723 = vadd.f32 %v2623, 1.0
        %v2724 = vadd.f32 %v2625, 1.0
        %v2725 = vadd.f32 %v2627, 1.0
        %v2726 = vadd.f32 %v2629, 1.0
        %v2727 = vadd.f32 %v2631, 1.0
        %v2728 = vadd.f32 %v2633, 1.0
        %v2729 = vadd.f32 %v2635, 1.0
        %v2730 = vadd.f32 %v2637, 1.0
        %v2731 = vadd.f32 %v2639, 1.0
        %v2732 = vadd.f32 %v2641, 1.0
        %v2733 = vadd.f32 %v2643, 1.0
        %v2734 = vadd.f32 %v2645, 1.0
        %v2735 = vadd.f32 %v2647, 1.0
        %v2736 = vadd.f32 %v2649, 1.0
        %v2737 = vadd.f32 %v2651, 1.0
        %v2738 = vadd.f32 %v2653, 1.0
        %v2739 = vadd.f32 %v2655, 1.0
        %v2740 = vadd.f32 %v2657, 1.0
        %v2741 = vadd.f32 %v2659, 1.0
        %v2742 = vadd.f32 %v2661, 1.0
        %v2743 = vadd.f32 %v2663, 1.0
        %v2744 = vadd.f32 %v2665, 1.0
        %v2745 = vadd.f32 %v2667, 1.0
        %v2746 = vadd.f32 %v2669, 1.0
        %v2747 = vadd.f32 %v2671, 1.0
        %v2748 = vadd.f32 %v2673, 1.0
        %v2749 = vadd.f32 %v2675, 1.0
        %v2750 = vadd.f32 %v2677, 1.0
        %v2751 = vadd.f32 %v2679, 1.0
        %v2752 = vadd.f32 %v2681, 1.0
        %v2753 = vadd.f32 %v2683, 1.0
        %v2754 = vadd.f32 %v2685, 1.0
        %v2755 = vadd.f32 %v2687, 1.0
        %v2756 = vadd.f32 %v2689, 1.0
        %v2757 = vadd.f32 %v2691, 1.0
        %v2758 = vadd.f32 %v2693, 1.0
        %v2759 = vadd.f32 %v2695, 1.0
        %v2760 = vrcp.pop %v2696
        %v2761 = vmul.f32 %v2440, %v2760
        %v2762 = vrcp.pop %v2697
        %v2763 = vmul.f32 %v2441, %v2762
        %v2764 = vrcp.pop %v2698
        %v2765 = vmul.f32 %v2442, %v2764
        %v2766 = vrcp.pop %v2699
        %v2767 = vmul.f32 %v2443, %v2766
        %v2768 = vrcp.pop %v2700
        %v2769 = vmul.f32 %v2444, %v2768
        %v2770 = vrcp.pop %v2701
        %v2771 = vmul.f32 %v2445, %v2770
        %v2772 = vrcp.pop %v2702
        %v2773 = vmul.f32 %v2446, %v2772
        %v2774 = vrcp.pop %v2703
        %v2775 = vmul.f32 %v2447, %v2774
        %v2776 = vrcp.pop %v2704
        %v2777 = vmul.f32 %v2448, %v2776
        %v2778 = vrcp.pop %v2705
        %v2779 = vmul.f32 %v2449, %v2778
        %v2780 = vrcp.pop %v2706
        %v2781 = vmul.f32 %v2450, %v2780
        %v2782 = vrcp.pop %v2707
        %v2783 = vmul.f32 %v2451, %v2782
        %v2784 = vrcp.pop %v2708
        %v2785 = vmul.f32 %v2452, %v2784
        %v2786 = vrcp.pop %v2709
        %v2787 = vmul.f32 %v2453, %v2786
        %v2788 = vrcp.pop %v2710
        %v2789 = vmul.f32 %v2454, %v2788
        %v2790 = vrcp.pop %v2711
        %v2791 = vmul.f32 %v2455, %v2790
        %v2792 = vrcp.pop %v2712
        %v2793 = vmul.f32 %v2456, %v2792
        %v2794 = vrcp.pop %v2713
        %v2795 = vmul.f32 %v2457, %v2794
        %v2796 = vrcp.pop %v2714
        %v2797 = vmul.f32 %v2458, %v2796
        %v2798 = vrcp.pop %v2715
        %v2799 = vmul.f32 %v2459, %v2798
        %v2800 = vrcp.pop %v2716
        %v2801 = vmul.f32 %v2460, %v2800
        %v2802 = vrcp.pop %v2717
        %v2803 = vmul.f32 %v2461, %v2802
        %v2804 = vrcp.pop %v2718
        %v2805 = vmul.f32 %v2462, %v2804
        %v2806 = vrcp.pop %v2719
        %v2807 = vmul.f32 %v2463, %v2806
        %v2808 = vrcp.pop %v2720
        %v2809 = vmul.f32 %v2464, %v2808
        %v2810 = vrcp.pop %v2721
        %v2811 = vmul.f32 %v2465, %v2810
        %v2812 = vrcp.pop %v2722
        %v2813 = vmul.f32 %v2466, %v2812
        %v2814 = vrcp.pop %v2723
        %v2815 = vmul.f32 %v2467, %v2814
        %v2816 = vrcp.pop %v2724
        %v2817 = vmul.f32 %v2468, %v2816
        %v2818 = vrcp.pop %v2725
        %v2819 = vmul.f32 %v2469, %v2818
        %v2820 = vrcp.pop %v2726
        %v2821 = vmul.f32 %v2470, %v2820
        %v2822 = vrcp.pop %v2727
        %v2823 = vmul.f32 %v2471, %v2822
        %v2824 = vrcp.pop %v2728
        %v2825 = vmul.f32 %v2472, %v2824
        %v2826 = vrcp.pop %v2729
        %v2827 = vmul.f32 %v2473, %v2826
        %v2828 = vrcp.pop %v2730
        %v2829 = vmul.f32 %v2474, %v2828
        %v2830 = vrcp.pop %v2731
        %v2831 = vmul.f32 %v2475, %v2830
        %v2832 = vrcp.pop %v2732
        %v2833 = vmul.f32 %v2476, %v2832
        %v2834 = vrcp.pop %v2733
        %v2835 = vmul.f32 %v2477, %v2834
        %v2836 = vrcp.pop %v2734
        %v2837 = vmul.f32 %v2478, %v2836
        %v2838 = vrcp.pop %v2735
        %v2839 = vmul.f32 %v2479, %v2838
        %v2840 = vrcp.pop %v2736
        %v2841 = vmul.f32 %v2480, %v2840
        %v2842 = vrcp.pop %v2737
        %v2843 = vmul.f32 %v2481, %v2842
        %v2844 = vrcp.pop %v2738
        %v2845 = vmul.f32 %v2482, %v2844
        %v2846 = vrcp.pop %v2739
        %v2847 = vmul.f32 %v2483, %v2846
        %v2848 = vrcp.pop %v2740
        %v2849 = vmul.f32 %v2484, %v2848
        %v2850 = vrcp.pop %v2741
        %v2851 = vmul.f32 %v2485, %v2850
        %v2852 = vrcp.pop %v2742
        %v2853 = vmul.f32 %v2486, %v2852
        %v2854 = vrcp.pop %v2743
        %v2855 = vmul.f32 %v2487, %v2854
        %v2856 = vrcp.pop %v2744
        %v2857 = vmul.f32 %v2488, %v2856
        %v2858 = vrcp.pop %v2745
        %v2859 = vmul.f32 %v2489, %v2858
        %v2860 = vrcp.pop %v2746
        %v2861 = vmul.f32 %v2490, %v2860
        %v2862 = vrcp.pop %v2747
        %v2863 = vmul.f32 %v2491, %v2862
        %v2864 = vrcp.pop %v2748
        %v2865 = vmul.f32 %v2492, %v2864
        %v2866 = vrcp.pop %v2749
        %v2867 = vmul.f32 %v2493, %v2866
        %v2868 = vrcp.pop %v2750
        %v2869 = vmul.f32 %v2494, %v2868
        %v2870 = vrcp.pop %v2751
        %v2871 = vmul.f32 %v2495, %v2870
        %v2872 = vrcp.pop %v2752
        %v2873 = vmul.f32 %v2496, %v2872
        %v2874 = vrcp.pop %v2753
        %v2875 = vmul.f32 %v2497, %v2874
        %v2876 = vrcp.pop %v2754
        %v2877 = vmul.f32 %v2498, %v2876
        %v2878 = vrcp.pop %v2755
        %v2879 = vmul.f32 %v2499, %v2878
        %v2880 = vrcp.pop %v2756
        %v2881 = vmul.f32 %v2500, %v2880
        %v2882 = vrcp.pop %v2757
        %v2883 = vmul.f32 %v2501, %v2882
        %v2884 = vrcp.pop %v2758
        %v2885 = vmul.f32 %v2502, %v2884
        %v2886 = vrcp.pop %v2759
        %v2887 = vmul.f32 %v2503, %v2886
        %2888 = vst [vmem:[%s255] sm:$0xff] %v2761
        %2889 = vst [vmem:[%s255 + $0x8] sm:$0xff] %v2763
        %2890 = vst [vmem:[%s255 + $0x10] sm:$0xff] %v2765
        %2891 = vst [vmem:[%s255 + $0x18] sm:$0xff] %v2767
        %2892 = vst [vmem:[%s255 + $0x20] sm:$0xff] %v2769
        %2893 = vst [vmem:[%s255 + $0x28] sm:$0xff] %v2771
        %2894 = vst [vmem:[%s255 + $0x30] sm:$0xff] %v2773
        %2895 = vst [vmem:[%s255 + $0x38] sm:$0xff] %v2775
        %2896 = vst [vmem:[%s255 + $0x40] sm:$0xff] %v2777
        %2897 = vst [vmem:[%s255 + $0x48] sm:$0xff] %v2779
        %2898 = vst [vmem:[%s255 + $0x50] sm:$0xff] %v2781
        %2899 = vst [vmem:[%s255 + $0x58] sm:$0xff] %v2783
        %2900 = vst [vmem:[%s255 + $0x60] sm:$0xff] %v2785
        %2901 = vst [vmem:[%s255 + $0x68] sm:$0xff] %v2787
        %2902 = vst [vmem:[%s255 + $0x70] sm:$0xff] %v2789
        %2903 = vst [vmem:[%s255 + $0x78] sm:$0xff] %v2791
        %2904 = vst [vmem:[%s255 + $0x80] sm:$0xff] %v2793
        %2905 = vst [vmem:[%s255 + $0x88] sm:$0xff] %v2795
        %2906 = vst [vmem:[%s255 + $0x90] sm:$0xff] %v2797
        %2907 = vst [vmem:[%s255 + $0x98] sm:$0xff] %v2799
        %2908 = vst [vmem:[%s255 + $0xa0] sm:$0xff] %v2801
        %2909 = vst [vmem:[%s255 + $0xa8] sm:$0xff] %v2803
        %2910 = vst [vmem:[%s255 + $0xb0] sm:$0xff] %v2805
        %2911 = vst [vmem:[%s255 + $0xb8] sm:$0xff] %v2807
        %2912 = vst [vmem:[%s255 + $0xc0] sm:$0xff] %v2809
        %2913 = vst [vmem:[%s255 + $0xc8] sm:$0xff] %v2811
        %2914 = vst [vmem:[%s255 + $0xd0] sm:$0xff] %v2813
        %2915 = vst [vmem:[%s255 + $0xd8] sm:$0xff] %v2815
        %2916 = vst [vmem:[%s255 + $0xe0] sm:$0xff] %v2817
        %2917 = vst [vmem:[%s255 + $0xe8] sm:$0xff] %v2819
        %2918 = vst [vmem:[%s255 + $0xf0] sm:$0xff] %v2821
        %2919 = vst [vmem:[%s255 + $0xf8] sm:$0xff] %v2823
        %2920 = vst [vmem:[%s255 + $0x100] sm:$0xff] %v2825
        %2921 = vst [vmem:[%s255 + $0x108] sm:$0xff] %v2827
        %2922 = vst [vmem:[%s255 + $0x110] sm:$0xff] %v2829
        %2923 = vst [vmem:[%s255 + $0x118] sm:$0xff] %v2831
        %2924 = vst [vmem:[%s255 + $0x120] sm:$0xff] %v2833
        %2925 = vst [vmem:[%s255 + $0x128] sm:$0xff] %v2835
        %2926 = vst [vmem:[%s255 + $0x130] sm:$0xff] %v2837
        %2927 = vst [vmem:[%s255 + $0x138] sm:$0xff] %v2839
        %2928 = vst [vmem:[%s255 + $0x140] sm:$0xff] %v2841
        %2929 = vst [vmem:[%s255 + $0x148] sm:$0xff] %v2843
        %2930 = vst [vmem:[%s255 + $0x150] sm:$0xff] %v2845
        %2931 = vst [vmem:[%s255 + $0x158] sm:$0xff] %v2847
        %2932 = vst [vmem:[%s255 + $0x160] sm:$0xff] %v2849
        %2933 = vst [vmem:[%s255 + $0x168] sm:$0xff] %v2851
        %2934 = vst [vmem:[%s255 + $0x170] sm:$0xff] %v2853
        %2935 = vst [vmem:[%s255 + $0x178] sm:$0xff] %v2855
        %2936 = vst [vmem:[%s255 + $0x180] sm:$0xff] %v2857
        %2937 = vst [vmem:[%s255 + $0x188] sm:$0xff] %v2859
        %2938 = vst [vmem:[%s255 + $0x190] sm:$0xff] %v2861
        %2939 = vst [vmem:[%s255 + $0x198] sm:$0xff] %v2863
        %2940 = vst [vmem:[%s255 + $0x1a0] sm:$0xff] %v2865
        %2941 = vst [vmem:[%s255 + $0x1a8] sm:$0xff] %v2867
        %2942 = vst [vmem:[%s255 + $0x1b0] sm:$0xff] %v2869
        %2943 = vst [vmem:[%s255 + $0x1b8] sm:$0xff] %v2871
        %2944 = vst [vmem:[%s255 + $0x1c0] sm:$0xff] %v2873
        %2945 = vst [vmem:[%s255 + $0x1c8] sm:$0xff] %v2875
        %2946 = vst [vmem:[%s255 + $0x1d0] sm:$0xff] %v2877
        %2947 = vst [vmem:[%s255 + $0x1d8] sm:$0xff] %v2879
        %2948 = vst [vmem:[%s255 + $0x1e0] sm:$0xff] %v2881
        %2949 = vst [vmem:[%s255 + $0x1e8] sm:$0xff] %v2883
        %2950 = vst [vmem:[%s255 + $0x1f0] sm:$0xff] %v2885
        %2951 = vst [vmem:[%s255 + $0x1f8] sm:$0xff] %v2887
        %s2952 = sand.u32 %s130, 1
        %s2953 = sand.u32 %s130, 1
        %s2954 = smul.addr %s2953, 512
        %s2955 = scalar_lea.vmem [#allocation7], %s2954
        // Predicated region
        $region49: #{forward.1} parent=35 // pred_check
          %p2956 = pneg %p140
        $region50: #{forward.1} parent=35 // pred_check_branch
          %2958 = sbr.rel (%p2956) target = $region52
        $region51: #{forward.1} parent=35 // pred_region
          %s2959 = smul.u32 16, %s22
          %s2960 = smul.addr %s21, 128
          %s2961 = sadd.s32 %s2959, %s2960
          %s2962 = smul.addr %s2961, 8
          %s2963 = scalar_lea.vmem %s4, %s2962
          // Predicated region
          $region53: #{forward.1} parent=51 // pred_check
            _
          $region54: #{forward.1} parent=51 // pred_check_branch
            %2965 = sbr.rel (0) target = $region56
          $region55: #{forward.1} parent=51 // pred_region
            // Predicated region
            $region57: #{forward.1} parent=55 // pred_check
              _
            $region58: #{forward.1} parent=55 // pred_check_branch
              %2967 = sbr.rel (0) target = $region60
            $region59: #{forward.1} parent=55 // pred_region
              loop: start=0, step=1, limit=1
              $region61: #{forward.1} parent=59 // loop_pre_header
                _
              $region62: #{forward.1} parent=59 // loop_header
                %s2969 = sphi 0, %s2973
                %p2970 = scmp.ge.s32.totalorder %s2969, 1
                %s2974 = sphi %s2955, %s2955
                %s2975 = sphi %s2963, %s2963
              $region63: #{forward.1} parent=59 // loop_header_branch
                %2972 = sbr.rel (%p2970) target = $region67
              $region64: #{forward.1} parent=59 // loop_body
                %v2976 = vld [vmem:[%s2974] sm:$0xff]
                %2977 = vst [vmem:[%s2975] sm:$0xff] %v2976
                %v2978 = vld [vmem:[%s2974 + $0x8] sm:$0xff]
                %2979 = vst [vmem:[%s2975 + $0x8] sm:$0xff] %v2978
                %v2980 = vld [vmem:[%s2974 + $0x10] sm:$0xff]
                %2981 = vst [vmem:[%s2975 + $0x10] sm:$0xff] %v2980
                %v2982 = vld [vmem:[%s2974 + $0x18] sm:$0xff]
                %2983 = vst [vmem:[%s2975 + $0x18] sm:$0xff] %v2982
                %v2984 = vld [vmem:[%s2974 + $0x20] sm:$0xff]
                %2985 = vst [vmem:[%s2975 + $0x20] sm:$0xff] %v2984
                %v2986 = vld [vmem:[%s2974 + $0x28] sm:$0xff]
                %2987 = vst [vmem:[%s2975 + $0x28] sm:$0xff] %v2986
                %v2988 = vld [vmem:[%s2974 + $0x30] sm:$0xff]
                %2989 = vst [vmem:[%s2975 + $0x30] sm:$0xff] %v2988
                %v2990 = vld [vmem:[%s2974 + $0x38] sm:$0xff]
                %2991 = vst [vmem:[%s2975 + $0x38] sm:$0xff] %v2990
                %v2992 = vld [vmem:[%s2974 + $0x40] sm:$0xff]
                %2993 = vst [vmem:[%s2975 + $0x40] sm:$0xff] %v2992
                %v2994 = vld [vmem:[%s2974 + $0x48] sm:$0xff]
                %2995 = vst [vmem:[%s2975 + $0x48] sm:$0xff] %v2994
                %v2996 = vld [vmem:[%s2974 + $0x50] sm:$0xff]
                %2997 = vst [vmem:[%s2975 + $0x50] sm:$0xff] %v2996
                %v2998 = vld [vmem:[%s2974 + $0x58] sm:$0xff]
                %2999 = vst [vmem:[%s2975 + $0x58] sm:$0xff] %v2998
                %v3000 = vld [vmem:[%s2974 + $0x60] sm:$0xff]
                %3001 = vst [vmem:[%s2975 + $0x60] sm:$0xff] %v3000
                %v3002 = vld [vmem:[%s2974 + $0x68] sm:$0xff]
                %3003 = vst [vmem:[%s2975 + $0x68] sm:$0xff] %v3002
                %v3004 = vld [vmem:[%s2974 + $0x70] sm:$0xff]
                %3005 = vst [vmem:[%s2975 + $0x70] sm:$0xff] %v3004
                %v3006 = vld [vmem:[%s2974 + $0x78] sm:$0xff]
                %3007 = vst [vmem:[%s2975 + $0x78] sm:$0xff] %v3006
                %v3008 = vld [vmem:[%s2974 + $0x80] sm:$0xff]
                %3009 = vst [vmem:[%s2975 + $0x100] sm:$0xff] %v3008
                %v3010 = vld [vmem:[%s2974 + $0x88] sm:$0xff]
                %3011 = vst [vmem:[%s2975 + $0x108] sm:$0xff] %v3010
                %v3012 = vld [vmem:[%s2974 + $0x90] sm:$0xff]
                %3013 = vst [vmem:[%s2975 + $0x110] sm:$0xff] %v3012
                %v3014 = vld [vmem:[%s2974 + $0x98] sm:$0xff]
                %3015 = vst [vmem:[%s2975 + $0x118] sm:$0xff] %v3014
                %v3016 = vld [vmem:[%s2974 + $0xa0] sm:$0xff]
                %3017 = vst [vmem:[%s2975 + $0x120] sm:$0xff] %v3016
                %v3018 = vld [vmem:[%s2974 + $0xa8] sm:$0xff]
                %3019 = vst [vmem:[%s2975 + $0x128] sm:$0xff] %v3018
                %v3020 = vld [vmem:[%s2974 + $0xb0] sm:$0xff]
                %3021 = vst [vmem:[%s2975 + $0x130] sm:$0xff] %v3020
                %v3022 = vld [vmem:[%s2974 + $0xb8] sm:$0xff]
                %3023 = vst [vmem:[%s2975 + $0x138] sm:$0xff] %v3022
                %v3024 = vld [vmem:[%s2974 + $0xc0] sm:$0xff]
                %3025 = vst [vmem:[%s2975 + $0x140] sm:$0xff] %v3024
                %v3026 = vld [vmem:[%s2974 + $0xc8] sm:$0xff]
                %3027 = vst [vmem:[%s2975 + $0x148] sm:$0xff] %v3026
                %v3028 = vld [vmem:[%s2974 + $0xd0] sm:$0xff]
                %3029 = vst [vmem:[%s2975 + $0x150] sm:$0xff] %v3028
                %v3030 = vld [vmem:[%s2974 + $0xd8] sm:$0xff]
                %3031 = vst [vmem:[%s2975 + $0x158] sm:$0xff] %v3030
                %v3032 = vld [vmem:[%s2974 + $0xe0] sm:$0xff]
                %3033 = vst [vmem:[%s2975 + $0x160] sm:$0xff] %v3032
                %v3034 = vld [vmem:[%s2974 + $0xe8] sm:$0xff]
                %3035 = vst [vmem:[%s2975 + $0x168] sm:$0xff] %v3034
                %v3036 = vld [vmem:[%s2974 + $0xf0] sm:$0xff]
                %3037 = vst [vmem:[%s2975 + $0x170] sm:$0xff] %v3036
                %v3038 = vld [vmem:[%s2974 + $0xf8] sm:$0xff]
                %3039 = vst [vmem:[%s2975 + $0x178] sm:$0xff] %v3038
                %v3040 = vld [vmem:[%s2974 + $0x100] sm:$0xff]
                %3041 = vst [vmem:[%s2975 + $0x200] sm:$0xff] %v3040
                %v3042 = vld [vmem:[%s2974 + $0x108] sm:$0xff]
                %3043 = vst [vmem:[%s2975 + $0x208] sm:$0xff] %v3042
                %v3044 = vld [vmem:[%s2974 + $0x110] sm:$0xff]
                %3045 = vst [vmem:[%s2975 + $0x210] sm:$0xff] %v3044
                %v3046 = vld [vmem:[%s2974 + $0x118] sm:$0xff]
                %3047 = vst [vmem:[%s2975 + $0x218] sm:$0xff] %v3046
                %v3048 = vld [vmem:[%s2974 + $0x120] sm:$0xff]
                %3049 = vst [vmem:[%s2975 + $0x220] sm:$0xff] %v3048
                %v3050 = vld [vmem:[%s2974 + $0x128] sm:$0xff]
                %3051 = vst [vmem:[%s2975 + $0x228] sm:$0xff] %v3050
                %v3052 = vld [vmem:[%s2974 + $0x130] sm:$0xff]
                %3053 = vst [vmem:[%s2975 + $0x230] sm:$0xff] %v3052
                %v3054 = vld [vmem:[%s2974 + $0x138] sm:$0xff]
                %3055 = vst [vmem:[%s2975 + $0x238] sm:$0xff] %v3054
                %v3056 = vld [vmem:[%s2974 + $0x140] sm:$0xff]
                %3057 = vst [vmem:[%s2975 + $0x240] sm:$0xff] %v3056
                %v3058 = vld [vmem:[%s2974 + $0x148] sm:$0xff]
                %3059 = vst [vmem:[%s2975 + $0x248] sm:$0xff] %v3058
                %v3060 = vld [vmem:[%s2974 + $0x150] sm:$0xff]
                %3061 = vst [vmem:[%s2975 + $0x250] sm:$0xff] %v3060
                %v3062 = vld [vmem:[%s2974 + $0x158] sm:$0xff]
                %3063 = vst [vmem:[%s2975 + $0x258] sm:$0xff] %v3062
                %v3064 = vld [vmem:[%s2974 + $0x160] sm:$0xff]
                %3065 = vst [vmem:[%s2975 + $0x260] sm:$0xff] %v3064
                %v3066 = vld [vmem:[%s2974 + $0x168] sm:$0xff]
                %3067 = vst [vmem:[%s2975 + $0x268] sm:$0xff] %v3066
                %v3068 = vld [vmem:[%s2974 + $0x170] sm:$0xff]
                %3069 = vst [vmem:[%s2975 + $0x270] sm:$0xff] %v3068
                %v3070 = vld [vmem:[%s2974 + $0x178] sm:$0xff]
                %3071 = vst [vmem:[%s2975 + $0x278] sm:$0xff] %v3070
                %v3072 = vld [vmem:[%s2974 + $0x180] sm:$0xff]
                %3073 = vst [vmem:[%s2975 + $0x300] sm:$0xff] %v3072
                %v3074 = vld [vmem:[%s2974 + $0x188] sm:$0xff]
                %3075 = vst [vmem:[%s2975 + $0x308] sm:$0xff] %v3074
                %v3076 = vld [vmem:[%s2974 + $0x190] sm:$0xff]
                %3077 = vst [vmem:[%s2975 + $0x310] sm:$0xff] %v3076
                %v3078 = vld [vmem:[%s2974 + $0x198] sm:$0xff]
                %3079 = vst [vmem:[%s2975 + $0x318] sm:$0xff] %v3078
                %v3080 = vld [vmem:[%s2974 + $0x1a0] sm:$0xff]
                %3081 = vst [vmem:[%s2975 + $0x320] sm:$0xff] %v3080
                %v3082 = vld [vmem:[%s2974 + $0x1a8] sm:$0xff]
                %3083 = vst [vmem:[%s2975 + $0x328] sm:$0xff] %v3082
                %v3084 = vld [vmem:[%s2974 + $0x1b0] sm:$0xff]
                %3085 = vst [vmem:[%s2975 + $0x330] sm:$0xff] %v3084
                %v3086 = vld [vmem:[%s2974 + $0x1b8] sm:$0xff]
                %3087 = vst [vmem:[%s2975 + $0x338] sm:$0xff] %v3086
                %v3088 = vld [vmem:[%s2974 + $0x1c0] sm:$0xff]
                %3089 = vst [vmem:[%s2975 + $0x340] sm:$0xff] %v3088
                %v3090 = vld [vmem:[%s2974 + $0x1c8] sm:$0xff]
                %3091 = vst [vmem:[%s2975 + $0x348] sm:$0xff] %v3090
                %v3092 = vld [vmem:[%s2974 + $0x1d0] sm:$0xff]
                %3093 = vst [vmem:[%s2975 + $0x350] sm:$0xff] %v3092
                %v3094 = vld [vmem:[%s2974 + $0x1d8] sm:$0xff]
                %3095 = vst [vmem:[%s2975 + $0x358] sm:$0xff] %v3094
                %v3096 = vld [vmem:[%s2974 + $0x1e0] sm:$0xff]
                %3097 = vst [vmem:[%s2975 + $0x360] sm:$0xff] %v3096
                %v3098 = vld [vmem:[%s2974 + $0x1e8] sm:$0xff]
                %3099 = vst [vmem:[%s2975 + $0x368] sm:$0xff] %v3098
                %v3100 = vld [vmem:[%s2974 + $0x1f0] sm:$0xff]
                %3101 = vst [vmem:[%s2975 + $0x370] sm:$0xff] %v3100
                %v3102 = vld [vmem:[%s2974 + $0x1f8] sm:$0xff]
                %3103 = vst [vmem:[%s2975 + $0x378] sm:$0xff] %v3102
              $region65: #{forward.1} parent=59 // loop_footer
                %s2973 = sadd.s32 1, %s2969
              $region66: #{forward.1} parent=59 // loop_footer_branch
                %2968 = sbr.rel target = $region62
              $region67: #{forward.1} parent=59 // loop_exit
                _
            $region60: #{forward.1} parent=55 // pred_fallthru
              _
            // Predicated region
            $region68: #{forward.1} parent=55 // pred_check
              _
            $region69: #{forward.1} parent=55 // pred_check_branch
              %3105 = sbr.rel target = $region71
            $region70: #{forward.1} parent=55 // pred_region
              _
            $region71: #{forward.1} parent=55 // pred_fallthru
              _
          $region56: #{forward.1} parent=51 // pred_fallthru
            _
          %3106 = vnop
        $region52: #{forward.1} parent=35 // pred_fallthru
          _
      $region36: #{forward.1} parent=5 // pred_fallthru
        _
      %p3107 = scmp.le.s32.totalorder 2, %s12
      // Predicated region
      $region72: #{forward.1} parent=5 // pred_check
        %p3108 = pneg %p3107
      $region73: #{forward.1} parent=5 // pred_check_branch
        %3110 = sbr.rel (%p3108) target = $region75
      $region74: #{forward.1} parent=5 // pred_region
        %s3111 = ssub.s32 %s12, 2
        // Predicated region
        $region76: #{forward.1} parent=74 // pred_check
          %p3112 = pneg %p146
        $region77: #{forward.1} parent=74 // pred_check_branch
          %3114 = sbr.rel (%p3112) target = $region79
        $region78: #{forward.1} parent=74 // pred_region
          %s3115 = sand.u32 %s131, 1
          %s3116 = sand.u32 %s131, 1
          %s3117 = smul.addr %s3116, 512
          %s3118 = scalar_lea.vmem [#allocation7], %s3117
        $region79: #{forward.1} parent=74 // pred_fallthru
          _
      $region75: #{forward.1} parent=5 // pred_fallthru
        _
    $region6: #{forward.1} parent=1 // loop_footer
      %s16 = sadd.s32 1, %s12
    $region7: #{forward.1} parent=1 // loop_footer_branch
      %11 = sbr.rel target = $region3
    $region8: #{forward.1} parent=1 // loop_exit
      _
    %3119 = vsyncpa [#allocation3], 1
    %s3120 = scalar_lea.sflag [#allocation3], 1
    %3121 = vsyncpa %s3120, 1
    %3122 = vsyncpa [#allocation5], 1

</llo_original>
